<compile_context>
chip_gen: v5e
topology: v5e:2x2
jax: 0.10.0
libtpu: 0.0.40
codegen_flags: <defaults>
</compile_context>

<pallas_src>
import jax
import jax.numpy as jnp
from jax import lax
from jax.experimental import pallas as pl
from jax.experimental.pallas import tpu as pltpu


_LEAKY_SLOPE = 0.02


def _mlp_kernel(x_ref,
                w1, b1, w2, b2, w3, b3, w4, b4, w5, b5, w6, b6, w7, b7,
                o_ref):
    compute_dtype = w1.dtype

    def layer(h, w_ref, b_ref):
        # bf16 x bf16 -> f32 on the MXU; bias + leaky_relu in f32 on the VPU
        # (max(y, slope*y) == leaky_relu for slope in (0,1)), then cast back
        # to the compute dtype for the next MXU pass.
        y = jnp.dot(h, w_ref[...], preferred_element_type=jnp.float32)
        y = y + b_ref[...]
        y = jnp.maximum(y, _LEAKY_SLOPE * y)
        return y.astype(compute_dtype)

    # Input arrives as f32 (tm, 35); cast to the MXU compute dtype in-kernel
    # (avoids a separate XLA pad+cast pass over HBM in the wrapper).
    h = x_ref[...].astype(compute_dtype)
    h = layer(h, w1, b1)
    h = layer(h, w2, b2)
    h = layer(h, w3, b3)
    h = layer(h, w4, b4)
    h = layer(h, w5, b5)
    h = layer(h, w6, b6)

    # Final 32 -> 3 layer computed transposed: contract w7 (3, K) with
    # h (tm, K) over K -> (3, tm) block, so output stores are lane-dense.
    out = lax.dot_general(w7[...], h, (((1,), (1,)), ((), ())),
                          preferred_element_type=jnp.float32)
    out = out + b7[...]
    o_ref[...] = out.astype(o_ref.dtype)


def _choose_tm(N, tm_max=4096, align=512):
    """Row tile: multiple of `align`, capped at tm_max, and (for N > align)
    small enough that there are at least 2 grid blocks (v7x megacore)."""
    if N <= align:
        return align
    return min(tm_max, pl.cdiv(pl.cdiv(N, 2), align) * align)


def generator_nand_u_forward(points, params, *, tm=None,
                             compute_dtype=jnp.bfloat16):
    """Fused forward pass of generator_NAND_U.

    points: (N, z_dim + point_dim) float32
    params: list of (W, b) tuples with W of shape (in, out), b of shape (1, out)
            (i.e. PyTorch Linear weights pre-transposed to (in, out)).
    Returns (N, 3) in points.dtype.
    """
    N, din = points.shape
    out_dim = params[-1][0].shape[1]
    n_layers = len(params)

    if tm is None:
        tm = _choose_tm(N)
    n_blocks = pl.cdiv(N, tm)
    N_pad = n_blocks * tm

    # Only the batch dim is padded (and only if N is not a multiple of tm);
    # features are left at their true width (35) -- no pad/cast HBM pass.
    x = points.astype(jnp.float32)
    if N_pad != N:
        x = jnp.pad(x, ((0, N_pad - N), (0, 0)))

    # Flatten params into w1, b1, ..., w7, b7 (all VMEM-resident full blocks
    # with constant index maps).
    flat_args = []
    flat_specs = []
    for li, (w, b) in enumerate(params):
        if li == n_layers - 1:
            # Keep last layer as (out, in) for the transposed final dot,
            # and bias as an (out, 1) column for the (out, tm) output block.
            w = w.T
            b = b.reshape(out_dim, 1)
        wc = w.astype(compute_dtype)
        bc = b.astype(jnp.float32)
        flat_args.extend([wc, bc])
        flat_specs.append(pl.BlockSpec(wc.shape, lambda i: (0, 0)))
        flat_specs.append(pl.BlockSpec(bc.shape, lambda i: (0, 0)))

    layer_dims = [(p[0].shape[0], p[0].shape[1]) for p in params]
    flops = 2 * N_pad * sum(di * do for di, do in layer_dims)
    bytes_accessed = (x.size * x.dtype.itemsize
                      + N_pad * out_dim * 4
                      + sum(int(a.size) * a.dtype.itemsize for a in flat_args))

    # Note: tm is capped at 4096, so per-step VMEM (double-buffered f32 input
    # tile + f32/bf16 intermediates + <0.4 MiB resident weights) stays well
    # under the default scoped VMEM on v5e (16 MiB) / v6e / v7x (32 MiB) --
    # no explicit vmem_limit_bytes needed.
    out_t = pl.pallas_call(
        _mlp_kernel,
        out_shape=jax.ShapeDtypeStruct((out_dim, N_pad), jnp.float32),
        grid_spec=pltpu.PrefetchScalarGridSpec(
            num_scalar_prefetch=0,
            grid=(n_blocks,),
            in_specs=[pl.BlockSpec((tm, din), lambda i: (i, 0))] + flat_specs,
            out_specs=pl.BlockSpec((out_dim, tm), lambda i: (0, i)),
        ),
        compiler_params=pltpu.CompilerParams(
            dimension_semantics=("parallel",)),
        cost_estimate=pl.CostEstimate(flops=flops, transcendentals=0,
                                      bytes_accessed=bytes_accessed),
    )(x, *flat_args)

    # (3, N_pad) -> (N, 3)
    return out_t[:, :N].T.astype(points.dtype)


def make_params(key, z_dim, point_dim, gf_dim, dtype=jnp.float32):
    """Deterministic synthetic parameters matching the module's __init__ shapes.

    PyTorch Linear(in, out) stores weight (out, in); we pre-transpose to
    (in, out) so the forward computes x @ W + b.
    """
    dims = [
        (z_dim + point_dim, gf_dim * 8),
        (gf_dim * 8, gf_dim * 8),
        (gf_dim * 8, gf_dim * 8),
        (gf_dim * 8, gf_dim * 4),
        (gf_dim * 4, gf_dim * 2),
        (gf_dim * 2, gf_dim * 1),
        (gf_dim * 1, 3),
    ]
    params = []
    for (din, dout) in dims:
        key, kw, kb = jax.random.split(key, 3)
        bound = 1.0 / jnp.sqrt(jnp.array(din, dtype=jnp.float32))
        w = jax.random.uniform(kw, (din, dout), dtype=dtype,
                               minval=-bound, maxval=bound)
        b = jax.random.uniform(kb, (1, dout), dtype=dtype,
                               minval=-bound, maxval=bound)
        params.append((w, b))
    return params


def _reference_mixed(points, params, compute_dtype=jnp.bfloat16):
    """Pure-JAX reference with the same mixed-precision recipe as the kernel."""
    h = points.astype(compute_dtype)
    n_layers = len(params)
    for i, (w, b) in enumerate(params):
        y = jnp.dot(h, w.astype(compute_dtype),
                    preferred_element_type=jnp.float32)
        y = y + b.astype(jnp.float32)
        if i < n_layers - 1:
            y = jnp.maximum(y, _LEAKY_SLOPE * y)
            h = y.astype(compute_dtype)
        else:
            h = y
    return h.astype(points.dtype)


def _reference_f32(points, params):
    """Pure-f32 reference matching the original PyTorch module's math."""
    h = points.astype(jnp.float32)
    n_layers = len(params)
    for i, (w, b) in enumerate(params):
        h = jnp.dot(h, w.astype(jnp.float32),
                    preferred_element_type=jnp.float32)
        h = h + b.astype(jnp.float32)
        if i < n_layers - 1:
            h = jnp.where(h > 0, h, _LEAKY_SLOPE * h)
    return h.astype(points.dtype)


if __name__ == "__main__":
    # Small shapes consistent with the module: z_dim=32, point_dim=3, gf_dim=32.
    z_dim, point_dim, gf_dim = 32, 3, 32
    N = 1000  # not a multiple of the row tile -> exercises the padding path

    key = jax.random.PRNGKey(0)
    key, kx = jax.random.split(key)
    points = jax.random.normal(kx, (N, z_dim + point_dim), dtype=jnp.float32)

    params = make_params(key, z_dim, point_dim, gf_dim)

    out = generator_nand_u_forward(points, params)
    out = jax.block_until_ready(out)

    ref_mixed = _reference_mixed(points, params)
    ref_f32 = _reference_f32(points, params)

    assert out.shape == (N, 3), out.shape
    # Tight check vs. the same mixed-precision recipe (validates the kernel).
    assert jnp.allclose(out, ref_mixed, atol=1e-2, rtol=1e-2), \
        "mismatch vs mixed-precision reference"
    # Loose check vs. the original f32 module math (bf16 MXU accumulation
    # differs from f32 by ~1e-2 relative; pass compute_dtype=jnp.float32 to
    # generator_nand_u_forward if strict f32 parity is required).
    assert jnp.allclose(out, ref_f32, atol=1e-1, rtol=1e-1), \
        "mismatch vs f32 reference"

    print("KERNEL_OK")
</pallas_src>

<mosaic_0001>
module attributes {stable_mosaic.version = 11 : i64} {
  func.func @_mlp_kernel(%arg0: i32, %arg1: memref<512x35xf32, #tpu.memory_space<vmem>>, %arg2: memref<35x256xbf16, #tpu.memory_space<vmem>>, %arg3: memref<1x256xf32, #tpu.memory_space<vmem>>, %arg4: memref<256x256xbf16, #tpu.memory_space<vmem>>, %arg5: memref<1x256xf32, #tpu.memory_space<vmem>>, %arg6: memref<256x256xbf16, #tpu.memory_space<vmem>>, %arg7: memref<1x256xf32, #tpu.memory_space<vmem>>, %arg8: memref<256x128xbf16, #tpu.memory_space<vmem>>, %arg9: memref<1x128xf32, #tpu.memory_space<vmem>>, %arg10: memref<128x64xbf16, #tpu.memory_space<vmem>>, %arg11: memref<1x64xf32, #tpu.memory_space<vmem>>, %arg12: memref<64x32xbf16, #tpu.memory_space<vmem>>, %arg13: memref<1x32xf32, #tpu.memory_space<vmem>>, %arg14: memref<3x32xbf16, #tpu.memory_space<vmem>>, %arg15: memref<3x1xf32, #tpu.memory_space<vmem>>, %arg16: memref<3x512xf32, #tpu.memory_space<vmem>>) attributes {dimension_semantics = [#tpu.dimension_semantics<parallel>], iteration_bounds = array<i64: 2>, scalar_prefetch = 0 : i64, scratch_operands = 0 : i64, tpu.core_type = #tpu.core_type<tc>, window_params = [{transform_indices = @transform_0, window_bounds = array<i64: 512, 35>}, {pipeline_mode = #tpu.pipeline_mode<synchronous>, transform_indices = @transform_1, window_bounds = array<i64: 35, 256>}, {pipeline_mode = #tpu.pipeline_mode<synchronous>, transform_indices = @transform_2, window_bounds = array<i64: 1, 256>}, {pipeline_mode = #tpu.pipeline_mode<synchronous>, transform_indices = @transform_3, window_bounds = array<i64: 256, 256>}, {pipeline_mode = #tpu.pipeline_mode<synchronous>, transform_indices = @transform_4, window_bounds = array<i64: 1, 256>}, {pipeline_mode = #tpu.pipeline_mode<synchronous>, transform_indices = @transform_5, window_bounds = array<i64: 256, 256>}, {pipeline_mode = #tpu.pipeline_mode<synchronous>, transform_indices = @transform_6, window_bounds = array<i64: 1, 256>}, {pipeline_mode = #tpu.pipeline_mode<synchronous>, transform_indices = @transform_7, window_bounds = array<i64: 256, 128>}, {pipeline_mode = #tpu.pipeline_mode<synchronous>, transform_indices = @transform_8, window_bounds = array<i64: 1, 128>}, {pipeline_mode = #tpu.pipeline_mode<synchronous>, transform_indices = @transform_9, window_bounds = array<i64: 128, 64>}, {pipeline_mode = #tpu.pipeline_mode<synchronous>, transform_indices = @transform_10, window_bounds = array<i64: 1, 64>}, {pipeline_mode = #tpu.pipeline_mode<synchronous>, transform_indices = @transform_11, window_bounds = array<i64: 64, 32>}, {pipeline_mode = #tpu.pipeline_mode<synchronous>, transform_indices = @transform_12, window_bounds = array<i64: 1, 32>}, {pipeline_mode = #tpu.pipeline_mode<synchronous>, transform_indices = @transform_13, window_bounds = array<i64: 3, 32>}, {pipeline_mode = #tpu.pipeline_mode<synchronous>, transform_indices = @transform_14, window_bounds = array<i64: 3, 1>}, {transform_indices = @transform_15, window_bounds = array<i64: 3, 512>}]} {
    %c0 = arith.constant 0 : index
    %c0_0 = arith.constant 0 : index
    %0 = vector.load %arg1[%c0, %c0_0] : memref<512x35xf32, #tpu.memory_space<vmem>>, vector<512x35xf32>
    %1 = arith.truncf %0 : vector<512x35xf32> to vector<512x35xbf16>
    %c0_1 = arith.constant 0 : index
    %c0_2 = arith.constant 0 : index
    %2 = vector.load %arg2[%c0_1, %c0_2] : memref<35x256xbf16, #tpu.memory_space<vmem>>, vector<35x256xbf16>
    %cst = arith.constant dense<0.000000e+00> : vector<512x256xf32>
    %3 = tpu.matmul %1, %2, %cst {dimension_numbers = #tpu.dot_dimension_numbers<[1], [0], [0], [1], [0, 0, 1, 1], [], []>} : vector<512x35xbf16>, vector<35x256xbf16>, vector<512x256xf32> -> vector<512x256xf32>
    %c0_3 = arith.constant 0 : index
    %c0_4 = arith.constant 0 : index
    %4 = vector.load %arg3[%c0_3, %c0_4] : memref<1x256xf32, #tpu.memory_space<vmem>>, vector<1x256xf32>
    %5 = vector.broadcast %4 : vector<1x256xf32> to vector<512x256xf32>
    %6 = arith.addf %3, %5 : vector<512x256xf32>
    %cst_5 = arith.constant 2.000000e-02 : f32
    %7 = vector.broadcast %cst_5 : f32 to vector<512x256xf32>
    %8 = arith.mulf %7, %6 : vector<512x256xf32>
    %9 = arith.maximumf %6, %8 : vector<512x256xf32>
    %10 = arith.truncf %9 : vector<512x256xf32> to vector<512x256xbf16>
    %c0_6 = arith.constant 0 : index
    %c0_7 = arith.constant 0 : index
    %11 = vector.load %arg4[%c0_6, %c0_7] : memref<256x256xbf16, #tpu.memory_space<vmem>>, vector<256x256xbf16>
    %cst_8 = arith.constant dense<0.000000e+00> : vector<512x256xf32>
    %12 = tpu.matmul %10, %11, %cst_8 {dimension_numbers = #tpu.dot_dimension_numbers<[1], [0], [0], [1], [0, 0, 1, 1], [], []>} : vector<512x256xbf16>, vector<256x256xbf16>, vector<512x256xf32> -> vector<512x256xf32>
    %c0_9 = arith.constant 0 : index
    %c0_10 = arith.constant 0 : index
    %13 = vector.load %arg5[%c0_9, %c0_10] : memref<1x256xf32, #tpu.memory_space<vmem>>, vector<1x256xf32>
    %14 = vector.broadcast %13 : vector<1x256xf32> to vector<512x256xf32>
    %15 = arith.addf %12, %14 : vector<512x256xf32>
    %cst_11 = arith.constant 2.000000e-02 : f32
    %16 = vector.broadcast %cst_11 : f32 to vector<512x256xf32>
    %17 = arith.mulf %16, %15 : vector<512x256xf32>
    %18 = arith.maximumf %15, %17 : vector<512x256xf32>
    %19 = arith.truncf %18 : vector<512x256xf32> to vector<512x256xbf16>
    %c0_12 = arith.constant 0 : index
    %c0_13 = arith.constant 0 : index
    %20 = vector.load %arg6[%c0_12, %c0_13] : memref<256x256xbf16, #tpu.memory_space<vmem>>, vector<256x256xbf16>
    %cst_14 = arith.constant dense<0.000000e+00> : vector<512x256xf32>
    %21 = tpu.matmul %19, %20, %cst_14 {dimension_numbers = #tpu.dot_dimension_numbers<[1], [0], [0], [1], [0, 0, 1, 1], [], []>} : vector<512x256xbf16>, vector<256x256xbf16>, vector<512x256xf32> -> vector<512x256xf32>
    %c0_15 = arith.constant 0 : index
    %c0_16 = arith.constant 0 : index
    %22 = vector.load %arg7[%c0_15, %c0_16] : memref<1x256xf32, #tpu.memory_space<vmem>>, vector<1x256xf32>
    %23 = vector.broadcast %22 : vector<1x256xf32> to vector<512x256xf32>
    %24 = arith.addf %21, %23 : vector<512x256xf32>
    %cst_17 = arith.constant 2.000000e-02 : f32
    %25 = vector.broadcast %cst_17 : f32 to vector<512x256xf32>
    %26 = arith.mulf %25, %24 : vector<512x256xf32>
    %27 = arith.maximumf %24, %26 : vector<512x256xf32>
    %28 = arith.truncf %27 : vector<512x256xf32> to vector<512x256xbf16>
    %c0_18 = arith.constant 0 : index
    %c0_19 = arith.constant 0 : index
    %29 = vector.load %arg8[%c0_18, %c0_19] : memref<256x128xbf16, #tpu.memory_space<vmem>>, vector<256x128xbf16>
    %cst_20 = arith.constant dense<0.000000e+00> : vector<512x128xf32>
    %30 = tpu.matmul %28, %29, %cst_20 {dimension_numbers = #tpu.dot_dimension_numbers<[1], [0], [0], [1], [0, 0, 1, 1], [], []>} : vector<512x256xbf16>, vector<256x128xbf16>, vector<512x128xf32> -> vector<512x128xf32>
    %c0_21 = arith.constant 0 : index
    %c0_22 = arith.constant 0 : index
    %31 = vector.load %arg9[%c0_21, %c0_22] : memref<1x128xf32, #tpu.memory_space<vmem>>, vector<1x128xf32>
    %32 = vector.broadcast %31 : vector<1x128xf32> to vector<512x128xf32>
    %33 = arith.addf %30, %32 : vector<512x128xf32>
    %cst_23 = arith.constant 2.000000e-02 : f32
    %34 = vector.broadcast %cst_23 : f32 to vector<512x128xf32>
    %35 = arith.mulf %34, %33 : vector<512x128xf32>
    %36 = arith.maximumf %33, %35 : vector<512x128xf32>
    %37 = arith.truncf %36 : vector<512x128xf32> to vector<512x128xbf16>
    %c0_24 = arith.constant 0 : index
    %c0_25 = arith.constant 0 : index
    %38 = vector.load %arg10[%c0_24, %c0_25] : memref<128x64xbf16, #tpu.memory_space<vmem>>, vector<128x64xbf16>
    %cst_26 = arith.constant dense<0.000000e+00> : vector<512x64xf32>
    %39 = tpu.matmul %37, %38, %cst_26 {dimension_numbers = #tpu.dot_dimension_numbers<[1], [0], [0], [1], [0, 0, 1, 1], [], []>} : vector<512x128xbf16>, vector<128x64xbf16>, vector<512x64xf32> -> vector<512x64xf32>
    %c0_27 = arith.constant 0 : index
    %c0_28 = arith.constant 0 : index
    %40 = vector.load %arg11[%c0_27, %c0_28] : memref<1x64xf32, #tpu.memory_space<vmem>>, vector<1x64xf32>
    %41 = vector.broadcast %40 : vector<1x64xf32> to vector<512x64xf32>
    %42 = arith.addf %39, %41 : vector<512x64xf32>
    %cst_29 = arith.constant 2.000000e-02 : f32
    %43 = vector.broadcast %cst_29 : f32 to vector<512x64xf32>
    %44 = arith.mulf %43, %42 : vector<512x64xf32>
    %45 = arith.maximumf %42, %44 : vector<512x64xf32>
    %46 = arith.truncf %45 : vector<512x64xf32> to vector<512x64xbf16>
    %c0_30 = arith.constant 0 : index
    %c0_31 = arith.constant 0 : index
    %47 = vector.load %arg12[%c0_30, %c0_31] : memref<64x32xbf16, #tpu.memory_space<vmem>>, vector<64x32xbf16>
    %cst_32 = arith.constant dense<0.000000e+00> : vector<512x32xf32>
    %48 = tpu.matmul %46, %47, %cst_32 {dimension_numbers = #tpu.dot_dimension_numbers<[1], [0], [0], [1], [0, 0, 1, 1], [], []>} : vector<512x64xbf16>, vector<64x32xbf16>, vector<512x32xf32> -> vector<512x32xf32>
    %c0_33 = arith.constant 0 : index
    %c0_34 = arith.constant 0 : index
    %49 = vector.load %arg13[%c0_33, %c0_34] : memref<1x32xf32, #tpu.memory_space<vmem>>, vector<1x32xf32>
    %50 = vector.broadcast %49 : vector<1x32xf32> to vector<512x32xf32>
    %51 = arith.addf %48, %50 : vector<512x32xf32>
    %cst_35 = arith.constant 2.000000e-02 : f32
    %52 = vector.broadcast %cst_35 : f32 to vector<512x32xf32>
    %53 = arith.mulf %52, %51 : vector<512x32xf32>
    %54 = arith.maximumf %51, %53 : vector<512x32xf32>
    %55 = arith.truncf %54 : vector<512x32xf32> to vector<512x32xbf16>
    %c0_36 = arith.constant 0 : index
    %c0_37 = arith.constant 0 : index
    %56 = vector.load %arg14[%c0_36, %c0_37] : memref<3x32xbf16, #tpu.memory_space<vmem>>, vector<3x32xbf16>
    %cst_38 = arith.constant dense<0.000000e+00> : vector<3x512xf32>
    %57 = tpu.matmul %56, %55, %cst_38 {dimension_numbers = #tpu.dot_dimension_numbers<[1], [1], [0], [0], [0, 0, 1, 0], [], []>} : vector<3x32xbf16>, vector<512x32xbf16>, vector<3x512xf32> -> vector<3x512xf32>
    %c0_39 = arith.constant 0 : index
    %c0_40 = arith.constant 0 : index
    %58 = vector.load %arg15[%c0_39, %c0_40] : memref<3x1xf32, #tpu.memory_space<vmem>>, vector<3x1xf32>
    %59 = vector.broadcast %58 : vector<3x1xf32> to vector<3x512xf32>
    %60 = arith.addf %57, %59 : vector<3x512xf32>
    %c0_41 = arith.constant 0 : index
    %c0_42 = arith.constant 0 : index
    %61 = vector.load %arg16[%c0_41, %c0_42] : memref<3x512xf32, #tpu.memory_space<vmem>>, vector<3x512xf32>
    tpu.vector_store %arg16[%c0_41, %c0_42], %60 {strides = array<i32>} : memref<3x512xf32, #tpu.memory_space<vmem>>, vector<3x512xf32>,
    return
  }
  func.func @transform_0(%arg0: i32) -> (i32, i32) {
    %c0_i32 = arith.constant 0 : i32
    %c0_i32_0 = arith.constant 0 : i32
    return %arg0, %c0_i32 : i32, i32
  }
  func.func @transform_1(%arg0: i32) -> (i32, i32) {
    %c0_i32 = arith.constant 0 : i32
    %c0_i32_0 = arith.constant 0 : i32
    %c0_i32_1 = arith.constant 0 : i32
    return %c0_i32, %c0_i32_0 : i32, i32
  }
  func.func @transform_2(%arg0: i32) -> (i32, i32) {
    %c0_i32 = arith.constant 0 : i32
    %c0_i32_0 = arith.constant 0 : i32
    %c0_i32_1 = arith.constant 0 : i32
    return %c0_i32, %c0_i32_0 : i32, i32
  }
  func.func @transform_3(%arg0: i32) -> (i32, i32) {
    %c0_i32 = arith.constant 0 : i32
    %c0_i32_0 = arith.constant 0 : i32
    %c0_i32_1 = arith.constant 0 : i32
    return %c0_i32, %c0_i32_0 : i32, i32
  }
  func.func @transform_4(%arg0: i32) -> (i32, i32) {
    %c0_i32 = arith.constant 0 : i32
    %c0_i32_0 = arith.constant 0 : i32
    %c0_i32_1 = arith.constant 0 : i32
    return %c0_i32, %c0_i32_0 : i32, i32
  }
  func.func @transform_5(%arg0: i32) -> (i32, i32) {
    %c0_i32 = arith.constant 0 : i32
    %c0_i32_0 = arith.constant 0 : i32
    %c0_i32_1 = arith.constant 0 : i32
    return %c0_i32, %c0_i32_0 : i32, i32
  }
  func.func @transform_6(%arg0: i32) -> (i32, i32) {
    %c0_i32 = arith.constant 0 : i32
    %c0_i32_0 = arith.constant 0 : i32
    %c0_i32_1 = arith.constant 0 : i32
    return %c0_i32, %c0_i32_0 : i32, i32
  }
  func.func @transform_7(%arg0: i32) -> (i32, i32) {
    %c0_i32 = arith.constant 0 : i32
    %c0_i32_0 = arith.constant 0 : i32
    %c0_i32_1 = arith.constant 0 : i32
    return %c0_i32, %c0_i32_0 : i32, i32
  }
  func.func @transform_8(%arg0: i32) -> (i32, i32) {
    %c0_i32 = arith.constant 0 : i32
    %c0_i32_0 = arith.constant 0 : i32
    %c0_i32_1 = arith.constant 0 : i32
    return %c0_i32, %c0_i32_0 : i32, i32
  }
  func.func @transform_9(%arg0: i32) -> (i32, i32) {
    %c0_i32 = arith.constant 0 : i32
    %c0_i32_0 = arith.constant 0 : i32
    %c0_i32_1 = arith.constant 0 : i32
    return %c0_i32, %c0_i32_0 : i32, i32
  }
  func.func @transform_10(%arg0: i32) -> (i32, i32) {
    %c0_i32 = arith.constant 0 : i32
    %c0_i32_0 = arith.constant 0 : i32
    %c0_i32_1 = arith.constant 0 : i32
    return %c0_i32, %c0_i32_0 : i32, i32
  }
  func.func @transform_11(%arg0: i32) -> (i32, i32) {
    %c0_i32 = arith.constant 0 : i32
    %c0_i32_0 = arith.constant 0 : i32
    %c0_i32_1 = arith.constant 0 : i32
    return %c0_i32, %c0_i32_0 : i32, i32
  }
  func.func @transform_12(%arg0: i32) -> (i32, i32) {
    %c0_i32 = arith.constant 0 : i32
    %c0_i32_0 = arith.constant 0 : i32
    %c0_i32_1 = arith.constant 0 : i32
    return %c0_i32, %c0_i32_0 : i32, i32
  }
  func.func @transform_13(%arg0: i32) -> (i32, i32) {
    %c0_i32 = arith.constant 0 : i32
    %c0_i32_0 = arith.constant 0 : i32
    %c0_i32_1 = arith.constant 0 : i32
    return %c0_i32, %c0_i32_0 : i32, i32
  }
  func.func @transform_14(%arg0: i32) -> (i32, i32) {
    %c0_i32 = arith.constant 0 : i32
    %c0_i32_0 = arith.constant 0 : i32
    %c0_i32_1 = arith.constant 0 : i32
    return %c0_i32, %c0_i32_0 : i32, i32
  }
  func.func @transform_15(%arg0: i32) -> (i32, i32) {
    %c0_i32 = arith.constant 0 : i32
    %c0_i32_0 = arith.constant 0 : i32
    return %c0_i32, %arg0 : i32, i32
  }
}

</mosaic_0001>

<llo_original>
// kernel: tpu_custom_call.1
$region0: #{tpu_custom_call.1}
  #allocation0 [shape = 'u32[]', space=smem, size = 0x4, offset = 0x4, fixed_abs, tag = 'smem constant byte address 0x4 - core index']
  #allocation1 [shape = 'u32[72,128]{1,0:T(1,128)}', space=vmem, size = 0x9000, scoped, tag = 'internal scratch']
  %s0 = inlined_call_operand.vmem [shape: f32[1024,35], index: 0, kind: input, shape index: {}]
  %s1 = inlined_call_operand.vmem [shape: bf16[35,256], index: 1, kind: input, shape index: {}]
  %s2 = inlined_call_operand.vmem [shape: f32[1,256], index: 2, kind: input, shape index: {}]
  %s3 = inlined_call_operand.vmem [shape: bf16[256,256], index: 3, kind: input, shape index: {}]
  %s4 = inlined_call_operand.vmem [shape: f32[1,256], index: 4, kind: input, shape index: {}]
  %s5 = inlined_call_operand.vmem [shape: bf16[256,256], index: 5, kind: input, shape index: {}]
  %s6 = inlined_call_operand.vmem [shape: f32[1,256], index: 6, kind: input, shape index: {}]
  %s7 = inlined_call_operand.vmem [shape: bf16[256,128], index: 7, kind: input, shape index: {}]
  %s8 = inlined_call_operand.vmem [shape: f32[1,128], index: 8, kind: input, shape index: {}]
  %s9 = inlined_call_operand.vmem [shape: bf16[128,64], index: 9, kind: input, shape index: {}]
  %s10 = inlined_call_operand.vmem [shape: f32[1,64], index: 10, kind: input, shape index: {}]
  %s11 = inlined_call_operand.vmem [shape: bf16[64,32], index: 11, kind: input, shape index: {}]
  %s12 = inlined_call_operand.vmem [shape: f32[1,32], index: 12, kind: input, shape index: {}]
  %s13 = inlined_call_operand.vmem [shape: bf16[3,32], index: 13, kind: input, shape index: {}]
  %s14 = inlined_call_operand.vmem [shape: f32[3,1], index: 14, kind: input, shape index: {}]
  %s15 = inlined_call_operand.hbm [shape: f32[3,1024], index: 15, kind: output, shape index: {}]
  %s16 = sld [smem:[#allocation0]]
  $region93: #{tpu_custom_call.1} parent=0
    _
  %s18 = ssub.s32 1, %s16
  %s19 = scalar_select 0, %s18, %s16
  $region1: #{tpu_custom_call.1} parent=0
    #allocation2 [shape = 'u8[16384]{0}', space=vmem, size = 0x4000, scoped, tag = 'output window, operand 0']
    #allocation3 [shape = 's32[2]{0}', space=sflag, size = 0x8, scoped, tag = 'scoped memory for tpu_custom_call.1']
    %20 = vsyncpa [#allocation3], 0
    %s21 = scalar_lea.sflag [#allocation3], 1
    %22 = vsyncpa %s21, 0
    loop: start=0, step=1, limit=4
    $region2: #{tpu_custom_call.1} parent=1 // loop_pre_header
      _
    $region3: #{tpu_custom_call.1} parent=1 // loop_header
      %s24 = sphi 0, %s28
      %p25 = scmp.ge.s32.totalorder %s24, 4
      %s34 = sphi 0, %s36
      %s37 = sphi 0, %s34
      %s38 = sphi 0, %s37
      %s54 = sphi 0, %s38
      %s58 = sphi 0, %s58
      %s60 = sphi 0, %s58
      %s61 = sphi 0, %s60
      %s75 = sphi 0, %s61
      %s79 = sphi 0, %s79
      %s81 = sphi 0, %s79
      %s82 = sphi 0, %s81
      %s96 = sphi 0, %s82
      %s100 = sphi 0, %s100
      %s102 = sphi 0, %s100
      %s103 = sphi 0, %s102
      %s117 = sphi 0, %s103
      %s121 = sphi 0, %s121
      %s123 = sphi 0, %s121
      %s124 = sphi 0, %s123
      %s138 = sphi 0, %s124
      %s142 = sphi 0, %s142
      %s144 = sphi 0, %s142
      %s145 = sphi 0, %s144
      %s159 = sphi 0, %s145
      %s163 = sphi 0, %s163
      %s165 = sphi 0, %s163
      %s166 = sphi 0, %s165
      %s180 = sphi 0, %s166
      %s184 = sphi 0, %s184
      %s186 = sphi 0, %s184
      %s187 = sphi 0, %s186
      %s201 = sphi 0, %s187
      %s205 = sphi 0, %s205
      %s207 = sphi 0, %s205
      %s208 = sphi 0, %s207
      %s222 = sphi 0, %s208
      %s226 = sphi 0, %s226
      %s228 = sphi 0, %s226
      %s229 = sphi 0, %s228
      %s243 = sphi 0, %s229
      %s247 = sphi 0, %s247
      %s249 = sphi 0, %s247
      %s250 = sphi 0, %s249
      %s264 = sphi 0, %s250
      %s268 = sphi 0, %s268
      %s270 = sphi 0, %s268
      %s271 = sphi 0, %s270
      %s285 = sphi 0, %s271
      %s289 = sphi 0, %s289
      %s291 = sphi 0, %s289
      %s292 = sphi 0, %s291
      %s306 = sphi 0, %s292
      %s310 = sphi 0, %s310
      %s312 = sphi 0, %s310
      %s313 = sphi 0, %s312
      %s327 = sphi 0, %s313
      %s331 = sphi 0, %s331
      %s333 = sphi 0, %s331
      %s334 = sphi 0, %s333
      %s348 = sphi 0, %s334
      %s354 = sphi 0, %s356
      %s357 = sphi 0, %s354
      %s358 = sphi 0, %s357
      %s374 = sphi 0, %s358
    $region4: #{tpu_custom_call.1} parent=1 // loop_header_branch
      %27 = sbr.rel (%p25) target = $region8
    $region5: #{tpu_custom_call.1} parent=1 // loop_body
      %s29 = ssub.s32 %s24, 1
      %s30 = ssub.s32 %s24, 2
      %s31 = sadd.s32 %s24, 1
      %s32 = ssub.s32 %s24, %s31
      %p33 = scmp.eq.s32.totalorder %s32, 0
      %s35 = sadd.s32 %s34, 1
      %s36 = scalar_select %p33, %s34, %s35
      %p39 = pneg %p33
      %p40 = scmp.eq.s32.totalorder %s24, 1
      %p41 = por %p39, %p40
      %p42 = scmp.ne.s32.totalorder %s34, %s37
      %p43 = scmp.eq.s32.totalorder %s24, 0
      %p44 = por %p42, %p43
      %p45 = scmp.ne.s32.totalorder %s34, %s37
      %p46 = scmp.eq.s32.totalorder %s29, 1
      %p47 = por %p45, %p46
      %p48 = scmp.ne.s32.totalorder %s37, %s38
      %p49 = scmp.eq.s32.totalorder %s29, 0
      %p50 = por %p48, %p49
      %p51 = scmp.ne.s32.totalorder %s37, %s38
      %p52 = scmp.eq.s32.totalorder %s30, 1
      %p53 = por %p51, %p52
      %p55 = scmp.ne.s32.totalorder %s38, %s54
      %p56 = scmp.eq.s32.totalorder %s30, 0
      %p57 = por %p55, %p56
      %s59 = sadd.s32 %s58, 1
      %p62 = scmp.eq.s32.totalorder %s24, 1
      %p63 = scmp.ne.s32.totalorder %s58, %s60
      %p64 = scmp.eq.s32.totalorder %s24, 0
      %p65 = por %p63, %p64
      %p66 = scmp.ne.s32.totalorder %s58, %s60
      %p67 = scmp.eq.s32.totalorder %s29, 1
      %p68 = por %p66, %p67
      %p69 = scmp.ne.s32.totalorder %s60, %s61
      %p70 = scmp.eq.s32.totalorder %s29, 0
      %p71 = por %p69, %p70
      %p72 = scmp.ne.s32.totalorder %s60, %s61
      %p73 = scmp.eq.s32.totalorder %s30, 1
      %p74 = por %p72, %p73
      %p76 = scmp.ne.s32.totalorder %s61, %s75
      %p77 = scmp.eq.s32.totalorder %s30, 0
      %p78 = por %p76, %p77
      %s80 = sadd.s32 %s79, 1
      %p83 = scmp.eq.s32.totalorder %s24, 1
      %p84 = scmp.ne.s32.totalorder %s79, %s81
      %p85 = scmp.eq.s32.totalorder %s24, 0
      %p86 = por %p84, %p85
      %p87 = scmp.ne.s32.totalorder %s79, %s81
      %p88 = scmp.eq.s32.totalorder %s29, 1
      %p89 = por %p87, %p88
      %p90 = scmp.ne.s32.totalorder %s81, %s82
      %p91 = scmp.eq.s32.totalorder %s29, 0
      %p92 = por %p90, %p91
      %p93 = scmp.ne.s32.totalorder %s81, %s82
      %p94 = scmp.eq.s32.totalorder %s30, 1
      %p95 = por %p93, %p94
      %p97 = scmp.ne.s32.totalorder %s82, %s96
      %p98 = scmp.eq.s32.totalorder %s30, 0
      %p99 = por %p97, %p98
      %s101 = sadd.s32 %s100, 1
      %p104 = scmp.eq.s32.totalorder %s24, 1
      %p105 = scmp.ne.s32.totalorder %s100, %s102
      %p106 = scmp.eq.s32.totalorder %s24, 0
      %p107 = por %p105, %p106
      %p108 = scmp.ne.s32.totalorder %s100, %s102
      %p109 = scmp.eq.s32.totalorder %s29, 1
      %p110 = por %p108, %p109
      %p111 = scmp.ne.s32.totalorder %s102, %s103
      %p112 = scmp.eq.s32.totalorder %s29, 0
      %p113 = por %p111, %p112
      %p114 = scmp.ne.s32.totalorder %s102, %s103
      %p115 = scmp.eq.s32.totalorder %s30, 1
      %p116 = por %p114, %p115
      %p118 = scmp.ne.s32.totalorder %s103, %s117
      %p119 = scmp.eq.s32.totalorder %s30, 0
      %p120 = por %p118, %p119
      %s122 = sadd.s32 %s121, 1
      %p125 = scmp.eq.s32.totalorder %s24, 1
      %p126 = scmp.ne.s32.totalorder %s121, %s123
      %p127 = scmp.eq.s32.totalorder %s24, 0
      %p128 = por %p126, %p127
      %p129 = scmp.ne.s32.totalorder %s121, %s123
      %p130 = scmp.eq.s32.totalorder %s29, 1
      %p131 = por %p129, %p130
      %p132 = scmp.ne.s32.totalorder %s123, %s124
      %p133 = scmp.eq.s32.totalorder %s29, 0
      %p134 = por %p132, %p133
      %p135 = scmp.ne.s32.totalorder %s123, %s124
      %p136 = scmp.eq.s32.totalorder %s30, 1
      %p137 = por %p135, %p136
      %p139 = scmp.ne.s32.totalorder %s124, %s138
      %p140 = scmp.eq.s32.totalorder %s30, 0
      %p141 = por %p139, %p140
      %s143 = sadd.s32 %s142, 1
      %p146 = scmp.eq.s32.totalorder %s24, 1
      %p147 = scmp.ne.s32.totalorder %s142, %s144
      %p148 = scmp.eq.s32.totalorder %s24, 0
      %p149 = por %p147, %p148
      %p150 = scmp.ne.s32.totalorder %s142, %s144
      %p151 = scmp.eq.s32.totalorder %s29, 1
      %p152 = por %p150, %p151
      %p153 = scmp.ne.s32.totalorder %s144, %s145
      %p154 = scmp.eq.s32.totalorder %s29, 0
      %p155 = por %p153, %p154
      %p156 = scmp.ne.s32.totalorder %s144, %s145
      %p157 = scmp.eq.s32.totalorder %s30, 1
      %p158 = por %p156, %p157
      %p160 = scmp.ne.s32.totalorder %s145, %s159
      %p161 = scmp.eq.s32.totalorder %s30, 0
      %p162 = por %p160, %p161
      %s164 = sadd.s32 %s163, 1
      %p167 = scmp.eq.s32.totalorder %s24, 1
      %p168 = scmp.ne.s32.totalorder %s163, %s165
      %p169 = scmp.eq.s32.totalorder %s24, 0
      %p170 = por %p168, %p169
      %p171 = scmp.ne.s32.totalorder %s163, %s165
      %p172 = scmp.eq.s32.totalorder %s29, 1
      %p173 = por %p171, %p172
      %p174 = scmp.ne.s32.totalorder %s165, %s166
      %p175 = scmp.eq.s32.totalorder %s29, 0
      %p176 = por %p174, %p175
      %p177 = scmp.ne.s32.totalorder %s165, %s166
      %p178 = scmp.eq.s32.totalorder %s30, 1
      %p179 = por %p177, %p178
      %p181 = scmp.ne.s32.totalorder %s166, %s180
      %p182 = scmp.eq.s32.totalorder %s30, 0
      %p183 = por %p181, %p182
      %s185 = sadd.s32 %s184, 1
      %p188 = scmp.eq.s32.totalorder %s24, 1
      %p189 = scmp.ne.s32.totalorder %s184, %s186
      %p190 = scmp.eq.s32.totalorder %s24, 0
      %p191 = por %p189, %p190
      %p192 = scmp.ne.s32.totalorder %s184, %s186
      %p193 = scmp.eq.s32.totalorder %s29, 1
      %p194 = por %p192, %p193
      %p195 = scmp.ne.s32.totalorder %s186, %s187
      %p196 = scmp.eq.s32.totalorder %s29, 0
      %p197 = por %p195, %p196
      %p198 = scmp.ne.s32.totalorder %s186, %s187
      %p199 = scmp.eq.s32.totalorder %s30, 1
      %p200 = por %p198, %p199
      %p202 = scmp.ne.s32.totalorder %s187, %s201
      %p203 = scmp.eq.s32.totalorder %s30, 0
      %p204 = por %p202, %p203
      %s206 = sadd.s32 %s205, 1
      %p209 = scmp.eq.s32.totalorder %s24, 1
      %p210 = scmp.ne.s32.totalorder %s205, %s207
      %p211 = scmp.eq.s32.totalorder %s24, 0
      %p212 = por %p210, %p211
      %p213 = scmp.ne.s32.totalorder %s205, %s207
      %p214 = scmp.eq.s32.totalorder %s29, 1
      %p215 = por %p213, %p214
      %p216 = scmp.ne.s32.totalorder %s207, %s208
      %p217 = scmp.eq.s32.totalorder %s29, 0
      %p218 = por %p216, %p217
      %p219 = scmp.ne.s32.totalorder %s207, %s208
      %p220 = scmp.eq.s32.totalorder %s30, 1
      %p221 = por %p219, %p220
      %p223 = scmp.ne.s32.totalorder %s208, %s222
      %p224 = scmp.eq.s32.totalorder %s30, 0
      %p225 = por %p223, %p224
      %s227 = sadd.s32 %s226, 1
      %p230 = scmp.eq.s32.totalorder %s24, 1
      %p231 = scmp.ne.s32.totalorder %s226, %s228
      %p232 = scmp.eq.s32.totalorder %s24, 0
      %p233 = por %p231, %p232
      %p234 = scmp.ne.s32.totalorder %s226, %s228
      %p235 = scmp.eq.s32.totalorder %s29, 1
      %p236 = por %p234, %p235
      %p237 = scmp.ne.s32.totalorder %s228, %s229
      %p238 = scmp.eq.s32.totalorder %s29, 0
      %p239 = por %p237, %p238
      %p240 = scmp.ne.s32.totalorder %s228, %s229
      %p241 = scmp.eq.s32.totalorder %s30, 1
      %p242 = por %p240, %p241
      %p244 = scmp.ne.s32.totalorder %s229, %s243
      %p245 = scmp.eq.s32.totalorder %s30, 0
      %p246 = por %p244, %p245
      %s248 = sadd.s32 %s247, 1
      %p251 = scmp.eq.s32.totalorder %s24, 1
      %p252 = scmp.ne.s32.totalorder %s247, %s249
      %p253 = scmp.eq.s32.totalorder %s24, 0
      %p254 = por %p252, %p253
      %p255 = scmp.ne.s32.totalorder %s247, %s249
      %p256 = scmp.eq.s32.totalorder %s29, 1
      %p257 = por %p255, %p256
      %p258 = scmp.ne.s32.totalorder %s249, %s250
      %p259 = scmp.eq.s32.totalorder %s29, 0
      %p260 = por %p258, %p259
      %p261 = scmp.ne.s32.totalorder %s249, %s250
      %p262 = scmp.eq.s32.totalorder %s30, 1
      %p263 = por %p261, %p262
      %p265 = scmp.ne.s32.totalorder %s250, %s264
      %p266 = scmp.eq.s32.totalorder %s30, 0
      %p267 = por %p265, %p266
      %s269 = sadd.s32 %s268, 1
      %p272 = scmp.eq.s32.totalorder %s24, 1
      %p273 = scmp.ne.s32.totalorder %s268, %s270
      %p274 = scmp.eq.s32.totalorder %s24, 0
      %p275 = por %p273, %p274
      %p276 = scmp.ne.s32.totalorder %s268, %s270
      %p277 = scmp.eq.s32.totalorder %s29, 1
      %p278 = por %p276, %p277
      %p279 = scmp.ne.s32.totalorder %s270, %s271
      %p280 = scmp.eq.s32.totalorder %s29, 0
      %p281 = por %p279, %p280
      %p282 = scmp.ne.s32.totalorder %s270, %s271
      %p283 = scmp.eq.s32.totalorder %s30, 1
      %p284 = por %p282, %p283
      %p286 = scmp.ne.s32.totalorder %s271, %s285
      %p287 = scmp.eq.s32.totalorder %s30, 0
      %p288 = por %p286, %p287
      %s290 = sadd.s32 %s289, 1
      %p293 = scmp.eq.s32.totalorder %s24, 1
      %p294 = scmp.ne.s32.totalorder %s289, %s291
      %p295 = scmp.eq.s32.totalorder %s24, 0
      %p296 = por %p294, %p295
      %p297 = scmp.ne.s32.totalorder %s289, %s291
      %p298 = scmp.eq.s32.totalorder %s29, 1
      %p299 = por %p297, %p298
      %p300 = scmp.ne.s32.totalorder %s291, %s292
      %p301 = scmp.eq.s32.totalorder %s29, 0
      %p302 = por %p300, %p301
      %p303 = scmp.ne.s32.totalorder %s291, %s292
      %p304 = scmp.eq.s32.totalorder %s30, 1
      %p305 = por %p303, %p304
      %p307 = scmp.ne.s32.totalorder %s292, %s306
      %p308 = scmp.eq.s32.totalorder %s30, 0
      %p309 = por %p307, %p308
      %s311 = sadd.s32 %s310, 1
      %p314 = scmp.eq.s32.totalorder %s24, 1
      %p315 = scmp.ne.s32.totalorder %s310, %s312
      %p316 = scmp.eq.s32.totalorder %s24, 0
      %p317 = por %p315, %p316
      %p318 = scmp.ne.s32.totalorder %s310, %s312
      %p319 = scmp.eq.s32.totalorder %s29, 1
      %p320 = por %p318, %p319
      %p321 = scmp.ne.s32.totalorder %s312, %s313
      %p322 = scmp.eq.s32.totalorder %s29, 0
      %p323 = por %p321, %p322
      %p324 = scmp.ne.s32.totalorder %s312, %s313
      %p325 = scmp.eq.s32.totalorder %s30, 1
      %p326 = por %p324, %p325
      %p328 = scmp.ne.s32.totalorder %s313, %s327
      %p329 = scmp.eq.s32.totalorder %s30, 0
      %p330 = por %p328, %p329
      %s332 = sadd.s32 %s331, 1
      %p335 = scmp.eq.s32.totalorder %s24, 1
      %p336 = scmp.ne.s32.totalorder %s331, %s333
      %p337 = scmp.eq.s32.totalorder %s24, 0
      %p338 = por %p336, %p337
      %p339 = scmp.ne.s32.totalorder %s331, %s333
      %p340 = scmp.eq.s32.totalorder %s29, 1
      %p341 = por %p339, %p340
      %p342 = scmp.ne.s32.totalorder %s333, %s334
      %p343 = scmp.eq.s32.totalorder %s29, 0
      %p344 = por %p342, %p343
      %p345 = scmp.ne.s32.totalorder %s333, %s334
      %p346 = scmp.eq.s32.totalorder %s30, 1
      %p347 = por %p345, %p346
      %p349 = scmp.ne.s32.totalorder %s334, %s348
      %p350 = scmp.eq.s32.totalorder %s30, 0
      %p351 = por %p349, %p350
      %s352 = ssub.s32 %s24, %s31
      %p353 = scmp.eq.s32.totalorder %s352, 0
      %s355 = sadd.s32 %s354, 1
      %s356 = scalar_select %p353, %s354, %s355
      %p359 = pneg %p353
      %p360 = scmp.eq.s32.totalorder %s24, 1
      %p361 = por %p359, %p360
      %p362 = scmp.ne.s32.totalorder %s354, %s357
      %p363 = scmp.eq.s32.totalorder %s24, 0
      %p364 = por %p362, %p363
      %p365 = scmp.ne.s32.totalorder %s354, %s357
      %p366 = scmp.eq.s32.totalorder %s29, 1
      %p367 = por %p365, %p366
      %p368 = scmp.ne.s32.totalorder %s357, %s358
      %p369 = scmp.eq.s32.totalorder %s29, 0
      %p370 = por %p368, %p369
      %p371 = scmp.ne.s32.totalorder %s357, %s358
      %p372 = scmp.eq.s32.totalorder %s30, 1
      %p373 = por %p371, %p372
      %p375 = scmp.ne.s32.totalorder %s358, %s374
      %p376 = scmp.eq.s32.totalorder %s30, 0
      %p377 = por %p375, %p376
      %p378 = scmp.le.s32.totalorder 1, %s24
      %p379 = scmp.lt.s32.totalorder %s24, 3
      %p380 = pnand %p378, %p379
      %p381 = pneg %p380
      // Predicated region
      $region9: #{tpu_custom_call.1} parent=5 // pred_check
        _
      $region10: #{tpu_custom_call.1} parent=5 // pred_check_branch
        %383 = sbr.rel (%p380) target = $region12
      $region11: #{tpu_custom_call.1} parent=5 // pred_region
        %s384 = ssub.s32 %s24, 1
        // Predicated region
        $region13: #{tpu_custom_call.1} parent=11 // pred_check
          %p385 = pneg %p71
        $region14: #{tpu_custom_call.1} parent=11 // pred_check_branch
          %387 = sbr.rel (%p385) target = $region16
        $region15: #{tpu_custom_call.1} parent=11 // pred_region
          _
        $region16: #{tpu_custom_call.1} parent=11 // pred_fallthru
          _
        // Predicated region
        $region17: #{tpu_custom_call.1} parent=11 // pred_check
          %p388 = pneg %p92
        $region18: #{tpu_custom_call.1} parent=11 // pred_check_branch
          %390 = sbr.rel (%p388) target = $region20
        $region19: #{tpu_custom_call.1} parent=11 // pred_region
          _
        $region20: #{tpu_custom_call.1} parent=11 // pred_fallthru
          _
        // Predicated region
        $region21: #{tpu_custom_call.1} parent=11 // pred_check
          %p391 = pneg %p113
        $region22: #{tpu_custom_call.1} parent=11 // pred_check_branch
          %393 = sbr.rel (%p391) target = $region24
        $region23: #{tpu_custom_call.1} parent=11 // pred_region
          _
        $region24: #{tpu_custom_call.1} parent=11 // pred_fallthru
          _
        // Predicated region
        $region25: #{tpu_custom_call.1} parent=11 // pred_check
          %p394 = pneg %p134
        $region26: #{tpu_custom_call.1} parent=11 // pred_check_branch
          %396 = sbr.rel (%p394) target = $region28
        $region27: #{tpu_custom_call.1} parent=11 // pred_region
          _
        $region28: #{tpu_custom_call.1} parent=11 // pred_fallthru
          _
        // Predicated region
        $region29: #{tpu_custom_call.1} parent=11 // pred_check
          %p397 = pneg %p155
        $region30: #{tpu_custom_call.1} parent=11 // pred_check_branch
          %399 = sbr.rel (%p397) target = $region32
        $region31: #{tpu_custom_call.1} parent=11 // pred_region
          _
        $region32: #{tpu_custom_call.1} parent=11 // pred_fallthru
          _
        // Predicated region
        $region33: #{tpu_custom_call.1} parent=11 // pred_check
          %p400 = pneg %p176
        $region34: #{tpu_custom_call.1} parent=11 // pred_check_branch
          %402 = sbr.rel (%p400) target = $region36
        $region35: #{tpu_custom_call.1} parent=11 // pred_region
          _
        $region36: #{tpu_custom_call.1} parent=11 // pred_fallthru
          _
        // Predicated region
        $region37: #{tpu_custom_call.1} parent=11 // pred_check
          %p403 = pneg %p197
        $region38: #{tpu_custom_call.1} parent=11 // pred_check_branch
          %405 = sbr.rel (%p403) target = $region40
        $region39: #{tpu_custom_call.1} parent=11 // pred_region
          _
        $region40: #{tpu_custom_call.1} parent=11 // pred_fallthru
          _
        // Predicated region
        $region41: #{tpu_custom_call.1} parent=11 // pred_check
          %p406 = pneg %p218
        $region42: #{tpu_custom_call.1} parent=11 // pred_check_branch
          %408 = sbr.rel (%p406) target = $region44
        $region43: #{tpu_custom_call.1} parent=11 // pred_region
          _
        $region44: #{tpu_custom_call.1} parent=11 // pred_fallthru
          _
        // Predicated region
        $region45: #{tpu_custom_call.1} parent=11 // pred_check
          %p409 = pneg %p239
        $region46: #{tpu_custom_call.1} parent=11 // pred_check_branch
          %411 = sbr.rel (%p409) target = $region48
        $region47: #{tpu_custom_call.1} parent=11 // pred_region
          _
        $region48: #{tpu_custom_call.1} parent=11 // pred_fallthru
          _
        // Predicated region
        $region49: #{tpu_custom_call.1} parent=11 // pred_check
          %p412 = pneg %p260
        $region50: #{tpu_custom_call.1} parent=11 // pred_check_branch
          %414 = sbr.rel (%p412) target = $region52
        $region51: #{tpu_custom_call.1} parent=11 // pred_region
          _
        $region52: #{tpu_custom_call.1} parent=11 // pred_fallthru
          _
        // Predicated region
        $region53: #{tpu_custom_call.1} parent=11 // pred_check
          %p415 = pneg %p281
        $region54: #{tpu_custom_call.1} parent=11 // pred_check_branch
          %417 = sbr.rel (%p415) target = $region56
        $region55: #{tpu_custom_call.1} parent=11 // pred_region
          _
        $region56: #{tpu_custom_call.1} parent=11 // pred_fallthru
          _
        // Predicated region
        $region57: #{tpu_custom_call.1} parent=11 // pred_check
          %p418 = pneg %p302
        $region58: #{tpu_custom_call.1} parent=11 // pred_check_branch
          %420 = sbr.rel (%p418) target = $region60
        $region59: #{tpu_custom_call.1} parent=11 // pred_region
          _
        $region60: #{tpu_custom_call.1} parent=11 // pred_fallthru
          _
        // Predicated region
        $region61: #{tpu_custom_call.1} parent=11 // pred_check
          %p421 = pneg %p323
        $region62: #{tpu_custom_call.1} parent=11 // pred_check_branch
          %423 = sbr.rel (%p421) target = $region64
        $region63: #{tpu_custom_call.1} parent=11 // pred_region
          _
        $region64: #{tpu_custom_call.1} parent=11 // pred_fallthru
          _
        // Predicated region
        $region65: #{tpu_custom_call.1} parent=11 // pred_check
          %p424 = pneg %p344
        $region66: #{tpu_custom_call.1} parent=11 // pred_check_branch
          %426 = sbr.rel (%p424) target = $region68
        $region67: #{tpu_custom_call.1} parent=11 // pred_region
          _
        $region68: #{tpu_custom_call.1} parent=11 // pred_fallthru
          _
      $region12: #{tpu_custom_call.1} parent=5 // pred_fallthru
        _
      %p427 = scmp.lt.s32.totalorder %s24, 2
      // Predicated region
      $region69: #{tpu_custom_call.1} parent=5 // pred_check
        %p428 = pneg %p427
      $region70: #{tpu_custom_call.1} parent=5 // pred_check_branch
        %430 = sbr.rel (%p428) target = $region72
      $region71: #{tpu_custom_call.1} parent=5 // pred_region
        // Predicated region
        $region73: #{tpu_custom_call.1} parent=71 // pred_check
          %p431 = pneg %p44
        $region74: #{tpu_custom_call.1} parent=71 // pred_check_branch
          %433 = sbr.rel (%p431) target = $region76
        $region75: #{tpu_custom_call.1} parent=71 // pred_region
          %s434 = smul.u32 64, %s24
          %p435 = scmp.lt.s32.totalorder %s434, 127
          %s436 = scalar_select %p435, %s434, 127
          %s437 = smul.addr %s436, 8
          %s438 = scalar_lea.vmem %s0, %s437
          %s439 = smul.u32 64, %s24
        $region76: #{tpu_custom_call.1} parent=71 // pred_fallthru
          _
      $region72: #{tpu_custom_call.1} parent=5 // pred_fallthru
        _
      %p440 = scmp.le.s32.totalorder 1, %s24
      %p441 = scmp.lt.s32.totalorder %s24, 3
      %p442 = pnand %p440, %p441
      %p443 = pneg %p442
      // Predicated region
      $region77: #{tpu_custom_call.1} parent=5 // pred_check
        _
      $region78: #{tpu_custom_call.1} parent=5 // pred_check_branch
        %445 = sbr.rel (%p442) target = $region80
      $region79: #{tpu_custom_call.1} parent=5 // pred_region
        %s446 = ssub.s32 %s24, 1
        %s447 = smul.u32 64, %s29
        %p448 = scmp.lt.s32.totalorder %s447, 127
        %s449 = scalar_select %p448, %s447, 127
        %s450 = smul.addr %s449, 8
        %s451 = scalar_lea.vmem %s0, %s450
        %p452 = pneg %p50
        %p453 = pneg %p47
        %p454 = pneg %p71
        %p455 = pneg %p68
        %p456 = pneg %p92
        %p457 = pneg %p89
        %p458 = pneg %p113
        %p459 = pneg %p110
        %p460 = pneg %p134
        %p461 = pneg %p131
        %p462 = pneg %p155
        %p463 = pneg %p152
        %p464 = pneg %p176
        %p465 = pneg %p173
        %p466 = pneg %p197
        %p467 = pneg %p194
        %p468 = pneg %p218
        %p469 = pneg %p215
        %p470 = pneg %p239
        %p471 = pneg %p236
        %p472 = pneg %p260
        %p473 = pneg %p257
        %p474 = pneg %p281
        %p475 = pneg %p278
        %p476 = pneg %p302
        %p477 = pneg %p299
        %p478 = pneg %p323
        %p479 = pneg %p320
        %p480 = pneg %p344
        %p481 = pneg %p341
        %p482 = pneg %p370
        %p483 = pneg %p367
        %s484 = sand.u32 %s357, 1
        %s485 = scalar_lea.sflag [#allocation3], %s484
        %s486 = sand.u32 %s357, 1
        %s487 = smul.addr %s486, 16
        %s488 = scalar_lea.vmem [#allocation2], %s487
        %s489 = smul.u32 64, %s29
        %p490 = scmp.lt.s32.totalorder %s489, 127
        %s491 = scalar_select %p490, %s489, 127
        %s492 = smul.addr %s491, 8
        %s493 = scalar_lea.vmem %s0, %s492
        %s494 = smul.u32 64, %s29
        %s495 = smul.u32 4, %s29
        %v497 = vld [vmem:[%s493] sm:$0xff]
        %v498 = vld [vmem:[%s493 + $0x8] sm:$0xff]
        %v499 = vld [vmem:[%s493 + $0x10] sm:$0xff]
        %v500 = vld [vmem:[%s493 + $0x18] sm:$0xff]
        %v501 = vld [vmem:[%s493 + $0x20] sm:$0xff]
        %v502 = vld [vmem:[%s493 + $0x28] sm:$0xff]
        %v503 = vld [vmem:[%s493 + $0x30] sm:$0xff]
        %v504 = vld [vmem:[%s493 + $0x38] sm:$0xff]
        %v505 = vld [vmem:[%s493 + $0x40] sm:$0xff]
        %v506 = vld [vmem:[%s493 + $0x48] sm:$0xff]
        %v507 = vld [vmem:[%s493 + $0x50] sm:$0xff]
        %v508 = vld [vmem:[%s493 + $0x58] sm:$0xff]
        %v509 = vld [vmem:[%s493 + $0x60] sm:$0xff]
        %v510 = vld [vmem:[%s493 + $0x68] sm:$0xff]
        %v511 = vld [vmem:[%s493 + $0x70] sm:$0xff]
        %v512 = vld [vmem:[%s493 + $0x78] sm:$0xff]
        %v513 = vld [vmem:[%s493 + $0x80] sm:$0xff]
        %v514 = vld [vmem:[%s493 + $0x88] sm:$0xff]
        %v515 = vld [vmem:[%s493 + $0x90] sm:$0xff]
        %v516 = vld [vmem:[%s493 + $0x98] sm:$0xff]
        %v517 = vld [vmem:[%s493 + $0xa0] sm:$0xff]
        %v518 = vld [vmem:[%s493 + $0xa8] sm:$0xff]
        %v519 = vld [vmem:[%s493 + $0xb0] sm:$0xff]
        %v520 = vld [vmem:[%s493 + $0xb8] sm:$0xff]
        %v521 = vld [vmem:[%s493 + $0xc0] sm:$0xff]
        %v522 = vld [vmem:[%s493 + $0xc8] sm:$0xff]
        %v523 = vld [vmem:[%s493 + $0xd0] sm:$0xff]
        %v524 = vld [vmem:[%s493 + $0xd8] sm:$0xff]
        %v525 = vld [vmem:[%s493 + $0xe0] sm:$0xff]
        %v526 = vld [vmem:[%s493 + $0xe8] sm:$0xff]
        %v527 = vld [vmem:[%s493 + $0xf0] sm:$0xff]
        %v528 = vld [vmem:[%s493 + $0xf8] sm:$0xff]
        %v529 = vld [vmem:[%s493 + $0x100] sm:$0xff]
        %v530 = vld [vmem:[%s493 + $0x108] sm:$0xff]
        %v531 = vld [vmem:[%s493 + $0x110] sm:$0xff]
        %v532 = vld [vmem:[%s493 + $0x118] sm:$0xff]
        %v533 = vld [vmem:[%s493 + $0x120] sm:$0xff]
        %v534 = vld [vmem:[%s493 + $0x128] sm:$0xff]
        %v535 = vld [vmem:[%s493 + $0x130] sm:$0xff]
        %v536 = vld [vmem:[%s493 + $0x138] sm:$0xff]
        %v537 = vld [vmem:[%s493 + $0x140] sm:$0xff]
        %v538 = vld [vmem:[%s493 + $0x148] sm:$0xff]
        %v539 = vld [vmem:[%s493 + $0x150] sm:$0xff]
        %v540 = vld [vmem:[%s493 + $0x158] sm:$0xff]
        %v541 = vld [vmem:[%s493 + $0x160] sm:$0xff]
        %v542 = vld [vmem:[%s493 + $0x168] sm:$0xff]
        %v543 = vld [vmem:[%s493 + $0x170] sm:$0xff]
        %v544 = vld [vmem:[%s493 + $0x178] sm:$0xff]
        %v545 = vld [vmem:[%s493 + $0x180] sm:$0xff]
        %v546 = vld [vmem:[%s493 + $0x188] sm:$0xff]
        %v547 = vld [vmem:[%s493 + $0x190] sm:$0xff]
        %v548 = vld [vmem:[%s493 + $0x198] sm:$0xff]
        %v549 = vld [vmem:[%s493 + $0x1a0] sm:$0xff]
        %v550 = vld [vmem:[%s493 + $0x1a8] sm:$0xff]
        %v551 = vld [vmem:[%s493 + $0x1b0] sm:$0xff]
        %v552 = vld [vmem:[%s493 + $0x1b8] sm:$0xff]
        %v553 = vld [vmem:[%s493 + $0x1c0] sm:$0xff]
        %v554 = vld [vmem:[%s493 + $0x1c8] sm:$0xff]
        %v555 = vld [vmem:[%s493 + $0x1d0] sm:$0xff]
        %v556 = vld [vmem:[%s493 + $0x1d8] sm:$0xff]
        %v557 = vld [vmem:[%s493 + $0x1e0] sm:$0xff]
        %v558 = vld [vmem:[%s493 + $0x1e8] sm:$0xff]
        %v559 = vld [vmem:[%s493 + $0x1f0] sm:$0xff]
        %v560 = vld [vmem:[%s493 + $0x1f8] sm:$0xff]
        %v561 = vpack.c.bf16 %v498, %v497
        %v562 = vpack.c.bf16 %v500, %v499
        %v563 = vpack.c.bf16 %v502, %v501
        %v564 = vpack.c.bf16 %v504, %v503
        %v565 = vpack.c.bf16 %v506, %v505
        %v566 = vpack.c.bf16 %v508, %v507
        %v567 = vpack.c.bf16 %v510, %v509
        %v568 = vpack.c.bf16 %v512, %v511
        %v569 = vpack.c.bf16 %v514, %v513
        %v570 = vpack.c.bf16 %v516, %v515
        %v571 = vpack.c.bf16 %v518, %v517
        %v572 = vpack.c.bf16 %v520, %v519
        %v573 = vpack.c.bf16 %v522, %v521
        %v574 = vpack.c.bf16 %v524, %v523
        %v575 = vpack.c.bf16 %v526, %v525
        %v576 = vpack.c.bf16 %v528, %v527
        %v577 = vpack.c.bf16 %v530, %v529
        %v578 = vpack.c.bf16 %v532, %v531
        %v579 = vpack.c.bf16 %v534, %v533
        %v580 = vpack.c.bf16 %v536, %v535
        %v581 = vpack.c.bf16 %v538, %v537
        %v582 = vpack.c.bf16 %v540, %v539
        %v583 = vpack.c.bf16 %v542, %v541
        %v584 = vpack.c.bf16 %v544, %v543
        %v585 = vpack.c.bf16 %v546, %v545
        %v586 = vpack.c.bf16 %v548, %v547
        %v587 = vpack.c.bf16 %v550, %v549
        %v588 = vpack.c.bf16 %v552, %v551
        %v589 = vpack.c.bf16 %v554, %v553
        %v590 = vpack.c.bf16 %v556, %v555
        %v591 = vpack.c.bf16 %v558, %v557
        %v592 = vpack.c.bf16 %v560, %v559
        %v593 = vld [vmem:[%s1] sm:$0xff]
        %v594 = vld [vmem:[%s1 + $0x8] sm:$0xff]
        %v595 = vld [vmem:[%s1 + $0x10] sm:$0xff]
        %v596 = vld [vmem:[%s1 + $0x18] sm:$0xff]
        %v597 = vld [vmem:[%s1 + $0x20] sm:$0x33]
        %v598 = vld [vmem:[%s2] sm:$0x3]
        %v600 = vperm.slane %v598, 0
        %v601 = vperm.slane %v598, 1
        %v609 = vunpack.c.l.b16 %v593
        %v610 = vunpack.c.h.b16 %v593
        %v611 = vunpack.c.l.b16 %v594
        %v612 = vunpack.c.h.b16 %v594
        %v613 = vunpack.c.l.b16 %v595
        %v614 = vunpack.c.h.b16 %v595
        %v615 = vunpack.c.l.b16 %v596
        %v616 = vunpack.c.h.b16 %v596
        %v617 = vunpack.c.l.b16 %v597
        %v618 = vunpack.c.h.b16 %v597
        %v619 = vpack.c.b16 %v611, %v609
        %v620 = vpack.c.b16 %v612, %v610
        %v621 = vpack.c.b16 %v615, %v613
        %v622 = vpack.c.b16 %v616, %v614
        %v623 = vpack.c.b16 %v617, %v617
        %v624 = vpack.c.b16 %v618, %v618
        %vm629 = vcmask 285696
        %v631 = vsel %vm629, %v561, 0
        %v634 = vsel %vm629, %v562, 0
        %v637 = vsel %vm629, %v563, 0
        %v640 = vsel %vm629, %v564, 0
        %v643 = vsel %vm629, %v565, 0
        %v646 = vsel %vm629, %v566, 0
        %v649 = vsel %vm629, %v567, 0
        %v652 = vsel %vm629, %v568, 0
        %v655 = vsel %vm629, %v569, 0
        %v658 = vsel %vm629, %v570, 0
        %v661 = vsel %vm629, %v571, 0
        %v664 = vsel %vm629, %v572, 0
        %v667 = vsel %vm629, %v573, 0
        %v670 = vsel %vm629, %v574, 0
        %v673 = vsel %vm629, %v575, 0
        %v676 = vsel %vm629, %v576, 0
        %v679 = vsel %vm629, %v577, 0
        %v682 = vsel %vm629, %v578, 0
        %v685 = vsel %vm629, %v579, 0
        %v688 = vsel %vm629, %v580, 0
        %v691 = vsel %vm629, %v581, 0
        %v694 = vsel %vm629, %v582, 0
        %v697 = vsel %vm629, %v583, 0
        %v700 = vsel %vm629, %v584, 0
        %v703 = vsel %vm629, %v585, 0
        %v706 = vsel %vm629, %v586, 0
        %v709 = vsel %vm629, %v587, 0
        %v712 = vsel %vm629, %v588, 0
        %v715 = vsel %vm629, %v589, 0
        %v718 = vsel %vm629, %v590, 0
        %v721 = vsel %vm629, %v591, 0
        %v724 = vsel %vm629, %v592, 0
        %vm726 = vcmask 1040384
        %vm727 = vcmask 1041408
        %v728 = vsel %vm726, 4294967295, 65535
        %v729 = vsel %vm727, %v728, 0
        %v731 = vand.u32 %v623, %v729
        %v734 = vand.u32 %v624, %v729
        %736 = vmatpush.bf16.msra.mxu0 0
        %737 = vmatpush.bf16.msra.mxu0 0
        %738 = vmatpush.bf16.msra.mxu0 0
        %739 = vmatpush.bf16.msra.mxu0 0
        %740 = vmatpush.bf16.msra.mxu0 0
        %741 = vmatpush.bf16.msra.mxu0 %v731
        %742 = vmatpush.bf16.msra.mxu0 %v621
        %743 = vmatpush.bf16.msra.mxu0 %v619
        %744 = vmatmul.bf16.gmra.mxu0 %v631
        %v745 = vpop.f32.mrf.mxu0
        %v746 = vadd.f32 %v600, %v745
        %v747 = vpop.f32.mrf.mxu0
        %v748 = vadd.f32 %v600, %v747
        %749 = vmatmul.bf16.gmra.mxu0 %v634
        %v750 = vpop.f32.mrf.mxu0
        %v751 = vadd.f32 %v600, %v750
        %v752 = vpop.f32.mrf.mxu0
        %v753 = vadd.f32 %v600, %v752
        %754 = vmatmul.bf16.gmra.mxu0 %v637
        %v755 = vpop.f32.mrf.mxu0
        %v756 = vadd.f32 %v600, %v755
        %v757 = vpop.f32.mrf.mxu0
        %v758 = vadd.f32 %v600, %v757
        %759 = vmatmul.bf16.gmra.mxu0 %v640
        %v760 = vpop.f32.mrf.mxu0
        %v761 = vadd.f32 %v600, %v760
        %v762 = vpop.f32.mrf.mxu0
        %v763 = vadd.f32 %v600, %v762
        %764 = vmatmul.bf16.gmra.mxu0 %v643
        %v765 = vpop.f32.mrf.mxu0
        %v766 = vadd.f32 %v600, %v765
        %v767 = vpop.f32.mrf.mxu0
        %v768 = vadd.f32 %v600, %v767
        %769 = vmatmul.bf16.gmra.mxu0 %v646
        %v770 = vpop.f32.mrf.mxu0
        %v771 = vadd.f32 %v600, %v770
        %v772 = vpop.f32.mrf.mxu0
        %v773 = vadd.f32 %v600, %v772
        %774 = vmatmul.bf16.gmra.mxu0 %v649
        %v775 = vpop.f32.mrf.mxu0
        %v776 = vadd.f32 %v600, %v775
        %v777 = vpop.f32.mrf.mxu0
        %v778 = vadd.f32 %v600, %v777
        %779 = vmatmul.bf16.gmra.mxu0 %v652
        %v780 = vpop.f32.mrf.mxu0
        %v781 = vadd.f32 %v600, %v780
        %v782 = vpop.f32.mrf.mxu0
        %v783 = vadd.f32 %v600, %v782
        %784 = vmatmul.bf16.gmra.mxu0 %v655
        %v785 = vpop.f32.mrf.mxu0
        %v786 = vadd.f32 %v600, %v785
        %v787 = vpop.f32.mrf.mxu0
        %v788 = vadd.f32 %v600, %v787
        %789 = vmatmul.bf16.gmra.mxu0 %v658
        %v790 = vpop.f32.mrf.mxu0
        %v791 = vadd.f32 %v600, %v790
        %v792 = vpop.f32.mrf.mxu0
        %v793 = vadd.f32 %v600, %v792
        %794 = vmatmul.bf16.gmra.mxu0 %v661
        %v795 = vpop.f32.mrf.mxu0
        %v796 = vadd.f32 %v600, %v795
        %v797 = vpop.f32.mrf.mxu0
        %v798 = vadd.f32 %v600, %v797
        %799 = vmatmul.bf16.gmra.mxu0 %v664
        %v800 = vpop.f32.mrf.mxu0
        %v801 = vadd.f32 %v600, %v800
        %v802 = vpop.f32.mrf.mxu0
        %v803 = vadd.f32 %v600, %v802
        %804 = vmatmul.bf16.gmra.mxu0 %v667
        %v805 = vpop.f32.mrf.mxu0
        %v806 = vadd.f32 %v600, %v805
        %v807 = vpop.f32.mrf.mxu0
        %v808 = vadd.f32 %v600, %v807
        %809 = vmatmul.bf16.gmra.mxu0 %v670
        %v810 = vpop.f32.mrf.mxu0
        %v811 = vadd.f32 %v600, %v810
        %v812 = vpop.f32.mrf.mxu0
        %v813 = vadd.f32 %v600, %v812
        %814 = vmatmul.bf16.gmra.mxu0 %v673
        %v815 = vpop.f32.mrf.mxu0
        %v816 = vadd.f32 %v600, %v815
        %v817 = vpop.f32.mrf.mxu0
        %v818 = vadd.f32 %v600, %v817
        %819 = vmatmul.bf16.gmra.mxu0 %v676
        %v820 = vpop.f32.mrf.mxu0
        %v821 = vadd.f32 %v600, %v820
        %v822 = vpop.f32.mrf.mxu0
        %v823 = vadd.f32 %v600, %v822
        %824 = vmatmul.bf16.gmra.mxu0 %v679
        %v825 = vpop.f32.mrf.mxu0
        %v826 = vadd.f32 %v600, %v825
        %v827 = vpop.f32.mrf.mxu0
        %v828 = vadd.f32 %v600, %v827
        %829 = vmatmul.bf16.gmra.mxu0 %v682
        %v830 = vpop.f32.mrf.mxu0
        %v831 = vadd.f32 %v600, %v830
        %v832 = vpop.f32.mrf.mxu0
        %v833 = vadd.f32 %v600, %v832
        %834 = vmatmul.bf16.gmra.mxu0 %v685
        %v835 = vpop.f32.mrf.mxu0
        %v836 = vadd.f32 %v600, %v835
        %v837 = vpop.f32.mrf.mxu0
        %v838 = vadd.f32 %v600, %v837
        %839 = vmatmul.bf16.gmra.mxu0 %v688
        %v840 = vpop.f32.mrf.mxu0
        %v841 = vadd.f32 %v600, %v840
        %v842 = vpop.f32.mrf.mxu0
        %v843 = vadd.f32 %v600, %v842
        %844 = vmatmul.bf16.gmra.mxu0 %v691
        %v845 = vpop.f32.mrf.mxu0
        %v846 = vadd.f32 %v600, %v845
        %v847 = vpop.f32.mrf.mxu0
        %v848 = vadd.f32 %v600, %v847
        %849 = vmatmul.bf16.gmra.mxu0 %v694
        %v850 = vpop.f32.mrf.mxu0
        %v851 = vadd.f32 %v600, %v850
        %v852 = vpop.f32.mrf.mxu0
        %v853 = vadd.f32 %v600, %v852
        %854 = vmatmul.bf16.gmra.mxu0 %v697
        %v855 = vpop.f32.mrf.mxu0
        %v856 = vadd.f32 %v600, %v855
        %v857 = vpop.f32.mrf.mxu0
        %v858 = vadd.f32 %v600, %v857
        %859 = vmatmul.bf16.gmra.mxu0 %v700
        %v860 = vpop.f32.mrf.mxu0
        %v861 = vadd.f32 %v600, %v860
        %v862 = vpop.f32.mrf.mxu0
        %v863 = vadd.f32 %v600, %v862
        %864 = vmatmul.bf16.gmra.mxu0 %v703
        %v865 = vpop.f32.mrf.mxu0
        %v866 = vadd.f32 %v600, %v865
        %v867 = vpop.f32.mrf.mxu0
        %v868 = vadd.f32 %v600, %v867
        %869 = vmatmul.bf16.gmra.mxu0 %v706
        %v870 = vpop.f32.mrf.mxu0
        %v871 = vadd.f32 %v600, %v870
        %v872 = vpop.f32.mrf.mxu0
        %v873 = vadd.f32 %v600, %v872
        %874 = vmatmul.bf16.gmra.mxu0 %v709
        %v875 = vpop.f32.mrf.mxu0
        %v876 = vadd.f32 %v600, %v875
        %v877 = vpop.f32.mrf.mxu0
        %v878 = vadd.f32 %v600, %v877
        %879 = vmatmul.bf16.gmra.mxu0 %v712
        %v880 = vpop.f32.mrf.mxu0
        %v881 = vadd.f32 %v600, %v880
        %v882 = vpop.f32.mrf.mxu0
        %v883 = vadd.f32 %v600, %v882
        %884 = vmatmul.bf16.gmra.mxu0 %v715
        %v885 = vpop.f32.mrf.mxu0
        %v886 = vadd.f32 %v600, %v885
        %v887 = vpop.f32.mrf.mxu0
        %v888 = vadd.f32 %v600, %v887
        %889 = vmatmul.bf16.gmra.mxu0 %v718
        %v890 = vpop.f32.mrf.mxu0
        %v891 = vadd.f32 %v600, %v890
        %v892 = vpop.f32.mrf.mxu0
        %v893 = vadd.f32 %v600, %v892
        %894 = vmatmul.bf16.gmra.mxu0 %v721
        %v895 = vpop.f32.mrf.mxu0
        %v896 = vadd.f32 %v600, %v895
        %v897 = vpop.f32.mrf.mxu0
        %v898 = vadd.f32 %v600, %v897
        %899 = vmatmul.bf16.gmra.mxu0 %v724
        %v900 = vpop.f32.mrf.mxu0
        %v901 = vadd.f32 %v600, %v900
        %v902 = vpop.f32.mrf.mxu0
        %v903 = vadd.f32 %v600, %v902
        %904 = vdwg.mxu0
        %905 = vmatpush.bf16.msra.mxu0 0
        %906 = vmatpush.bf16.msra.mxu0 0
        %907 = vmatpush.bf16.msra.mxu0 0
        %908 = vmatpush.bf16.msra.mxu0 0
        %909 = vmatpush.bf16.msra.mxu0 0
        %910 = vmatpush.bf16.msra.mxu0 %v734
        %911 = vmatpush.bf16.msra.mxu0 %v622
        %912 = vmatpush.bf16.msra.mxu0 %v620
        %913 = vmatmul.bf16.gmra.mxu0 %v631
        %v914 = vpop.f32.mrf.mxu0
        %v915 = vadd.f32 %v601, %v914
        %v916 = vpop.f32.mrf.mxu0
        %v917 = vadd.f32 %v601, %v916
        %918 = vmatmul.bf16.gmra.mxu0 %v634
        %v919 = vpop.f32.mrf.mxu0
        %v920 = vadd.f32 %v601, %v919
        %v921 = vpop.f32.mrf.mxu0
        %v922 = vadd.f32 %v601, %v921
        %923 = vmatmul.bf16.gmra.mxu0 %v637
        %v924 = vpop.f32.mrf.mxu0
        %v925 = vadd.f32 %v601, %v924
        %v926 = vpop.f32.mrf.mxu0
        %v927 = vadd.f32 %v601, %v926
        %928 = vmatmul.bf16.gmra.mxu0 %v640
        %v929 = vpop.f32.mrf.mxu0
        %v930 = vadd.f32 %v601, %v929
        %v931 = vpop.f32.mrf.mxu0
        %v932 = vadd.f32 %v601, %v931
        %933 = vmatmul.bf16.gmra.mxu0 %v643
        %v934 = vpop.f32.mrf.mxu0
        %v935 = vadd.f32 %v601, %v934
        %v936 = vpop.f32.mrf.mxu0
        %v937 = vadd.f32 %v601, %v936
        %938 = vmatmul.bf16.gmra.mxu0 %v646
        %v939 = vpop.f32.mrf.mxu0
        %v940 = vadd.f32 %v601, %v939
        %v941 = vpop.f32.mrf.mxu0
        %v942 = vadd.f32 %v601, %v941
        %943 = vmatmul.bf16.gmra.mxu0 %v649
        %v944 = vpop.f32.mrf.mxu0
        %v945 = vadd.f32 %v601, %v944
        %v946 = vpop.f32.mrf.mxu0
        %v947 = vadd.f32 %v601, %v946
        %948 = vmatmul.bf16.gmra.mxu0 %v652
        %v949 = vpop.f32.mrf.mxu0
        %v950 = vadd.f32 %v601, %v949
        %v951 = vpop.f32.mrf.mxu0
        %v952 = vadd.f32 %v601, %v951
        %953 = vmatmul.bf16.gmra.mxu0 %v655
        %v954 = vpop.f32.mrf.mxu0
        %v955 = vadd.f32 %v601, %v954
        %v956 = vpop.f32.mrf.mxu0
        %v957 = vadd.f32 %v601, %v956
        %958 = vmatmul.bf16.gmra.mxu0 %v658
        %v959 = vpop.f32.mrf.mxu0
        %v960 = vadd.f32 %v601, %v959
        %v961 = vpop.f32.mrf.mxu0
        %v962 = vadd.f32 %v601, %v961
        %963 = vmatmul.bf16.gmra.mxu0 %v661
        %v964 = vpop.f32.mrf.mxu0
        %v965 = vadd.f32 %v601, %v964
        %v966 = vpop.f32.mrf.mxu0
        %v967 = vadd.f32 %v601, %v966
        %968 = vmatmul.bf16.gmra.mxu0 %v664
        %v969 = vpop.f32.mrf.mxu0
        %v970 = vadd.f32 %v601, %v969
        %v971 = vpop.f32.mrf.mxu0
        %v972 = vadd.f32 %v601, %v971
        %973 = vmatmul.bf16.gmra.mxu0 %v667
        %v974 = vpop.f32.mrf.mxu0
        %v975 = vadd.f32 %v601, %v974
        %v976 = vpop.f32.mrf.mxu0
        %v977 = vadd.f32 %v601, %v976
        %978 = vmatmul.bf16.gmra.mxu0 %v670
        %v979 = vpop.f32.mrf.mxu0
        %v980 = vadd.f32 %v601, %v979
        %v981 = vpop.f32.mrf.mxu0
        %v982 = vadd.f32 %v601, %v981
        %983 = vmatmul.bf16.gmra.mxu0 %v673
        %v984 = vpop.f32.mrf.mxu0
        %v985 = vadd.f32 %v601, %v984
        %v986 = vpop.f32.mrf.mxu0
        %v987 = vadd.f32 %v601, %v986
        %988 = vmatmul.bf16.gmra.mxu0 %v676
        %v989 = vpop.f32.mrf.mxu0
        %v990 = vadd.f32 %v601, %v989
        %v991 = vpop.f32.mrf.mxu0
        %v992 = vadd.f32 %v601, %v991
        %993 = vmatmul.bf16.gmra.mxu0 %v679
        %v994 = vpop.f32.mrf.mxu0
        %v995 = vadd.f32 %v601, %v994
        %v996 = vpop.f32.mrf.mxu0
        %v997 = vadd.f32 %v601, %v996
        %998 = vmatmul.bf16.gmra.mxu0 %v682
        %v999 = vpop.f32.mrf.mxu0
        %v1000 = vadd.f32 %v601, %v999
        %v1001 = vpop.f32.mrf.mxu0
        %v1002 = vadd.f32 %v601, %v1001
        %1003 = vmatmul.bf16.gmra.mxu0 %v685
        %v1004 = vpop.f32.mrf.mxu0
        %v1005 = vadd.f32 %v601, %v1004
        %v1006 = vpop.f32.mrf.mxu0
        %v1007 = vadd.f32 %v601, %v1006
        %1008 = vmatmul.bf16.gmra.mxu0 %v688
        %v1009 = vpop.f32.mrf.mxu0
        %v1010 = vadd.f32 %v601, %v1009
        %v1011 = vpop.f32.mrf.mxu0
        %v1012 = vadd.f32 %v601, %v1011
        %1013 = vmatmul.bf16.gmra.mxu0 %v691
        %v1014 = vpop.f32.mrf.mxu0
        %v1015 = vadd.f32 %v601, %v1014
        %v1016 = vpop.f32.mrf.mxu0
        %v1017 = vadd.f32 %v601, %v1016
        %1018 = vmatmul.bf16.gmra.mxu0 %v694
        %v1019 = vpop.f32.mrf.mxu0
        %v1020 = vadd.f32 %v601, %v1019
        %v1021 = vpop.f32.mrf.mxu0
        %v1022 = vadd.f32 %v601, %v1021
        %1023 = vmatmul.bf16.gmra.mxu0 %v697
        %v1024 = vpop.f32.mrf.mxu0
        %v1025 = vadd.f32 %v601, %v1024
        %v1026 = vpop.f32.mrf.mxu0
        %v1027 = vadd.f32 %v601, %v1026
        %1028 = vmatmul.bf16.gmra.mxu0 %v700
        %v1029 = vpop.f32.mrf.mxu0
        %v1030 = vadd.f32 %v601, %v1029
        %v1031 = vpop.f32.mrf.mxu0
        %v1032 = vadd.f32 %v601, %v1031
        %1033 = vmatmul.bf16.gmra.mxu0 %v703
        %v1034 = vpop.f32.mrf.mxu0
        %v1035 = vadd.f32 %v601, %v1034
        %v1036 = vpop.f32.mrf.mxu0
        %v1037 = vadd.f32 %v601, %v1036
        %1038 = vmatmul.bf16.gmra.mxu0 %v706
        %v1039 = vpop.f32.mrf.mxu0
        %v1040 = vadd.f32 %v601, %v1039
        %v1041 = vpop.f32.mrf.mxu0
        %v1042 = vadd.f32 %v601, %v1041
        %1043 = vmatmul.bf16.gmra.mxu0 %v709
        %v1044 = vpop.f32.mrf.mxu0
        %v1045 = vadd.f32 %v601, %v1044
        %v1046 = vpop.f32.mrf.mxu0
        %v1047 = vadd.f32 %v601, %v1046
        %1048 = vmatmul.bf16.gmra.mxu0 %v712
        %v1049 = vpop.f32.mrf.mxu0
        %v1050 = vadd.f32 %v601, %v1049
        %v1051 = vpop.f32.mrf.mxu0
        %v1052 = vadd.f32 %v601, %v1051
        %1053 = vmatmul.bf16.gmra.mxu0 %v715
        %v1054 = vpop.f32.mrf.mxu0
        %v1055 = vadd.f32 %v601, %v1054
        %v1056 = vpop.f32.mrf.mxu0
        %v1057 = vadd.f32 %v601, %v1056
        %1058 = vmatmul.bf16.gmra.mxu0 %v718
        %v1059 = vpop.f32.mrf.mxu0
        %v1060 = vadd.f32 %v601, %v1059
        %v1061 = vpop.f32.mrf.mxu0
        %v1062 = vadd.f32 %v601, %v1061
        %1063 = vmatmul.bf16.gmra.mxu0 %v721
        %v1064 = vpop.f32.mrf.mxu0
        %v1065 = vadd.f32 %v601, %v1064
        %v1066 = vpop.f32.mrf.mxu0
        %v1067 = vadd.f32 %v601, %v1066
        %1068 = vmatmul.bf16.gmra.mxu0 %v724
        %v1069 = vpop.f32.mrf.mxu0
        %v1070 = vadd.f32 %v601, %v1069
        %v1071 = vpop.f32.mrf.mxu0
        %v1072 = vadd.f32 %v601, %v1071
        %1073 = vdwg.mxu0
        %v1074 = vmul.f32 %v746, 0.02
        %v1075 = vmul.f32 %v915, 0.02
        %v1076 = vmul.f32 %v748, 0.02
        %v1077 = vmul.f32 %v917, 0.02
        %v1078 = vmul.f32 %v751, 0.02
        %v1079 = vmul.f32 %v920, 0.02
        %v1080 = vmul.f32 %v753, 0.02
        %v1081 = vmul.f32 %v922, 0.02
        %v1082 = vmul.f32 %v756, 0.02
        %v1083 = vmul.f32 %v925, 0.02
        %v1084 = vmul.f32 %v758, 0.02
        %v1085 = vmul.f32 %v927, 0.02
        %v1086 = vmul.f32 %v761, 0.02
        %v1087 = vmul.f32 %v930, 0.02
        %v1088 = vmul.f32 %v763, 0.02
        %v1089 = vmul.f32 %v932, 0.02
        %v1090 = vmul.f32 %v766, 0.02
        %v1091 = vmul.f32 %v935, 0.02
        %v1092 = vmul.f32 %v768, 0.02
        %v1093 = vmul.f32 %v937, 0.02
        %v1094 = vmul.f32 %v771, 0.02
        %v1095 = vmul.f32 %v940, 0.02
        %v1096 = vmul.f32 %v773, 0.02
        %v1097 = vmul.f32 %v942, 0.02
        %v1098 = vmul.f32 %v776, 0.02
        %v1099 = vmul.f32 %v945, 0.02
        %v1100 = vmul.f32 %v778, 0.02
        %v1101 = vmul.f32 %v947, 0.02
        %v1102 = vmul.f32 %v781, 0.02
        %v1103 = vmul.f32 %v950, 0.02
        %v1104 = vmul.f32 %v783, 0.02
        %v1105 = vmul.f32 %v952, 0.02
        %v1106 = vmul.f32 %v786, 0.02
        %v1107 = vmul.f32 %v955, 0.02
        %v1108 = vmul.f32 %v788, 0.02
        %v1109 = vmul.f32 %v957, 0.02
        %v1110 = vmul.f32 %v791, 0.02
        %v1111 = vmul.f32 %v960, 0.02
        %v1112 = vmul.f32 %v793, 0.02
        %v1113 = vmul.f32 %v962, 0.02
        %v1114 = vmul.f32 %v796, 0.02
        %v1115 = vmul.f32 %v965, 0.02
        %v1116 = vmul.f32 %v798, 0.02
        %v1117 = vmul.f32 %v967, 0.02
        %v1118 = vmul.f32 %v801, 0.02
        %v1119 = vmul.f32 %v970, 0.02
        %v1120 = vmul.f32 %v803, 0.02
        %v1121 = vmul.f32 %v972, 0.02
        %v1122 = vmul.f32 %v806, 0.02
        %v1123 = vmul.f32 %v975, 0.02
        %v1124 = vmul.f32 %v808, 0.02
        %v1125 = vmul.f32 %v977, 0.02
        %v1126 = vmul.f32 %v811, 0.02
        %v1127 = vmul.f32 %v980, 0.02
        %v1128 = vmul.f32 %v813, 0.02
        %v1129 = vmul.f32 %v982, 0.02
        %v1130 = vmul.f32 %v816, 0.02
        %v1131 = vmul.f32 %v985, 0.02
        %v1132 = vmul.f32 %v818, 0.02
        %v1133 = vmul.f32 %v987, 0.02
        %v1134 = vmul.f32 %v821, 0.02
        %v1135 = vmul.f32 %v990, 0.02
        %v1136 = vmul.f32 %v823, 0.02
        %v1137 = vmul.f32 %v992, 0.02
        %v1138 = vmul.f32 %v826, 0.02
        %v1139 = vmul.f32 %v995, 0.02
        %v1140 = vmul.f32 %v828, 0.02
        %v1141 = vmul.f32 %v997, 0.02
        %v1142 = vmul.f32 %v831, 0.02
        %v1143 = vmul.f32 %v1000, 0.02
        %v1144 = vmul.f32 %v833, 0.02
        %v1145 = vmul.f32 %v1002, 0.02
        %v1146 = vmul.f32 %v836, 0.02
        %v1147 = vmul.f32 %v1005, 0.02
        %v1148 = vmul.f32 %v838, 0.02
        %v1149 = vmul.f32 %v1007, 0.02
        %v1150 = vmul.f32 %v841, 0.02
        %v1151 = vmul.f32 %v1010, 0.02
        %v1152 = vmul.f32 %v843, 0.02
        %v1153 = vmul.f32 %v1012, 0.02
        %v1154 = vmul.f32 %v846, 0.02
        %v1155 = vmul.f32 %v1015, 0.02
        %v1156 = vmul.f32 %v848, 0.02
        %v1157 = vmul.f32 %v1017, 0.02
        %v1158 = vmul.f32 %v851, 0.02
        %v1159 = vmul.f32 %v1020, 0.02
        %v1160 = vmul.f32 %v853, 0.02
        %v1161 = vmul.f32 %v1022, 0.02
        %v1162 = vmul.f32 %v856, 0.02
        %v1163 = vmul.f32 %v1025, 0.02
        %v1164 = vmul.f32 %v858, 0.02
        %v1165 = vmul.f32 %v1027, 0.02
        %v1166 = vmul.f32 %v861, 0.02
        %v1167 = vmul.f32 %v1030, 0.02
        %v1168 = vmul.f32 %v863, 0.02
        %v1169 = vmul.f32 %v1032, 0.02
        %v1170 = vmul.f32 %v866, 0.02
        %v1171 = vmul.f32 %v1035, 0.02
        %v1172 = vmul.f32 %v868, 0.02
        %v1173 = vmul.f32 %v1037, 0.02
        %v1174 = vmul.f32 %v871, 0.02
        %v1175 = vmul.f32 %v1040, 0.02
        %v1176 = vmul.f32 %v873, 0.02
        %v1177 = vmul.f32 %v1042, 0.02
        %v1178 = vmul.f32 %v876, 0.02
        %v1179 = vmul.f32 %v1045, 0.02
        %v1180 = vmul.f32 %v878, 0.02
        %v1181 = vmul.f32 %v1047, 0.02
        %v1182 = vmul.f32 %v881, 0.02
        %v1183 = vmul.f32 %v1050, 0.02
        %v1184 = vmul.f32 %v883, 0.02
        %v1185 = vmul.f32 %v1052, 0.02
        %v1186 = vmul.f32 %v886, 0.02
        %v1187 = vmul.f32 %v1055, 0.02
        %v1188 = vmul.f32 %v888, 0.02
        %v1189 = vmul.f32 %v1057, 0.02
        %v1190 = vmul.f32 %v891, 0.02
        %v1191 = vmul.f32 %v1060, 0.02
        %v1192 = vmul.f32 %v893, 0.02
        %v1193 = vmul.f32 %v1062, 0.02
        %v1194 = vmul.f32 %v896, 0.02
        %v1195 = vmul.f32 %v1065, 0.02
        %v1196 = vmul.f32 %v898, 0.02
        %v1197 = vmul.f32 %v1067, 0.02
        %v1198 = vmul.f32 %v901, 0.02
        %v1199 = vmul.f32 %v1070, 0.02
        %v1200 = vmul.f32 %v903, 0.02
        %v1201 = vmul.f32 %v1072, 0.02
        %v1202 = vmax.f32 %v746, %v1074
        %v1203 = vmax.f32 %v915, %v1075
        %v1204 = vmax.f32 %v748, %v1076
        %v1205 = vmax.f32 %v917, %v1077
        %v1206 = vmax.f32 %v751, %v1078
        %v1207 = vmax.f32 %v920, %v1079
        %v1208 = vmax.f32 %v753, %v1080
        %v1209 = vmax.f32 %v922, %v1081
        %v1210 = vmax.f32 %v756, %v1082
        %v1211 = vmax.f32 %v925, %v1083
        %v1212 = vmax.f32 %v758, %v1084
        %v1213 = vmax.f32 %v927, %v1085
        %v1214 = vmax.f32 %v761, %v1086
        %v1215 = vmax.f32 %v930, %v1087
        %v1216 = vmax.f32 %v763, %v1088
        %v1217 = vmax.f32 %v932, %v1089
        %v1218 = vmax.f32 %v766, %v1090
        %v1219 = vmax.f32 %v935, %v1091
        %v1220 = vmax.f32 %v768, %v1092
        %v1221 = vmax.f32 %v937, %v1093
        %v1222 = vmax.f32 %v771, %v1094
        %v1223 = vmax.f32 %v940, %v1095
        %v1224 = vmax.f32 %v773, %v1096
        %v1225 = vmax.f32 %v942, %v1097
        %v1226 = vmax.f32 %v776, %v1098
        %v1227 = vmax.f32 %v945, %v1099
        %v1228 = vmax.f32 %v778, %v1100
        %v1229 = vmax.f32 %v947, %v1101
        %v1230 = vmax.f32 %v781, %v1102
        %v1231 = vmax.f32 %v950, %v1103
        %v1232 = vmax.f32 %v783, %v1104
        %v1233 = vmax.f32 %v952, %v1105
        %v1234 = vmax.f32 %v786, %v1106
        %v1235 = vmax.f32 %v955, %v1107
        %v1236 = vmax.f32 %v788, %v1108
        %v1237 = vmax.f32 %v957, %v1109
        %v1238 = vmax.f32 %v791, %v1110
        %v1239 = vmax.f32 %v960, %v1111
        %v1240 = vmax.f32 %v793, %v1112
        %v1241 = vmax.f32 %v962, %v1113
        %v1242 = vmax.f32 %v796, %v1114
        %v1243 = vmax.f32 %v965, %v1115
        %v1244 = vmax.f32 %v798, %v1116
        %v1245 = vmax.f32 %v967, %v1117
        %v1246 = vmax.f32 %v801, %v1118
        %v1247 = vmax.f32 %v970, %v1119
        %v1248 = vmax.f32 %v803, %v1120
        %v1249 = vmax.f32 %v972, %v1121
        %v1250 = vmax.f32 %v806, %v1122
        %v1251 = vmax.f32 %v975, %v1123
        %v1252 = vmax.f32 %v808, %v1124
        %v1253 = vmax.f32 %v977, %v1125
        %v1254 = vmax.f32 %v811, %v1126
        %v1255 = vmax.f32 %v980, %v1127
        %v1256 = vmax.f32 %v813, %v1128
        %v1257 = vmax.f32 %v982, %v1129
        %v1258 = vmax.f32 %v816, %v1130
        %v1259 = vmax.f32 %v985, %v1131
        %v1260 = vmax.f32 %v818, %v1132
        %v1261 = vmax.f32 %v987, %v1133
        %v1262 = vmax.f32 %v821, %v1134
        %v1263 = vmax.f32 %v990, %v1135
        %v1264 = vmax.f32 %v823, %v1136
        %v1265 = vmax.f32 %v992, %v1137
        %v1266 = vmax.f32 %v826, %v1138
        %v1267 = vmax.f32 %v995, %v1139
        %v1268 = vmax.f32 %v828, %v1140
        %v1269 = vmax.f32 %v997, %v1141
        %v1270 = vmax.f32 %v831, %v1142
        %v1271 = vmax.f32 %v1000, %v1143
        %v1272 = vmax.f32 %v833, %v1144
        %v1273 = vmax.f32 %v1002, %v1145
        %v1274 = vmax.f32 %v836, %v1146
        %v1275 = vmax.f32 %v1005, %v1147
        %v1276 = vmax.f32 %v838, %v1148
        %v1277 = vmax.f32 %v1007, %v1149
        %v1278 = vmax.f32 %v841, %v1150
        %v1279 = vmax.f32 %v1010, %v1151
        %v1280 = vmax.f32 %v843, %v1152
        %v1281 = vmax.f32 %v1012, %v1153
        %v1282 = vmax.f32 %v846, %v1154
        %v1283 = vmax.f32 %v1015, %v1155
        %v1284 = vmax.f32 %v848, %v1156
        %v1285 = vmax.f32 %v1017, %v1157
        %v1286 = vmax.f32 %v851, %v1158
        %v1287 = vmax.f32 %v1020, %v1159
        %v1288 = vmax.f32 %v853, %v1160
        %v1289 = vmax.f32 %v1022, %v1161
        %v1290 = vmax.f32 %v856, %v1162
        %v1291 = vmax.f32 %v1025, %v1163
        %v1292 = vmax.f32 %v858, %v1164
        %v1293 = vmax.f32 %v1027, %v1165
        %v1294 = vmax.f32 %v861, %v1166
        %v1295 = vmax.f32 %v1030, %v1167
        %v1296 = vmax.f32 %v863, %v1168
        %v1297 = vmax.f32 %v1032, %v1169
        %v1298 = vmax.f32 %v866, %v1170
        %v1299 = vmax.f32 %v1035, %v1171
        %v1300 = vmax.f32 %v868, %v1172
        %v1301 = vmax.f32 %v1037, %v1173
        %v1302 = vmax.f32 %v871, %v1174
        %v1303 = vmax.f32 %v1040, %v1175
        %v1304 = vmax.f32 %v873, %v1176
        %v1305 = vmax.f32 %v1042, %v1177
        %v1306 = vmax.f32 %v876, %v1178
        %v1307 = vmax.f32 %v1045, %v1179
        %v1308 = vmax.f32 %v878, %v1180
        %v1309 = vmax.f32 %v1047, %v1181
        %v1310 = vmax.f32 %v881, %v1182
        %v1311 = vmax.f32 %v1050, %v1183
        %v1312 = vmax.f32 %v883, %v1184
        %v1313 = vmax.f32 %v1052, %v1185
        %v1314 = vmax.f32 %v886, %v1186
        %v1315 = vmax.f32 %v1055, %v1187
        %v1316 = vmax.f32 %v888, %v1188
        %v1317 = vmax.f32 %v1057, %v1189
        %v1318 = vmax.f32 %v891, %v1190
        %v1319 = vmax.f32 %v1060, %v1191
        %v1320 = vmax.f32 %v893, %v1192
        %v1321 = vmax.f32 %v1062, %v1193
        %v1322 = vmax.f32 %v896, %v1194
        %v1323 = vmax.f32 %v1065, %v1195
        %v1324 = vmax.f32 %v898, %v1196
        %v1325 = vmax.f32 %v1067, %v1197
        %v1326 = vmax.f32 %v901, %v1198
        %v1327 = vmax.f32 %v1070, %v1199
        %v1328 = vmax.f32 %v903, %v1200
        %v1329 = vmax.f32 %v1072, %v1201
        %v1330 = vpack.c.bf16 %v1204, %v1202
        %v1331 = vpack.c.bf16 %v1205, %v1203
        %v1332 = vpack.c.bf16 %v1208, %v1206
        %v1333 = vpack.c.bf16 %v1209, %v1207
        %v1334 = vpack.c.bf16 %v1212, %v1210
        %v1335 = vpack.c.bf16 %v1213, %v1211
        %v1336 = vpack.c.bf16 %v1216, %v1214
        %v1337 = vpack.c.bf16 %v1217, %v1215
        %v1338 = vpack.c.bf16 %v1220, %v1218
        %v1339 = vpack.c.bf16 %v1221, %v1219
        %v1340 = vpack.c.bf16 %v1224, %v1222
        %v1341 = vpack.c.bf16 %v1225, %v1223
        %v1342 = vpack.c.bf16 %v1228, %v1226
        %v1343 = vpack.c.bf16 %v1229, %v1227
        %v1344 = vpack.c.bf16 %v1232, %v1230
        %v1345 = vpack.c.bf16 %v1233, %v1231
        %v1346 = vpack.c.bf16 %v1236, %v1234
        %v1347 = vpack.c.bf16 %v1237, %v1235
        %v1348 = vpack.c.bf16 %v1240, %v1238
        %v1349 = vpack.c.bf16 %v1241, %v1239
        %v1350 = vpack.c.bf16 %v1244, %v1242
        %v1351 = vpack.c.bf16 %v1245, %v1243
        %v1352 = vpack.c.bf16 %v1248, %v1246
        %v1353 = vpack.c.bf16 %v1249, %v1247
        %v1354 = vpack.c.bf16 %v1252, %v1250
        %v1355 = vpack.c.bf16 %v1253, %v1251
        %v1356 = vpack.c.bf16 %v1256, %v1254
        %v1357 = vpack.c.bf16 %v1257, %v1255
        %v1358 = vpack.c.bf16 %v1260, %v1258
        %v1359 = vpack.c.bf16 %v1261, %v1259
        %v1360 = vpack.c.bf16 %v1264, %v1262
        %v1361 = vpack.c.bf16 %v1265, %v1263
        %v1362 = vpack.c.bf16 %v1268, %v1266
        %v1363 = vpack.c.bf16 %v1269, %v1267
        %v1364 = vpack.c.bf16 %v1272, %v1270
        %v1365 = vpack.c.bf16 %v1273, %v1271
        %v1366 = vpack.c.bf16 %v1276, %v1274
        %v1367 = vpack.c.bf16 %v1277, %v1275
        %v1368 = vpack.c.bf16 %v1280, %v1278
        %v1369 = vpack.c.bf16 %v1281, %v1279
        %v1370 = vpack.c.bf16 %v1284, %v1282
        %v1371 = vpack.c.bf16 %v1285, %v1283
        %v1372 = vpack.c.bf16 %v1288, %v1286
        %v1373 = vpack.c.bf16 %v1289, %v1287
        %v1374 = vpack.c.bf16 %v1292, %v1290
        %v1375 = vpack.c.bf16 %v1293, %v1291
        %v1376 = vpack.c.bf16 %v1296, %v1294
        %v1377 = vpack.c.bf16 %v1297, %v1295
        %v1378 = vpack.c.bf16 %v1300, %v1298
        %v1379 = vpack.c.bf16 %v1301, %v1299
        %v1380 = vpack.c.bf16 %v1304, %v1302
        %v1381 = vpack.c.bf16 %v1305, %v1303
        %v1382 = vpack.c.bf16 %v1308, %v1306
        %v1383 = vpack.c.bf16 %v1309, %v1307
        %v1384 = vpack.c.bf16 %v1312, %v1310
        %v1385 = vpack.c.bf16 %v1313, %v1311
        %v1386 = vpack.c.bf16 %v1316, %v1314
        %v1387 = vpack.c.bf16 %v1317, %v1315
        %v1388 = vpack.c.bf16 %v1320, %v1318
        %v1389 = vpack.c.bf16 %v1321, %v1319
        %v1390 = vpack.c.bf16 %v1324, %v1322
        %v1391 = vpack.c.bf16 %v1325, %v1323
        %v1392 = vpack.c.bf16 %v1328, %v1326
        %v1393 = vpack.c.bf16 %v1329, %v1327
        %v1394 = vld [vmem:[%s3] sm:$0xff]
        %v1395 = vld [vmem:[%s3 + $0x8] sm:$0xff]
        %v1396 = vld [vmem:[%s3 + $0x10] sm:$0xff]
        %v1397 = vld [vmem:[%s3 + $0x18] sm:$0xff]
        %v1398 = vld [vmem:[%s3 + $0x20] sm:$0xff]
        %v1399 = vld [vmem:[%s3 + $0x28] sm:$0xff]
        %v1400 = vld [vmem:[%s3 + $0x30] sm:$0xff]
        %v1401 = vld [vmem:[%s3 + $0x38] sm:$0xff]
        %v1402 = vld [vmem:[%s3 + $0x40] sm:$0xff]
        %v1403 = vld [vmem:[%s3 + $0x48] sm:$0xff]
        %v1404 = vld [vmem:[%s3 + $0x50] sm:$0xff]
        %v1405 = vld [vmem:[%s3 + $0x58] sm:$0xff]
        %v1406 = vld [vmem:[%s3 + $0x60] sm:$0xff]
        %v1407 = vld [vmem:[%s3 + $0x68] sm:$0xff]
        %v1408 = vld [vmem:[%s3 + $0x70] sm:$0xff]
        %v1409 = vld [vmem:[%s3 + $0x78] sm:$0xff]
        %v1410 = vld [vmem:[%s3 + $0x80] sm:$0xff]
        %v1411 = vld [vmem:[%s3 + $0x88] sm:$0xff]
        %v1412 = vld [vmem:[%s3 + $0x90] sm:$0xff]
        %v1413 = vld [vmem:[%s3 + $0x98] sm:$0xff]
        %v1414 = vld [vmem:[%s3 + $0xa0] sm:$0xff]
        %v1415 = vld [vmem:[%s3 + $0xa8] sm:$0xff]
        %v1416 = vld [vmem:[%s3 + $0xb0] sm:$0xff]
        %v1417 = vld [vmem:[%s3 + $0xb8] sm:$0xff]
        %v1418 = vld [vmem:[%s3 + $0xc0] sm:$0xff]
        %v1419 = vld [vmem:[%s3 + $0xc8] sm:$0xff]
        %v1420 = vld [vmem:[%s3 + $0xd0] sm:$0xff]
        %v1421 = vld [vmem:[%s3 + $0xd8] sm:$0xff]
        %v1422 = vld [vmem:[%s3 + $0xe0] sm:$0xff]
        %v1423 = vld [vmem:[%s3 + $0xe8] sm:$0xff]
        %v1424 = vld [vmem:[%s3 + $0xf0] sm:$0xff]
        %v1425 = vld [vmem:[%s3 + $0xf8] sm:$0xff]
        %v1426 = vld [vmem:[%s4] sm:$0x3]
        %v1428 = vperm.slane %v1426, 0
        %v1429 = vperm.slane %v1426, 1
        %v1464 = vunpack.c.l.b16 %v1394
        %v1465 = vunpack.c.h.b16 %v1394
        %v1466 = vunpack.c.l.b16 %v1395
        %v1467 = vunpack.c.h.b16 %v1395
        %v1468 = vunpack.c.l.b16 %v1396
        %v1469 = vunpack.c.h.b16 %v1396
        %v1470 = vunpack.c.l.b16 %v1397
        %v1471 = vunpack.c.h.b16 %v1397
        %v1472 = vunpack.c.l.b16 %v1398
        %v1473 = vunpack.c.h.b16 %v1398
        %v1474 = vunpack.c.l.b16 %v1399
        %v1475 = vunpack.c.h.b16 %v1399
        %v1476 = vunpack.c.l.b16 %v1400
        %v1477 = vunpack.c.h.b16 %v1400
        %v1478 = vunpack.c.l.b16 %v1401
        %v1479 = vunpack.c.h.b16 %v1401
        %v1480 = vunpack.c.l.b16 %v1402
        %v1481 = vunpack.c.h.b16 %v1402
        %v1482 = vunpack.c.l.b16 %v1403
        %v1483 = vunpack.c.h.b16 %v1403
        %v1484 = vunpack.c.l.b16 %v1404
        %v1485 = vunpack.c.h.b16 %v1404
        %v1486 = vunpack.c.l.b16 %v1405
        %v1487 = vunpack.c.h.b16 %v1405
        %v1488 = vunpack.c.l.b16 %v1406
        %v1489 = vunpack.c.h.b16 %v1406
        %v1490 = vunpack.c.l.b16 %v1407
        %v1491 = vunpack.c.h.b16 %v1407
        %v1492 = vunpack.c.l.b16 %v1408
        %v1493 = vunpack.c.h.b16 %v1408
        %v1494 = vunpack.c.l.b16 %v1409
        %v1495 = vunpack.c.h.b16 %v1409
        %v1496 = vunpack.c.l.b16 %v1410
        %v1497 = vunpack.c.h.b16 %v1410
        %v1498 = vunpack.c.l.b16 %v1411
        %v1499 = vunpack.c.h.b16 %v1411
        %v1500 = vunpack.c.l.b16 %v1412
        %v1501 = vunpack.c.h.b16 %v1412
        %v1502 = vunpack.c.l.b16 %v1413
        %v1503 = vunpack.c.h.b16 %v1413
        %v1504 = vunpack.c.l.b16 %v1414
        %v1505 = vunpack.c.h.b16 %v1414
        %v1506 = vunpack.c.l.b16 %v1415
        %v1507 = vunpack.c.h.b16 %v1415
        %v1508 = vunpack.c.l.b16 %v1416
        %v1509 = vunpack.c.h.b16 %v1416
        %v1510 = vunpack.c.l.b16 %v1417
        %v1511 = vunpack.c.h.b16 %v1417
        %v1512 = vunpack.c.l.b16 %v1418
        %v1513 = vunpack.c.h.b16 %v1418
        %v1514 = vunpack.c.l.b16 %v1419
        %v1515 = vunpack.c.h.b16 %v1419
        %v1516 = vunpack.c.l.b16 %v1420
        %v1517 = vunpack.c.h.b16 %v1420
        %v1518 = vunpack.c.l.b16 %v1421
        %v1519 = vunpack.c.h.b16 %v1421
        %v1520 = vunpack.c.l.b16 %v1422
        %v1521 = vunpack.c.h.b16 %v1422
        %v1522 = vunpack.c.l.b16 %v1423
        %v1523 = vunpack.c.h.b16 %v1423
        %v1524 = vunpack.c.l.b16 %v1424
        %v1525 = vunpack.c.h.b16 %v1424
        %v1526 = vunpack.c.l.b16 %v1425
        %v1527 = vunpack.c.h.b16 %v1425
        %v1528 = vpack.c.b16 %v1466, %v1464
        %v1529 = vpack.c.b16 %v1467, %v1465
        %v1530 = vpack.c.b16 %v1470, %v1468
        %v1531 = vpack.c.b16 %v1471, %v1469
        %v1532 = vpack.c.b16 %v1474, %v1472
        %v1533 = vpack.c.b16 %v1475, %v1473
        %v1534 = vpack.c.b16 %v1478, %v1476
        %v1535 = vpack.c.b16 %v1479, %v1477
        %v1536 = vpack.c.b16 %v1482, %v1480
        %v1537 = vpack.c.b16 %v1483, %v1481
        %v1538 = vpack.c.b16 %v1486, %v1484
        %v1539 = vpack.c.b16 %v1487, %v1485
        %v1540 = vpack.c.b16 %v1490, %v1488
        %v1541 = vpack.c.b16 %v1491, %v1489
        %v1542 = vpack.c.b16 %v1494, %v1492
        %v1543 = vpack.c.b16 %v1495, %v1493
        %v1544 = vpack.c.b16 %v1498, %v1496
        %v1545 = vpack.c.b16 %v1499, %v1497
        %v1546 = vpack.c.b16 %v1502, %v1500
        %v1547 = vpack.c.b16 %v1503, %v1501
        %v1548 = vpack.c.b16 %v1506, %v1504
        %v1549 = vpack.c.b16 %v1507, %v1505
        %v1550 = vpack.c.b16 %v1510, %v1508
        %v1551 = vpack.c.b16 %v1511, %v1509
        %v1552 = vpack.c.b16 %v1514, %v1512
        %v1553 = vpack.c.b16 %v1515, %v1513
        %v1554 = vpack.c.b16 %v1518, %v1516
        %v1555 = vpack.c.b16 %v1519, %v1517
        %v1556 = vpack.c.b16 %v1522, %v1520
        %v1557 = vpack.c.b16 %v1523, %v1521
        %v1558 = vpack.c.b16 %v1526, %v1524
        %v1559 = vpack.c.b16 %v1527, %v1525
        %1592 = vmatpush.bf16.msra.mxu0 %v1542
        %1593 = vmatpush.bf16.msra.mxu0 %v1540
        %1594 = vmatpush.bf16.msra.mxu0 %v1538
        %1595 = vmatpush.bf16.msra.mxu0 %v1536
        %1596 = vmatpush.bf16.msra.mxu0 %v1534
        %1597 = vmatpush.bf16.msra.mxu0 %v1532
        %1598 = vmatpush.bf16.msra.mxu0 %v1530
        %1599 = vmatpush.bf16.msra.mxu0 %v1528
        %1600 = vmatmul.bf16.gmra.mxu0 %v1330
        %v1601 = vpop.f32.mrf.mxu0
        %v1602 = vadd.f32 %v1428, %v1601
        %v1603 = vpop.f32.mrf.mxu0
        %v1604 = vadd.f32 %v1428, %v1603
        %1605 = vmatmul.bf16.gmra.mxu0 %v1332
        %v1606 = vpop.f32.mrf.mxu0
        %v1607 = vadd.f32 %v1428, %v1606
        %v1608 = vpop.f32.mrf.mxu0
        %v1609 = vadd.f32 %v1428, %v1608
        %1610 = vmatmul.bf16.gmra.mxu0 %v1334
        %v1611 = vpop.f32.mrf.mxu0
        %v1612 = vadd.f32 %v1428, %v1611
        %v1613 = vpop.f32.mrf.mxu0
        %v1614 = vadd.f32 %v1428, %v1613
        %1615 = vmatmul.bf16.gmra.mxu0 %v1336
        %v1616 = vpop.f32.mrf.mxu0
        %v1617 = vadd.f32 %v1428, %v1616
        %v1618 = vpop.f32.mrf.mxu0
        %v1619 = vadd.f32 %v1428, %v1618
        %1620 = vmatmul.bf16.gmra.mxu0 %v1338
        %v1621 = vpop.f32.mrf.mxu0
        %v1622 = vadd.f32 %v1428, %v1621
        %v1623 = vpop.f32.mrf.mxu0
        %v1624 = vadd.f32 %v1428, %v1623
        %1625 = vmatmul.bf16.gmra.mxu0 %v1340
        %v1626 = vpop.f32.mrf.mxu0
        %v1627 = vadd.f32 %v1428, %v1626
        %v1628 = vpop.f32.mrf.mxu0
        %v1629 = vadd.f32 %v1428, %v1628
        %1630 = vmatmul.bf16.gmra.mxu0 %v1342
        %v1631 = vpop.f32.mrf.mxu0
        %v1632 = vadd.f32 %v1428, %v1631
        %v1633 = vpop.f32.mrf.mxu0
        %v1634 = vadd.f32 %v1428, %v1633
        %1635 = vmatmul.bf16.gmra.mxu0 %v1344
        %v1636 = vpop.f32.mrf.mxu0
        %v1637 = vadd.f32 %v1428, %v1636
        %v1638 = vpop.f32.mrf.mxu0
        %v1639 = vadd.f32 %v1428, %v1638
        %1640 = vmatmul.bf16.gmra.mxu0 %v1346
        %v1641 = vpop.f32.mrf.mxu0
        %v1642 = vadd.f32 %v1428, %v1641
        %v1643 = vpop.f32.mrf.mxu0
        %v1644 = vadd.f32 %v1428, %v1643
        %1645 = vmatmul.bf16.gmra.mxu0 %v1348
        %v1646 = vpop.f32.mrf.mxu0
        %v1647 = vadd.f32 %v1428, %v1646
        %v1648 = vpop.f32.mrf.mxu0
        %v1649 = vadd.f32 %v1428, %v1648
        %1650 = vmatmul.bf16.gmra.mxu0 %v1350
        %v1651 = vpop.f32.mrf.mxu0
        %v1652 = vadd.f32 %v1428, %v1651
        %v1653 = vpop.f32.mrf.mxu0
        %v1654 = vadd.f32 %v1428, %v1653
        %1655 = vmatmul.bf16.gmra.mxu0 %v1352
        %v1656 = vpop.f32.mrf.mxu0
        %v1657 = vadd.f32 %v1428, %v1656
        %v1658 = vpop.f32.mrf.mxu0
        %v1659 = vadd.f32 %v1428, %v1658
        %1660 = vmatmul.bf16.gmra.mxu0 %v1354
        %v1661 = vpop.f32.mrf.mxu0
        %v1662 = vadd.f32 %v1428, %v1661
        %v1663 = vpop.f32.mrf.mxu0
        %v1664 = vadd.f32 %v1428, %v1663
        %1665 = vmatmul.bf16.gmra.mxu0 %v1356
        %v1666 = vpop.f32.mrf.mxu0
        %v1667 = vadd.f32 %v1428, %v1666
        %v1668 = vpop.f32.mrf.mxu0
        %v1669 = vadd.f32 %v1428, %v1668
        %1670 = vmatmul.bf16.gmra.mxu0 %v1358
        %v1671 = vpop.f32.mrf.mxu0
        %v1672 = vadd.f32 %v1428, %v1671
        %v1673 = vpop.f32.mrf.mxu0
        %v1674 = vadd.f32 %v1428, %v1673
        %1675 = vmatmul.bf16.gmra.mxu0 %v1360
        %v1676 = vpop.f32.mrf.mxu0
        %v1677 = vadd.f32 %v1428, %v1676
        %v1678 = vpop.f32.mrf.mxu0
        %v1679 = vadd.f32 %v1428, %v1678
        %1680 = vmatmul.bf16.gmra.mxu0 %v1362
        %v1681 = vpop.f32.mrf.mxu0
        %v1682 = vadd.f32 %v1428, %v1681
        %v1683 = vpop.f32.mrf.mxu0
        %v1684 = vadd.f32 %v1428, %v1683
        %1685 = vmatmul.bf16.gmra.mxu0 %v1364
        %v1686 = vpop.f32.mrf.mxu0
        %v1687 = vadd.f32 %v1428, %v1686
        %v1688 = vpop.f32.mrf.mxu0
        %v1689 = vadd.f32 %v1428, %v1688
        %1690 = vmatmul.bf16.gmra.mxu0 %v1366
        %v1691 = vpop.f32.mrf.mxu0
        %v1692 = vadd.f32 %v1428, %v1691
        %v1693 = vpop.f32.mrf.mxu0
        %v1694 = vadd.f32 %v1428, %v1693
        %1695 = vmatmul.bf16.gmra.mxu0 %v1368
        %v1696 = vpop.f32.mrf.mxu0
        %v1697 = vadd.f32 %v1428, %v1696
        %v1698 = vpop.f32.mrf.mxu0
        %v1699 = vadd.f32 %v1428, %v1698
        %1700 = vmatmul.bf16.gmra.mxu0 %v1370
        %v1701 = vpop.f32.mrf.mxu0
        %v1702 = vadd.f32 %v1428, %v1701
        %v1703 = vpop.f32.mrf.mxu0
        %v1704 = vadd.f32 %v1428, %v1703
        %1705 = vmatmul.bf16.gmra.mxu0 %v1372
        %v1706 = vpop.f32.mrf.mxu0
        %v1707 = vadd.f32 %v1428, %v1706
        %v1708 = vpop.f32.mrf.mxu0
        %v1709 = vadd.f32 %v1428, %v1708
        %1710 = vmatmul.bf16.gmra.mxu0 %v1374
        %v1711 = vpop.f32.mrf.mxu0
        %v1712 = vadd.f32 %v1428, %v1711
        %v1713 = vpop.f32.mrf.mxu0
        %v1714 = vadd.f32 %v1428, %v1713
        %1715 = vmatmul.bf16.gmra.mxu0 %v1376
        %v1716 = vpop.f32.mrf.mxu0
        %v1717 = vadd.f32 %v1428, %v1716
        %v1718 = vpop.f32.mrf.mxu0
        %v1719 = vadd.f32 %v1428, %v1718
        %1720 = vmatmul.bf16.gmra.mxu0 %v1378
        %v1721 = vpop.f32.mrf.mxu0
        %v1722 = vadd.f32 %v1428, %v1721
        %v1723 = vpop.f32.mrf.mxu0
        %v1724 = vadd.f32 %v1428, %v1723
        %1725 = vmatmul.bf16.gmra.mxu0 %v1380
        %v1726 = vpop.f32.mrf.mxu0
        %v1727 = vadd.f32 %v1428, %v1726
        %v1728 = vpop.f32.mrf.mxu0
        %v1729 = vadd.f32 %v1428, %v1728
        %1730 = vmatmul.bf16.gmra.mxu0 %v1382
        %v1731 = vpop.f32.mrf.mxu0
        %v1732 = vadd.f32 %v1428, %v1731
        %v1733 = vpop.f32.mrf.mxu0
        %v1734 = vadd.f32 %v1428, %v1733
        %1735 = vmatmul.bf16.gmra.mxu0 %v1384
        %v1736 = vpop.f32.mrf.mxu0
        %v1737 = vadd.f32 %v1428, %v1736
        %v1738 = vpop.f32.mrf.mxu0
        %v1739 = vadd.f32 %v1428, %v1738
        %1740 = vmatmul.bf16.gmra.mxu0 %v1386
        %v1741 = vpop.f32.mrf.mxu0
        %v1742 = vadd.f32 %v1428, %v1741
        %v1743 = vpop.f32.mrf.mxu0
        %v1744 = vadd.f32 %v1428, %v1743
        %1745 = vmatmul.bf16.gmra.mxu0 %v1388
        %v1746 = vpop.f32.mrf.mxu0
        %v1747 = vadd.f32 %v1428, %v1746
        %v1748 = vpop.f32.mrf.mxu0
        %v1749 = vadd.f32 %v1428, %v1748
        %1750 = vmatmul.bf16.gmra.mxu0 %v1390
        %v1751 = vpop.f32.mrf.mxu0
        %v1752 = vadd.f32 %v1428, %v1751
        %v1753 = vpop.f32.mrf.mxu0
        %v1754 = vadd.f32 %v1428, %v1753
        %1755 = vmatmul.bf16.gmra.mxu0 %v1392
        %v1756 = vpop.f32.mrf.mxu0
        %v1757 = vadd.f32 %v1428, %v1756
        %v1758 = vpop.f32.mrf.mxu0
        %v1759 = vadd.f32 %v1428, %v1758
        %1760 = vdwg.mxu0
        %1761 = vmatpush.bf16.msra.mxu0 %v1558
        %1762 = vmatpush.bf16.msra.mxu0 %v1556
        %1763 = vmatpush.bf16.msra.mxu0 %v1554
        %1764 = vmatpush.bf16.msra.mxu0 %v1552
        %1765 = vmatpush.bf16.msra.mxu0 %v1550
        %1766 = vmatpush.bf16.msra.mxu0 %v1548
        %1767 = vmatpush.bf16.msra.mxu0 %v1546
        %1768 = vmatpush.bf16.msra.mxu0 %v1544
        %1769 = vmatmul.bf16.gmra.mxu0 %v1331
        %v1770 = vpop.f32.mrf.mxu0
        %v1771 = vadd.f32 %v1602, %v1770
        %v1772 = vpop.f32.mrf.mxu0
        %v1773 = vadd.f32 %v1604, %v1772
        %1774 = vmatmul.bf16.gmra.mxu0 %v1333
        %v1775 = vpop.f32.mrf.mxu0
        %v1776 = vadd.f32 %v1607, %v1775
        %v1777 = vpop.f32.mrf.mxu0
        %v1778 = vadd.f32 %v1609, %v1777
        %1779 = vmatmul.bf16.gmra.mxu0 %v1335
        %v1780 = vpop.f32.mrf.mxu0
        %v1781 = vadd.f32 %v1612, %v1780
        %v1782 = vpop.f32.mrf.mxu0
        %v1783 = vadd.f32 %v1614, %v1782
        %1784 = vmatmul.bf16.gmra.mxu0 %v1337
        %v1785 = vpop.f32.mrf.mxu0
        %v1786 = vadd.f32 %v1617, %v1785
        %v1787 = vpop.f32.mrf.mxu0
        %v1788 = vadd.f32 %v1619, %v1787
        %1789 = vmatmul.bf16.gmra.mxu0 %v1339
        %v1790 = vpop.f32.mrf.mxu0
        %v1791 = vadd.f32 %v1622, %v1790
        %v1792 = vpop.f32.mrf.mxu0
        %v1793 = vadd.f32 %v1624, %v1792
        %1794 = vmatmul.bf16.gmra.mxu0 %v1341
        %v1795 = vpop.f32.mrf.mxu0
        %v1796 = vadd.f32 %v1627, %v1795
        %v1797 = vpop.f32.mrf.mxu0
        %v1798 = vadd.f32 %v1629, %v1797
        %1799 = vmatmul.bf16.gmra.mxu0 %v1343
        %v1800 = vpop.f32.mrf.mxu0
        %v1801 = vadd.f32 %v1632, %v1800
        %v1802 = vpop.f32.mrf.mxu0
        %v1803 = vadd.f32 %v1634, %v1802
        %1804 = vmatmul.bf16.gmra.mxu0 %v1345
        %v1805 = vpop.f32.mrf.mxu0
        %v1806 = vadd.f32 %v1637, %v1805
        %v1807 = vpop.f32.mrf.mxu0
        %v1808 = vadd.f32 %v1639, %v1807
        %1809 = vmatmul.bf16.gmra.mxu0 %v1347
        %v1810 = vpop.f32.mrf.mxu0
        %v1811 = vadd.f32 %v1642, %v1810
        %v1812 = vpop.f32.mrf.mxu0
        %v1813 = vadd.f32 %v1644, %v1812
        %1814 = vmatmul.bf16.gmra.mxu0 %v1349
        %v1815 = vpop.f32.mrf.mxu0
        %v1816 = vadd.f32 %v1647, %v1815
        %v1817 = vpop.f32.mrf.mxu0
        %v1818 = vadd.f32 %v1649, %v1817
        %1819 = vmatmul.bf16.gmra.mxu0 %v1351
        %v1820 = vpop.f32.mrf.mxu0
        %v1821 = vadd.f32 %v1652, %v1820
        %v1822 = vpop.f32.mrf.mxu0
        %v1823 = vadd.f32 %v1654, %v1822
        %1824 = vmatmul.bf16.gmra.mxu0 %v1353
        %v1825 = vpop.f32.mrf.mxu0
        %v1826 = vadd.f32 %v1657, %v1825
        %v1827 = vpop.f32.mrf.mxu0
        %v1828 = vadd.f32 %v1659, %v1827
        %1829 = vmatmul.bf16.gmra.mxu0 %v1355
        %v1830 = vpop.f32.mrf.mxu0
        %v1831 = vadd.f32 %v1662, %v1830
        %v1832 = vpop.f32.mrf.mxu0
        %v1833 = vadd.f32 %v1664, %v1832
        %1834 = vmatmul.bf16.gmra.mxu0 %v1357
        %v1835 = vpop.f32.mrf.mxu0
        %v1836 = vadd.f32 %v1667, %v1835
        %v1837 = vpop.f32.mrf.mxu0
        %v1838 = vadd.f32 %v1669, %v1837
        %1839 = vmatmul.bf16.gmra.mxu0 %v1359
        %v1840 = vpop.f32.mrf.mxu0
        %v1841 = vadd.f32 %v1672, %v1840
        %v1842 = vpop.f32.mrf.mxu0
        %v1843 = vadd.f32 %v1674, %v1842
        %1844 = vmatmul.bf16.gmra.mxu0 %v1361
        %v1845 = vpop.f32.mrf.mxu0
        %v1846 = vadd.f32 %v1677, %v1845
        %v1847 = vpop.f32.mrf.mxu0
        %v1848 = vadd.f32 %v1679, %v1847
        %1849 = vmatmul.bf16.gmra.mxu0 %v1363
        %v1850 = vpop.f32.mrf.mxu0
        %v1851 = vadd.f32 %v1682, %v1850
        %v1852 = vpop.f32.mrf.mxu0
        %v1853 = vadd.f32 %v1684, %v1852
        %1854 = vmatmul.bf16.gmra.mxu0 %v1365
        %v1855 = vpop.f32.mrf.mxu0
        %v1856 = vadd.f32 %v1687, %v1855
        %v1857 = vpop.f32.mrf.mxu0
        %v1858 = vadd.f32 %v1689, %v1857
        %1859 = vmatmul.bf16.gmra.mxu0 %v1367
        %v1860 = vpop.f32.mrf.mxu0
        %v1861 = vadd.f32 %v1692, %v1860
        %v1862 = vpop.f32.mrf.mxu0
        %v1863 = vadd.f32 %v1694, %v1862
        %1864 = vmatmul.bf16.gmra.mxu0 %v1369
        %v1865 = vpop.f32.mrf.mxu0
        %v1866 = vadd.f32 %v1697, %v1865
        %v1867 = vpop.f32.mrf.mxu0
        %v1868 = vadd.f32 %v1699, %v1867
        %1869 = vmatmul.bf16.gmra.mxu0 %v1371
        %v1870 = vpop.f32.mrf.mxu0
        %v1871 = vadd.f32 %v1702, %v1870
        %v1872 = vpop.f32.mrf.mxu0
        %v1873 = vadd.f32 %v1704, %v1872
        %1874 = vmatmul.bf16.gmra.mxu0 %v1373
        %v1875 = vpop.f32.mrf.mxu0
        %v1876 = vadd.f32 %v1707, %v1875
        %v1877 = vpop.f32.mrf.mxu0
        %v1878 = vadd.f32 %v1709, %v1877
        %1879 = vmatmul.bf16.gmra.mxu0 %v1375
        %v1880 = vpop.f32.mrf.mxu0
        %v1881 = vadd.f32 %v1712, %v1880
        %v1882 = vpop.f32.mrf.mxu0
        %v1883 = vadd.f32 %v1714, %v1882
        %1884 = vmatmul.bf16.gmra.mxu0 %v1377
        %v1885 = vpop.f32.mrf.mxu0
        %v1886 = vadd.f32 %v1717, %v1885
        %v1887 = vpop.f32.mrf.mxu0
        %v1888 = vadd.f32 %v1719, %v1887
        %1889 = vmatmul.bf16.gmra.mxu0 %v1379
        %v1890 = vpop.f32.mrf.mxu0
        %v1891 = vadd.f32 %v1722, %v1890
        %v1892 = vpop.f32.mrf.mxu0
        %v1893 = vadd.f32 %v1724, %v1892
        %1894 = vmatmul.bf16.gmra.mxu0 %v1381
        %v1895 = vpop.f32.mrf.mxu0
        %v1896 = vadd.f32 %v1727, %v1895
        %v1897 = vpop.f32.mrf.mxu0
        %v1898 = vadd.f32 %v1729, %v1897
        %1899 = vmatmul.bf16.gmra.mxu0 %v1383
        %v1900 = vpop.f32.mrf.mxu0
        %v1901 = vadd.f32 %v1732, %v1900
        %v1902 = vpop.f32.mrf.mxu0
        %v1903 = vadd.f32 %v1734, %v1902
        %1904 = vmatmul.bf16.gmra.mxu0 %v1385
        %v1905 = vpop.f32.mrf.mxu0
        %v1906 = vadd.f32 %v1737, %v1905
        %v1907 = vpop.f32.mrf.mxu0
        %v1908 = vadd.f32 %v1739, %v1907
        %1909 = vmatmul.bf16.gmra.mxu0 %v1387
        %v1910 = vpop.f32.mrf.mxu0
        %v1911 = vadd.f32 %v1742, %v1910
        %v1912 = vpop.f32.mrf.mxu0
        %v1913 = vadd.f32 %v1744, %v1912
        %1914 = vmatmul.bf16.gmra.mxu0 %v1389
        %v1915 = vpop.f32.mrf.mxu0
        %v1916 = vadd.f32 %v1747, %v1915
        %v1917 = vpop.f32.mrf.mxu0
        %v1918 = vadd.f32 %v1749, %v1917
        %1919 = vmatmul.bf16.gmra.mxu0 %v1391
        %v1920 = vpop.f32.mrf.mxu0
        %v1921 = vadd.f32 %v1752, %v1920
        %v1922 = vpop.f32.mrf.mxu0
        %v1923 = vadd.f32 %v1754, %v1922
        %1924 = vmatmul.bf16.gmra.mxu0 %v1393
        %v1925 = vpop.f32.mrf.mxu0
        %v1926 = vadd.f32 %v1757, %v1925
        %v1927 = vpop.f32.mrf.mxu0
        %v1928 = vadd.f32 %v1759, %v1927
        %1929 = vdwg.mxu0
        %1930 = vmatpush.bf16.msra.mxu0 %v1543
        %1931 = vmatpush.bf16.msra.mxu0 %v1541
        %1932 = vmatpush.bf16.msra.mxu0 %v1539
        %1933 = vmatpush.bf16.msra.mxu0 %v1537
        %1934 = vmatpush.bf16.msra.mxu0 %v1535
        %1935 = vmatpush.bf16.msra.mxu0 %v1533
        %1936 = vmatpush.bf16.msra.mxu0 %v1531
        %1937 = vmatpush.bf16.msra.mxu0 %v1529
        %1938 = vmatmul.bf16.gmra.mxu0 %v1330
        %v1939 = vpop.f32.mrf.mxu0
        %v1940 = vadd.f32 %v1429, %v1939
        %v1941 = vpop.f32.mrf.mxu0
        %v1942 = vadd.f32 %v1429, %v1941
        %1943 = vmatmul.bf16.gmra.mxu0 %v1332
        %v1944 = vpop.f32.mrf.mxu0
        %v1945 = vadd.f32 %v1429, %v1944
        %v1946 = vpop.f32.mrf.mxu0
        %v1947 = vadd.f32 %v1429, %v1946
        %1948 = vmatmul.bf16.gmra.mxu0 %v1334
        %v1949 = vpop.f32.mrf.mxu0
        %v1950 = vadd.f32 %v1429, %v1949
        %v1951 = vpop.f32.mrf.mxu0
        %v1952 = vadd.f32 %v1429, %v1951
        %1953 = vmatmul.bf16.gmra.mxu0 %v1336
        %v1954 = vpop.f32.mrf.mxu0
        %v1955 = vadd.f32 %v1429, %v1954
        %v1956 = vpop.f32.mrf.mxu0
        %v1957 = vadd.f32 %v1429, %v1956
        %1958 = vmatmul.bf16.gmra.mxu0 %v1338
        %v1959 = vpop.f32.mrf.mxu0
        %v1960 = vadd.f32 %v1429, %v1959
        %v1961 = vpop.f32.mrf.mxu0
        %v1962 = vadd.f32 %v1429, %v1961
        %1963 = vmatmul.bf16.gmra.mxu0 %v1340
        %v1964 = vpop.f32.mrf.mxu0
        %v1965 = vadd.f32 %v1429, %v1964
        %v1966 = vpop.f32.mrf.mxu0
        %v1967 = vadd.f32 %v1429, %v1966
        %1968 = vmatmul.bf16.gmra.mxu0 %v1342
        %v1969 = vpop.f32.mrf.mxu0
        %v1970 = vadd.f32 %v1429, %v1969
        %v1971 = vpop.f32.mrf.mxu0
        %v1972 = vadd.f32 %v1429, %v1971
        %1973 = vmatmul.bf16.gmra.mxu0 %v1344
        %v1974 = vpop.f32.mrf.mxu0
        %v1975 = vadd.f32 %v1429, %v1974
        %v1976 = vpop.f32.mrf.mxu0
        %v1977 = vadd.f32 %v1429, %v1976
        %1978 = vmatmul.bf16.gmra.mxu0 %v1346
        %v1979 = vpop.f32.mrf.mxu0
        %v1980 = vadd.f32 %v1429, %v1979
        %v1981 = vpop.f32.mrf.mxu0
        %v1982 = vadd.f32 %v1429, %v1981
        %1983 = vmatmul.bf16.gmra.mxu0 %v1348
        %v1984 = vpop.f32.mrf.mxu0
        %v1985 = vadd.f32 %v1429, %v1984
        %v1986 = vpop.f32.mrf.mxu0
        %v1987 = vadd.f32 %v1429, %v1986
        %1988 = vmatmul.bf16.gmra.mxu0 %v1350
        %v1989 = vpop.f32.mrf.mxu0
        %v1990 = vadd.f32 %v1429, %v1989
        %v1991 = vpop.f32.mrf.mxu0
        %v1992 = vadd.f32 %v1429, %v1991
        %1993 = vmatmul.bf16.gmra.mxu0 %v1352
        %v1994 = vpop.f32.mrf.mxu0
        %v1995 = vadd.f32 %v1429, %v1994
        %v1996 = vpop.f32.mrf.mxu0
        %v1997 = vadd.f32 %v1429, %v1996
        %1998 = vmatmul.bf16.gmra.mxu0 %v1354
        %v1999 = vpop.f32.mrf.mxu0
        %v2000 = vadd.f32 %v1429, %v1999
        %v2001 = vpop.f32.mrf.mxu0
        %v2002 = vadd.f32 %v1429, %v2001
        %2003 = vmatmul.bf16.gmra.mxu0 %v1356
        %v2004 = vpop.f32.mrf.mxu0
        %v2005 = vadd.f32 %v1429, %v2004
        %v2006 = vpop.f32.mrf.mxu0
        %v2007 = vadd.f32 %v1429, %v2006
        %2008 = vmatmul.bf16.gmra.mxu0 %v1358
        %v2009 = vpop.f32.mrf.mxu0
        %v2010 = vadd.f32 %v1429, %v2009
        %v2011 = vpop.f32.mrf.mxu0
        %v2012 = vadd.f32 %v1429, %v2011
        %2013 = vmatmul.bf16.gmra.mxu0 %v1360
        %v2014 = vpop.f32.mrf.mxu0
        %v2015 = vadd.f32 %v1429, %v2014
        %v2016 = vpop.f32.mrf.mxu0
        %v2017 = vadd.f32 %v1429, %v2016
        %2018 = vmatmul.bf16.gmra.mxu0 %v1362
        %v2019 = vpop.f32.mrf.mxu0
        %v2020 = vadd.f32 %v1429, %v2019
        %v2021 = vpop.f32.mrf.mxu0
        %v2022 = vadd.f32 %v1429, %v2021
        %2023 = vmatmul.bf16.gmra.mxu0 %v1364
        %v2024 = vpop.f32.mrf.mxu0
        %v2025 = vadd.f32 %v1429, %v2024
        %v2026 = vpop.f32.mrf.mxu0
        %v2027 = vadd.f32 %v1429, %v2026
        %2028 = vmatmul.bf16.gmra.mxu0 %v1366
        %v2029 = vpop.f32.mrf.mxu0
        %v2030 = vadd.f32 %v1429, %v2029
        %v2031 = vpop.f32.mrf.mxu0
        %v2032 = vadd.f32 %v1429, %v2031
        %2033 = vmatmul.bf16.gmra.mxu0 %v1368
        %v2034 = vpop.f32.mrf.mxu0
        %v2035 = vadd.f32 %v1429, %v2034
        %v2036 = vpop.f32.mrf.mxu0
        %v2037 = vadd.f32 %v1429, %v2036
        %2038 = vmatmul.bf16.gmra.mxu0 %v1370
        %v2039 = vpop.f32.mrf.mxu0
        %v2040 = vadd.f32 %v1429, %v2039
        %v2041 = vpop.f32.mrf.mxu0
        %v2042 = vadd.f32 %v1429, %v2041
        %2043 = vmatmul.bf16.gmra.mxu0 %v1372
        %v2044 = vpop.f32.mrf.mxu0
        %v2045 = vadd.f32 %v1429, %v2044
        %v2046 = vpop.f32.mrf.mxu0
        %v2047 = vadd.f32 %v1429, %v2046
        %2048 = vmatmul.bf16.gmra.mxu0 %v1374
        %v2049 = vpop.f32.mrf.mxu0
        %v2050 = vadd.f32 %v1429, %v2049
        %v2051 = vpop.f32.mrf.mxu0
        %v2052 = vadd.f32 %v1429, %v2051
        %2053 = vmatmul.bf16.gmra.mxu0 %v1376
        %v2054 = vpop.f32.mrf.mxu0
        %v2055 = vadd.f32 %v1429, %v2054
        %v2056 = vpop.f32.mrf.mxu0
        %v2057 = vadd.f32 %v1429, %v2056
        %2058 = vmatmul.bf16.gmra.mxu0 %v1378
        %v2059 = vpop.f32.mrf.mxu0
        %v2060 = vadd.f32 %v1429, %v2059
        %v2061 = vpop.f32.mrf.mxu0
        %v2062 = vadd.f32 %v1429, %v2061
        %2063 = vmatmul.bf16.gmra.mxu0 %v1380
        %v2064 = vpop.f32.mrf.mxu0
        %v2065 = vadd.f32 %v1429, %v2064
        %v2066 = vpop.f32.mrf.mxu0
        %v2067 = vadd.f32 %v1429, %v2066
        %2068 = vmatmul.bf16.gmra.mxu0 %v1382
        %v2069 = vpop.f32.mrf.mxu0
        %v2070 = vadd.f32 %v1429, %v2069
        %v2071 = vpop.f32.mrf.mxu0
        %v2072 = vadd.f32 %v1429, %v2071
        %2073 = vmatmul.bf16.gmra.mxu0 %v1384
        %v2074 = vpop.f32.mrf.mxu0
        %v2075 = vadd.f32 %v1429, %v2074
        %v2076 = vpop.f32.mrf.mxu0
        %v2077 = vadd.f32 %v1429, %v2076
        %2078 = vmatmul.bf16.gmra.mxu0 %v1386
        %v2079 = vpop.f32.mrf.mxu0
        %v2080 = vadd.f32 %v1429, %v2079
        %v2081 = vpop.f32.mrf.mxu0
        %v2082 = vadd.f32 %v1429, %v2081
        %2083 = vmatmul.bf16.gmra.mxu0 %v1388
        %v2084 = vpop.f32.mrf.mxu0
        %v2085 = vadd.f32 %v1429, %v2084
        %v2086 = vpop.f32.mrf.mxu0
        %v2087 = vadd.f32 %v1429, %v2086
        %2088 = vmatmul.bf16.gmra.mxu0 %v1390
        %v2089 = vpop.f32.mrf.mxu0
        %v2090 = vadd.f32 %v1429, %v2089
        %v2091 = vpop.f32.mrf.mxu0
        %v2092 = vadd.f32 %v1429, %v2091
        %2093 = vmatmul.bf16.gmra.mxu0 %v1392
        %v2094 = vpop.f32.mrf.mxu0
        %v2095 = vadd.f32 %v1429, %v2094
        %v2096 = vpop.f32.mrf.mxu0
        %v2097 = vadd.f32 %v1429, %v2096
        %2098 = vdwg.mxu0
        %2099 = vmatpush.bf16.msra.mxu0 %v1559
        %2100 = vmatpush.bf16.msra.mxu0 %v1557
        %2101 = vmatpush.bf16.msra.mxu0 %v1555
        %2102 = vmatpush.bf16.msra.mxu0 %v1553
        %2103 = vmatpush.bf16.msra.mxu0 %v1551
        %2104 = vmatpush.bf16.msra.mxu0 %v1549
        %2105 = vmatpush.bf16.msra.mxu0 %v1547
        %2106 = vmatpush.bf16.msra.mxu0 %v1545
        %2107 = vmatmul.bf16.gmra.mxu0 %v1331
        %v2108 = vpop.f32.mrf.mxu0
        %v2109 = vadd.f32 %v1940, %v2108
        %v2110 = vpop.f32.mrf.mxu0
        %v2111 = vadd.f32 %v1942, %v2110
        %2112 = vmatmul.bf16.gmra.mxu0 %v1333
        %v2113 = vpop.f32.mrf.mxu0
        %v2114 = vadd.f32 %v1945, %v2113
        %v2115 = vpop.f32.mrf.mxu0
        %v2116 = vadd.f32 %v1947, %v2115
        %2117 = vmatmul.bf16.gmra.mxu0 %v1335
        %v2118 = vpop.f32.mrf.mxu0
        %v2119 = vadd.f32 %v1950, %v2118
        %v2120 = vpop.f32.mrf.mxu0
        %v2121 = vadd.f32 %v1952, %v2120
        %2122 = vmatmul.bf16.gmra.mxu0 %v1337
        %v2123 = vpop.f32.mrf.mxu0
        %v2124 = vadd.f32 %v1955, %v2123
        %v2125 = vpop.f32.mrf.mxu0
        %v2126 = vadd.f32 %v1957, %v2125
        %2127 = vmatmul.bf16.gmra.mxu0 %v1339
        %v2128 = vpop.f32.mrf.mxu0
        %v2129 = vadd.f32 %v1960, %v2128
        %v2130 = vpop.f32.mrf.mxu0
        %v2131 = vadd.f32 %v1962, %v2130
        %2132 = vmatmul.bf16.gmra.mxu0 %v1341
        %v2133 = vpop.f32.mrf.mxu0
        %v2134 = vadd.f32 %v1965, %v2133
        %v2135 = vpop.f32.mrf.mxu0
        %v2136 = vadd.f32 %v1967, %v2135
        %2137 = vmatmul.bf16.gmra.mxu0 %v1343
        %v2138 = vpop.f32.mrf.mxu0
        %v2139 = vadd.f32 %v1970, %v2138
        %v2140 = vpop.f32.mrf.mxu0
        %v2141 = vadd.f32 %v1972, %v2140
        %2142 = vmatmul.bf16.gmra.mxu0 %v1345
        %v2143 = vpop.f32.mrf.mxu0
        %v2144 = vadd.f32 %v1975, %v2143
        %v2145 = vpop.f32.mrf.mxu0
        %v2146 = vadd.f32 %v1977, %v2145
        %2147 = vmatmul.bf16.gmra.mxu0 %v1347
        %v2148 = vpop.f32.mrf.mxu0
        %v2149 = vadd.f32 %v1980, %v2148
        %v2150 = vpop.f32.mrf.mxu0
        %v2151 = vadd.f32 %v1982, %v2150
        %2152 = vmatmul.bf16.gmra.mxu0 %v1349
        %v2153 = vpop.f32.mrf.mxu0
        %v2154 = vadd.f32 %v1985, %v2153
        %v2155 = vpop.f32.mrf.mxu0
        %v2156 = vadd.f32 %v1987, %v2155
        %2157 = vmatmul.bf16.gmra.mxu0 %v1351
        %v2158 = vpop.f32.mrf.mxu0
        %v2159 = vadd.f32 %v1990, %v2158
        %v2160 = vpop.f32.mrf.mxu0
        %v2161 = vadd.f32 %v1992, %v2160
        %2162 = vmatmul.bf16.gmra.mxu0 %v1353
        %v2163 = vpop.f32.mrf.mxu0
        %v2164 = vadd.f32 %v1995, %v2163
        %v2165 = vpop.f32.mrf.mxu0
        %v2166 = vadd.f32 %v1997, %v2165
        %2167 = vmatmul.bf16.gmra.mxu0 %v1355
        %v2168 = vpop.f32.mrf.mxu0
        %v2169 = vadd.f32 %v2000, %v2168
        %v2170 = vpop.f32.mrf.mxu0
        %v2171 = vadd.f32 %v2002, %v2170
        %2172 = vmatmul.bf16.gmra.mxu0 %v1357
        %v2173 = vpop.f32.mrf.mxu0
        %v2174 = vadd.f32 %v2005, %v2173
        %v2175 = vpop.f32.mrf.mxu0
        %v2176 = vadd.f32 %v2007, %v2175
        %2177 = vmatmul.bf16.gmra.mxu0 %v1359
        %v2178 = vpop.f32.mrf.mxu0
        %v2179 = vadd.f32 %v2010, %v2178
        %v2180 = vpop.f32.mrf.mxu0
        %v2181 = vadd.f32 %v2012, %v2180
        %2182 = vmatmul.bf16.gmra.mxu0 %v1361
        %v2183 = vpop.f32.mrf.mxu0
        %v2184 = vadd.f32 %v2015, %v2183
        %v2185 = vpop.f32.mrf.mxu0
        %v2186 = vadd.f32 %v2017, %v2185
        %2187 = vmatmul.bf16.gmra.mxu0 %v1363
        %v2188 = vpop.f32.mrf.mxu0
        %v2189 = vadd.f32 %v2020, %v2188
        %v2190 = vpop.f32.mrf.mxu0
        %v2191 = vadd.f32 %v2022, %v2190
        %2192 = vmatmul.bf16.gmra.mxu0 %v1365
        %v2193 = vpop.f32.mrf.mxu0
        %v2194 = vadd.f32 %v2025, %v2193
        %v2195 = vpop.f32.mrf.mxu0
        %v2196 = vadd.f32 %v2027, %v2195
        %2197 = vmatmul.bf16.gmra.mxu0 %v1367
        %v2198 = vpop.f32.mrf.mxu0
        %v2199 = vadd.f32 %v2030, %v2198
        %v2200 = vpop.f32.mrf.mxu0
        %v2201 = vadd.f32 %v2032, %v2200
        %2202 = vmatmul.bf16.gmra.mxu0 %v1369
        %v2203 = vpop.f32.mrf.mxu0
        %v2204 = vadd.f32 %v2035, %v2203
        %v2205 = vpop.f32.mrf.mxu0
        %v2206 = vadd.f32 %v2037, %v2205
        %2207 = vmatmul.bf16.gmra.mxu0 %v1371
        %v2208 = vpop.f32.mrf.mxu0
        %v2209 = vadd.f32 %v2040, %v2208
        %v2210 = vpop.f32.mrf.mxu0
        %v2211 = vadd.f32 %v2042, %v2210
        %2212 = vmatmul.bf16.gmra.mxu0 %v1373
        %v2213 = vpop.f32.mrf.mxu0
        %v2214 = vadd.f32 %v2045, %v2213
        %v2215 = vpop.f32.mrf.mxu0
        %v2216 = vadd.f32 %v2047, %v2215
        %2217 = vmatmul.bf16.gmra.mxu0 %v1375
        %v2218 = vpop.f32.mrf.mxu0
        %v2219 = vadd.f32 %v2050, %v2218
        %v2220 = vpop.f32.mrf.mxu0
        %v2221 = vadd.f32 %v2052, %v2220
        %2222 = vmatmul.bf16.gmra.mxu0 %v1377
        %v2223 = vpop.f32.mrf.mxu0
        %v2224 = vadd.f32 %v2055, %v2223
        %v2225 = vpop.f32.mrf.mxu0
        %v2226 = vadd.f32 %v2057, %v2225
        %2227 = vmatmul.bf16.gmra.mxu0 %v1379
        %v2228 = vpop.f32.mrf.mxu0
        %v2229 = vadd.f32 %v2060, %v2228
        %v2230 = vpop.f32.mrf.mxu0
        %v2231 = vadd.f32 %v2062, %v2230
        %2232 = vmatmul.bf16.gmra.mxu0 %v1381
        %v2233 = vpop.f32.mrf.mxu0
        %v2234 = vadd.f32 %v2065, %v2233
        %v2235 = vpop.f32.mrf.mxu0
        %v2236 = vadd.f32 %v2067, %v2235
        %2237 = vmatmul.bf16.gmra.mxu0 %v1383
        %v2238 = vpop.f32.mrf.mxu0
        %v2239 = vadd.f32 %v2070, %v2238
        %v2240 = vpop.f32.mrf.mxu0
        %v2241 = vadd.f32 %v2072, %v2240
        %2242 = vmatmul.bf16.gmra.mxu0 %v1385
        %v2243 = vpop.f32.mrf.mxu0
        %v2244 = vadd.f32 %v2075, %v2243
        %v2245 = vpop.f32.mrf.mxu0
        %v2246 = vadd.f32 %v2077, %v2245
        %2247 = vmatmul.bf16.gmra.mxu0 %v1387
        %v2248 = vpop.f32.mrf.mxu0
        %v2249 = vadd.f32 %v2080, %v2248
        %v2250 = vpop.f32.mrf.mxu0
        %v2251 = vadd.f32 %v2082, %v2250
        %2252 = vmatmul.bf16.gmra.mxu0 %v1389
        %v2253 = vpop.f32.mrf.mxu0
        %v2254 = vadd.f32 %v2085, %v2253
        %v2255 = vpop.f32.mrf.mxu0
        %v2256 = vadd.f32 %v2087, %v2255
        %2257 = vmatmul.bf16.gmra.mxu0 %v1391
        %v2258 = vpop.f32.mrf.mxu0
        %v2259 = vadd.f32 %v2090, %v2258
        %v2260 = vpop.f32.mrf.mxu0
        %v2261 = vadd.f32 %v2092, %v2260
        %2262 = vmatmul.bf16.gmra.mxu0 %v1393
        %v2263 = vpop.f32.mrf.mxu0
        %v2264 = vadd.f32 %v2095, %v2263
        %v2265 = vpop.f32.mrf.mxu0
        %v2266 = vadd.f32 %v2097, %v2265
        %2267 = vdwg.mxu0
        %v2268 = vmul.f32 %v1771, 0.02
        %v2269 = vmul.f32 %v2109, 0.02
        %v2270 = vmul.f32 %v1773, 0.02
        %v2271 = vmul.f32 %v2111, 0.02
        %v2272 = vmul.f32 %v1776, 0.02
        %v2273 = vmul.f32 %v2114, 0.02
        %v2274 = vmul.f32 %v1778, 0.02
        %v2275 = vmul.f32 %v2116, 0.02
        %v2276 = vmul.f32 %v1781, 0.02
        %v2277 = vmul.f32 %v2119, 0.02
        %v2278 = vmul.f32 %v1783, 0.02
        %v2279 = vmul.f32 %v2121, 0.02
        %v2280 = vmul.f32 %v1786, 0.02
        %v2281 = vmul.f32 %v2124, 0.02
        %v2282 = vmul.f32 %v1788, 0.02
        %v2283 = vmul.f32 %v2126, 0.02
        %v2284 = vmul.f32 %v1791, 0.02
        %v2285 = vmul.f32 %v2129, 0.02
        %v2286 = vmul.f32 %v1793, 0.02
        %v2287 = vmul.f32 %v2131, 0.02
        %v2288 = vmul.f32 %v1796, 0.02
        %v2289 = vmul.f32 %v2134, 0.02
        %v2290 = vmul.f32 %v1798, 0.02
        %v2291 = vmul.f32 %v2136, 0.02
        %v2292 = vmul.f32 %v1801, 0.02
        %v2293 = vmul.f32 %v2139, 0.02
        %v2294 = vmul.f32 %v1803, 0.02
        %v2295 = vmul.f32 %v2141, 0.02
        %v2296 = vmul.f32 %v1806, 0.02
        %v2297 = vmul.f32 %v2144, 0.02
        %v2298 = vmul.f32 %v1808, 0.02
        %v2299 = vmul.f32 %v2146, 0.02
        %v2300 = vmul.f32 %v1811, 0.02
        %v2301 = vmul.f32 %v2149, 0.02
        %v2302 = vmul.f32 %v1813, 0.02
        %v2303 = vmul.f32 %v2151, 0.02
        %v2304 = vmul.f32 %v1816, 0.02
        %v2305 = vmul.f32 %v2154, 0.02
        %v2306 = vmul.f32 %v1818, 0.02
        %v2307 = vmul.f32 %v2156, 0.02
        %v2308 = vmul.f32 %v1821, 0.02
        %v2309 = vmul.f32 %v2159, 0.02
        %v2310 = vmul.f32 %v1823, 0.02
        %v2311 = vmul.f32 %v2161, 0.02
        %v2312 = vmul.f32 %v1826, 0.02
        %v2313 = vmul.f32 %v2164, 0.02
        %v2314 = vmul.f32 %v1828, 0.02
        %v2315 = vmul.f32 %v2166, 0.02
        %v2316 = vmul.f32 %v1831, 0.02
        %v2317 = vmul.f32 %v2169, 0.02
        %v2318 = vmul.f32 %v1833, 0.02
        %v2319 = vmul.f32 %v2171, 0.02
        %v2320 = vmul.f32 %v1836, 0.02
        %v2321 = vmul.f32 %v2174, 0.02
        %v2322 = vmul.f32 %v1838, 0.02
        %v2323 = vmul.f32 %v2176, 0.02
        %v2324 = vmul.f32 %v1841, 0.02
        %v2325 = vmul.f32 %v2179, 0.02
        %v2326 = vmul.f32 %v1843, 0.02
        %v2327 = vmul.f32 %v2181, 0.02
        %v2328 = vmul.f32 %v1846, 0.02
        %v2329 = vmul.f32 %v2184, 0.02
        %v2330 = vmul.f32 %v1848, 0.02
        %v2331 = vmul.f32 %v2186, 0.02
        %v2332 = vmul.f32 %v1851, 0.02
        %v2333 = vmul.f32 %v2189, 0.02
        %v2334 = vmul.f32 %v1853, 0.02
        %v2335 = vmul.f32 %v2191, 0.02
        %v2336 = vmul.f32 %v1856, 0.02
        %v2337 = vmul.f32 %v2194, 0.02
        %v2338 = vmul.f32 %v1858, 0.02
        %v2339 = vmul.f32 %v2196, 0.02
        %v2340 = vmul.f32 %v1861, 0.02
        %v2341 = vmul.f32 %v2199, 0.02
        %v2342 = vmul.f32 %v1863, 0.02
        %v2343 = vmul.f32 %v2201, 0.02
        %v2344 = vmul.f32 %v1866, 0.02
        %v2345 = vmul.f32 %v2204, 0.02
        %v2346 = vmul.f32 %v1868, 0.02
        %v2347 = vmul.f32 %v2206, 0.02
        %v2348 = vmul.f32 %v1871, 0.02
        %v2349 = vmul.f32 %v2209, 0.02
        %v2350 = vmul.f32 %v1873, 0.02
        %v2351 = vmul.f32 %v2211, 0.02
        %v2352 = vmul.f32 %v1876, 0.02
        %v2353 = vmul.f32 %v2214, 0.02
        %v2354 = vmul.f32 %v1878, 0.02
        %v2355 = vmul.f32 %v2216, 0.02
        %v2356 = vmul.f32 %v1881, 0.02
        %v2357 = vmul.f32 %v2219, 0.02
        %v2358 = vmul.f32 %v1883, 0.02
        %v2359 = vmul.f32 %v2221, 0.02
        %v2360 = vmul.f32 %v1886, 0.02
        %v2361 = vmul.f32 %v2224, 0.02
        %v2362 = vmul.f32 %v1888, 0.02
        %v2363 = vmul.f32 %v2226, 0.02
        %v2364 = vmul.f32 %v1891, 0.02
        %v2365 = vmul.f32 %v2229, 0.02
        %v2366 = vmul.f32 %v1893, 0.02
        %v2367 = vmul.f32 %v2231, 0.02
        %v2368 = vmul.f32 %v1896, 0.02
        %v2369 = vmul.f32 %v2234, 0.02
        %v2370 = vmul.f32 %v1898, 0.02
        %v2371 = vmul.f32 %v2236, 0.02
        %v2372 = vmul.f32 %v1901, 0.02
        %v2373 = vmul.f32 %v2239, 0.02
        %v2374 = vmul.f32 %v1903, 0.02
        %v2375 = vmul.f32 %v2241, 0.02
        %v2376 = vmul.f32 %v1906, 0.02
        %v2377 = vmul.f32 %v2244, 0.02
        %v2378 = vmul.f32 %v1908, 0.02
        %v2379 = vmul.f32 %v2246, 0.02
        %v2380 = vmul.f32 %v1911, 0.02
        %v2381 = vmul.f32 %v2249, 0.02
        %v2382 = vmul.f32 %v1913, 0.02
        %v2383 = vmul.f32 %v2251, 0.02
        %v2384 = vmul.f32 %v1916, 0.02
        %v2385 = vmul.f32 %v2254, 0.02
        %v2386 = vmul.f32 %v1918, 0.02
        %v2387 = vmul.f32 %v2256, 0.02
        %v2388 = vmul.f32 %v1921, 0.02
        %v2389 = vmul.f32 %v2259, 0.02
        %v2390 = vmul.f32 %v1923, 0.02
        %v2391 = vmul.f32 %v2261, 0.02
        %v2392 = vmul.f32 %v1926, 0.02
        %v2393 = vmul.f32 %v2264, 0.02
        %v2394 = vmul.f32 %v1928, 0.02
        %v2395 = vmul.f32 %v2266, 0.02
        %v2396 = vmax.f32 %v1771, %v2268
        %v2397 = vmax.f32 %v2109, %v2269
        %v2398 = vmax.f32 %v1773, %v2270
        %v2399 = vmax.f32 %v2111, %v2271
        %v2400 = vmax.f32 %v1776, %v2272
        %v2401 = vmax.f32 %v2114, %v2273
        %v2402 = vmax.f32 %v1778, %v2274
        %v2403 = vmax.f32 %v2116, %v2275
        %v2404 = vmax.f32 %v1781, %v2276
        %v2405 = vmax.f32 %v2119, %v2277
        %v2406 = vmax.f32 %v1783, %v2278
        %v2407 = vmax.f32 %v2121, %v2279
        %v2408 = vmax.f32 %v1786, %v2280
        %v2409 = vmax.f32 %v2124, %v2281
        %v2410 = vmax.f32 %v1788, %v2282
        %v2411 = vmax.f32 %v2126, %v2283
        %v2412 = vmax.f32 %v1791, %v2284
        %v2413 = vmax.f32 %v2129, %v2285
        %v2414 = vmax.f32 %v1793, %v2286
        %v2415 = vmax.f32 %v2131, %v2287
        %v2416 = vmax.f32 %v1796, %v2288
        %v2417 = vmax.f32 %v2134, %v2289
        %v2418 = vmax.f32 %v1798, %v2290
        %v2419 = vmax.f32 %v2136, %v2291
        %v2420 = vmax.f32 %v1801, %v2292
        %v2421 = vmax.f32 %v2139, %v2293
        %v2422 = vmax.f32 %v1803, %v2294
        %v2423 = vmax.f32 %v2141, %v2295
        %v2424 = vmax.f32 %v1806, %v2296
        %v2425 = vmax.f32 %v2144, %v2297
        %v2426 = vmax.f32 %v1808, %v2298
        %v2427 = vmax.f32 %v2146, %v2299
        %v2428 = vmax.f32 %v1811, %v2300
        %v2429 = vmax.f32 %v2149, %v2301
        %v2430 = vmax.f32 %v1813, %v2302
        %v2431 = vmax.f32 %v2151, %v2303
        %v2432 = vmax.f32 %v1816, %v2304
        %v2433 = vmax.f32 %v2154, %v2305
        %v2434 = vmax.f32 %v1818, %v2306
        %v2435 = vmax.f32 %v2156, %v2307
        %v2436 = vmax.f32 %v1821, %v2308
        %v2437 = vmax.f32 %v2159, %v2309
        %v2438 = vmax.f32 %v1823, %v2310
        %v2439 = vmax.f32 %v2161, %v2311
        %v2440 = vmax.f32 %v1826, %v2312
        %v2441 = vmax.f32 %v2164, %v2313
        %v2442 = vmax.f32 %v1828, %v2314
        %v2443 = vmax.f32 %v2166, %v2315
        %v2444 = vmax.f32 %v1831, %v2316
        %v2445 = vmax.f32 %v2169, %v2317
        %v2446 = vmax.f32 %v1833, %v2318
        %v2447 = vmax.f32 %v2171, %v2319
        %v2448 = vmax.f32 %v1836, %v2320
        %v2449 = vmax.f32 %v2174, %v2321
        %v2450 = vmax.f32 %v1838, %v2322
        %v2451 = vmax.f32 %v2176, %v2323
        %v2452 = vmax.f32 %v1841, %v2324
        %v2453 = vmax.f32 %v2179, %v2325
        %v2454 = vmax.f32 %v1843, %v2326
        %v2455 = vmax.f32 %v2181, %v2327
        %v2456 = vmax.f32 %v1846, %v2328
        %v2457 = vmax.f32 %v2184, %v2329
        %v2458 = vmax.f32 %v1848, %v2330
        %v2459 = vmax.f32 %v2186, %v2331
        %v2460 = vmax.f32 %v1851, %v2332
        %v2461 = vmax.f32 %v2189, %v2333
        %v2462 = vmax.f32 %v1853, %v2334
        %v2463 = vmax.f32 %v2191, %v2335
        %v2464 = vmax.f32 %v1856, %v2336
        %v2465 = vmax.f32 %v2194, %v2337
        %v2466 = vmax.f32 %v1858, %v2338
        %v2467 = vmax.f32 %v2196, %v2339
        %v2468 = vmax.f32 %v1861, %v2340
        %v2469 = vmax.f32 %v2199, %v2341
        %v2470 = vmax.f32 %v1863, %v2342
        %v2471 = vmax.f32 %v2201, %v2343
        %v2472 = vmax.f32 %v1866, %v2344
        %v2473 = vmax.f32 %v2204, %v2345
        %v2474 = vmax.f32 %v1868, %v2346
        %v2475 = vmax.f32 %v2206, %v2347
        %v2476 = vmax.f32 %v1871, %v2348
        %v2477 = vmax.f32 %v2209, %v2349
        %v2478 = vmax.f32 %v1873, %v2350
        %v2479 = vmax.f32 %v2211, %v2351
        %v2480 = vmax.f32 %v1876, %v2352
        %v2481 = vmax.f32 %v2214, %v2353
        %v2482 = vmax.f32 %v1878, %v2354
        %v2483 = vmax.f32 %v2216, %v2355
        %v2484 = vmax.f32 %v1881, %v2356
        %v2485 = vmax.f32 %v2219, %v2357
        %v2486 = vmax.f32 %v1883, %v2358
        %v2487 = vmax.f32 %v2221, %v2359
        %v2488 = vmax.f32 %v1886, %v2360
        %v2489 = vmax.f32 %v2224, %v2361
        %v2490 = vmax.f32 %v1888, %v2362
        %v2491 = vmax.f32 %v2226, %v2363
        %v2492 = vmax.f32 %v1891, %v2364
        %v2493 = vmax.f32 %v2229, %v2365
        %v2494 = vmax.f32 %v1893, %v2366
        %v2495 = vmax.f32 %v2231, %v2367
        %v2496 = vmax.f32 %v1896, %v2368
        %v2497 = vmax.f32 %v2234, %v2369
        %v2498 = vmax.f32 %v1898, %v2370
        %v2499 = vmax.f32 %v2236, %v2371
        %v2500 = vmax.f32 %v1901, %v2372
        %v2501 = vmax.f32 %v2239, %v2373
        %v2502 = vmax.f32 %v1903, %v2374
        %v2503 = vmax.f32 %v2241, %v2375
        %v2504 = vmax.f32 %v1906, %v2376
        %v2505 = vmax.f32 %v2244, %v2377
        %v2506 = vmax.f32 %v1908, %v2378
        %v2507 = vmax.f32 %v2246, %v2379
        %v2508 = vmax.f32 %v1911, %v2380
        %v2509 = vmax.f32 %v2249, %v2381
        %v2510 = vmax.f32 %v1913, %v2382
        %v2511 = vmax.f32 %v2251, %v2383
        %v2512 = vmax.f32 %v1916, %v2384
        %v2513 = vmax.f32 %v2254, %v2385
        %v2514 = vmax.f32 %v1918, %v2386
        %v2515 = vmax.f32 %v2256, %v2387
        %v2516 = vmax.f32 %v1921, %v2388
        %v2517 = vmax.f32 %v2259, %v2389
        %v2518 = vmax.f32 %v1923, %v2390
        %v2519 = vmax.f32 %v2261, %v2391
        %v2520 = vmax.f32 %v1926, %v2392
        %v2521 = vmax.f32 %v2264, %v2393
        %v2522 = vmax.f32 %v1928, %v2394
        %v2523 = vmax.f32 %v2266, %v2395
        %v2524 = vpack.c.bf16 %v2398, %v2396
        %v2525 = vpack.c.bf16 %v2399, %v2397
        %v2526 = vpack.c.bf16 %v2402, %v2400
        %v2527 = vpack.c.bf16 %v2403, %v2401
        %v2528 = vpack.c.bf16 %v2406, %v2404
        %v2529 = vpack.c.bf16 %v2407, %v2405
        %v2530 = vpack.c.bf16 %v2410, %v2408
        %v2531 = vpack.c.bf16 %v2411, %v2409
        %v2532 = vpack.c.bf16 %v2414, %v2412
        %v2533 = vpack.c.bf16 %v2415, %v2413
        %v2534 = vpack.c.bf16 %v2418, %v2416
        %v2535 = vpack.c.bf16 %v2419, %v2417
        %v2536 = vpack.c.bf16 %v2422, %v2420
        %v2537 = vpack.c.bf16 %v2423, %v2421
        %v2538 = vpack.c.bf16 %v2426, %v2424
        %v2539 = vpack.c.bf16 %v2427, %v2425
        %v2540 = vpack.c.bf16 %v2430, %v2428
        %v2541 = vpack.c.bf16 %v2431, %v2429
        %v2542 = vpack.c.bf16 %v2434, %v2432
        %v2543 = vpack.c.bf16 %v2435, %v2433
        %v2544 = vpack.c.bf16 %v2438, %v2436
        %v2545 = vpack.c.bf16 %v2439, %v2437
        %v2546 = vpack.c.bf16 %v2442, %v2440
        %v2547 = vpack.c.bf16 %v2443, %v2441
        %v2548 = vpack.c.bf16 %v2446, %v2444
        %v2549 = vpack.c.bf16 %v2447, %v2445
        %v2550 = vpack.c.bf16 %v2450, %v2448
        %v2551 = vpack.c.bf16 %v2451, %v2449
        %v2552 = vpack.c.bf16 %v2454, %v2452
        %v2553 = vpack.c.bf16 %v2455, %v2453
        %v2554 = vpack.c.bf16 %v2458, %v2456
        %v2555 = vpack.c.bf16 %v2459, %v2457
        %v2556 = vpack.c.bf16 %v2462, %v2460
        %v2557 = vpack.c.bf16 %v2463, %v2461
        %v2558 = vpack.c.bf16 %v2466, %v2464
        %v2559 = vpack.c.bf16 %v2467, %v2465
        %v2560 = vpack.c.bf16 %v2470, %v2468
        %v2561 = vpack.c.bf16 %v2471, %v2469
        %v2562 = vpack.c.bf16 %v2474, %v2472
        %v2563 = vpack.c.bf16 %v2475, %v2473
        %v2564 = vpack.c.bf16 %v2478, %v2476
        %v2565 = vpack.c.bf16 %v2479, %v2477
        %v2566 = vpack.c.bf16 %v2482, %v2480
        %v2567 = vpack.c.bf16 %v2483, %v2481
        %v2568 = vpack.c.bf16 %v2486, %v2484
        %v2569 = vpack.c.bf16 %v2487, %v2485
        %v2570 = vpack.c.bf16 %v2490, %v2488
        %v2571 = vpack.c.bf16 %v2491, %v2489
        %v2572 = vpack.c.bf16 %v2494, %v2492
        %v2573 = vpack.c.bf16 %v2495, %v2493
        %v2574 = vpack.c.bf16 %v2498, %v2496
        %v2575 = vpack.c.bf16 %v2499, %v2497
        %v2576 = vpack.c.bf16 %v2502, %v2500
        %v2577 = vpack.c.bf16 %v2503, %v2501
        %v2578 = vpack.c.bf16 %v2506, %v2504
        %v2579 = vpack.c.bf16 %v2507, %v2505
        %v2580 = vpack.c.bf16 %v2510, %v2508
        %v2581 = vpack.c.bf16 %v2511, %v2509
        %v2582 = vpack.c.bf16 %v2514, %v2512
        %v2583 = vpack.c.bf16 %v2515, %v2513
        %v2584 = vpack.c.bf16 %v2518, %v2516
        %v2585 = vpack.c.bf16 %v2519, %v2517
        %v2586 = vpack.c.bf16 %v2522, %v2520
        %v2587 = vpack.c.bf16 %v2523, %v2521
        %v2588 = vld [vmem:[%s5] sm:$0xff]
        %v2589 = vld [vmem:[%s5 + $0x8] sm:$0xff]
        %v2590 = vld [vmem:[%s5 + $0x10] sm:$0xff]
        %v2591 = vld [vmem:[%s5 + $0x18] sm:$0xff]
        %v2592 = vld [vmem:[%s5 + $0x20] sm:$0xff]
        %v2593 = vld [vmem:[%s5 + $0x28] sm:$0xff]
        %v2594 = vld [vmem:[%s5 + $0x30] sm:$0xff]
        %v2595 = vld [vmem:[%s5 + $0x38] sm:$0xff]
        %v2596 = vld [vmem:[%s5 + $0x40] sm:$0xff]
        %v2597 = vld [vmem:[%s5 + $0x48] sm:$0xff]
        %v2598 = vld [vmem:[%s5 + $0x50] sm:$0xff]
        %v2599 = vld [vmem:[%s5 + $0x58] sm:$0xff]
        %v2600 = vld [vmem:[%s5 + $0x60] sm:$0xff]
        %v2601 = vld [vmem:[%s5 + $0x68] sm:$0xff]
        %v2602 = vld [vmem:[%s5 + $0x70] sm:$0xff]
        %v2603 = vld [vmem:[%s5 + $0x78] sm:$0xff]
        %v2604 = vld [vmem:[%s5 + $0x80] sm:$0xff]
        %v2605 = vld [vmem:[%s5 + $0x88] sm:$0xff]
        %v2606 = vld [vmem:[%s5 + $0x90] sm:$0xff]
        %v2607 = vld [vmem:[%s5 + $0x98] sm:$0xff]
        %v2608 = vld [vmem:[%s5 + $0xa0] sm:$0xff]
        %v2609 = vld [vmem:[%s5 + $0xa8] sm:$0xff]
        %v2610 = vld [vmem:[%s5 + $0xb0] sm:$0xff]
        %v2611 = vld [vmem:[%s5 + $0xb8] sm:$0xff]
        %v2612 = vld [vmem:[%s5 + $0xc0] sm:$0xff]
        %v2613 = vld [vmem:[%s5 + $0xc8] sm:$0xff]
        %v2614 = vld [vmem:[%s5 + $0xd0] sm:$0xff]
        %v2615 = vld [vmem:[%s5 + $0xd8] sm:$0xff]
        %v2616 = vld [vmem:[%s5 + $0xe0] sm:$0xff]
        %v2617 = vld [vmem:[%s5 + $0xe8] sm:$0xff]
        %v2618 = vld [vmem:[%s5 + $0xf0] sm:$0xff]
        %v2619 = vld [vmem:[%s5 + $0xf8] sm:$0xff]
        %v2620 = vld [vmem:[%s6] sm:$0x3]
        %v2622 = vperm.slane %v2620, 0
        %v2623 = vperm.slane %v2620, 1
        %v2658 = vunpack.c.l.b16 %v2588
        %v2659 = vunpack.c.h.b16 %v2588
        %v2660 = vunpack.c.l.b16 %v2589
        %v2661 = vunpack.c.h.b16 %v2589
        %v2662 = vunpack.c.l.b16 %v2590
        %v2663 = vunpack.c.h.b16 %v2590
        %v2664 = vunpack.c.l.b16 %v2591
        %v2665 = vunpack.c.h.b16 %v2591
        %v2666 = vunpack.c.l.b16 %v2592
        %v2667 = vunpack.c.h.b16 %v2592
        %v2668 = vunpack.c.l.b16 %v2593
        %v2669 = vunpack.c.h.b16 %v2593
        %v2670 = vunpack.c.l.b16 %v2594
        %v2671 = vunpack.c.h.b16 %v2594
        %v2672 = vunpack.c.l.b16 %v2595
        %v2673 = vunpack.c.h.b16 %v2595
        %v2674 = vunpack.c.l.b16 %v2596
        %v2675 = vunpack.c.h.b16 %v2596
        %v2676 = vunpack.c.l.b16 %v2597
        %v2677 = vunpack.c.h.b16 %v2597
        %v2678 = vunpack.c.l.b16 %v2598
        %v2679 = vunpack.c.h.b16 %v2598
        %v2680 = vunpack.c.l.b16 %v2599
        %v2681 = vunpack.c.h.b16 %v2599
        %v2682 = vunpack.c.l.b16 %v2600
        %v2683 = vunpack.c.h.b16 %v2600
        %v2684 = vunpack.c.l.b16 %v2601
        %v2685 = vunpack.c.h.b16 %v2601
        %v2686 = vunpack.c.l.b16 %v2602
        %v2687 = vunpack.c.h.b16 %v2602
        %v2688 = vunpack.c.l.b16 %v2603
        %v2689 = vunpack.c.h.b16 %v2603
        %v2690 = vunpack.c.l.b16 %v2604
        %v2691 = vunpack.c.h.b16 %v2604
        %v2692 = vunpack.c.l.b16 %v2605
        %v2693 = vunpack.c.h.b16 %v2605
        %v2694 = vunpack.c.l.b16 %v2606
        %v2695 = vunpack.c.h.b16 %v2606
        %v2696 = vunpack.c.l.b16 %v2607
        %v2697 = vunpack.c.h.b16 %v2607
        %v2698 = vunpack.c.l.b16 %v2608
        %v2699 = vunpack.c.h.b16 %v2608
        %v2700 = vunpack.c.l.b16 %v2609
        %v2701 = vunpack.c.h.b16 %v2609
        %v2702 = vunpack.c.l.b16 %v2610
        %v2703 = vunpack.c.h.b16 %v2610
        %v2704 = vunpack.c.l.b16 %v2611
        %v2705 = vunpack.c.h.b16 %v2611
        %v2706 = vunpack.c.l.b16 %v2612
        %v2707 = vunpack.c.h.b16 %v2612
        %v2708 = vunpack.c.l.b16 %v2613
        %v2709 = vunpack.c.h.b16 %v2613
        %v2710 = vunpack.c.l.b16 %v2614
        %v2711 = vunpack.c.h.b16 %v2614
        %v2712 = vunpack.c.l.b16 %v2615
        %v2713 = vunpack.c.h.b16 %v2615
        %v2714 = vunpack.c.l.b16 %v2616
        %v2715 = vunpack.c.h.b16 %v2616
        %v2716 = vunpack.c.l.b16 %v2617
        %v2717 = vunpack.c.h.b16 %v2617
        %v2718 = vunpack.c.l.b16 %v2618
        %v2719 = vunpack.c.h.b16 %v2618
        %v2720 = vunpack.c.l.b16 %v2619
        %v2721 = vunpack.c.h.b16 %v2619
        %v2722 = vpack.c.b16 %v2660, %v2658
        %v2723 = vpack.c.b16 %v2661, %v2659
        %v2724 = vpack.c.b16 %v2664, %v2662
        %v2725 = vpack.c.b16 %v2665, %v2663
        %v2726 = vpack.c.b16 %v2668, %v2666
        %v2727 = vpack.c.b16 %v2669, %v2667
        %v2728 = vpack.c.b16 %v2672, %v2670
        %v2729 = vpack.c.b16 %v2673, %v2671
        %v2730 = vpack.c.b16 %v2676, %v2674
        %v2731 = vpack.c.b16 %v2677, %v2675
        %v2732 = vpack.c.b16 %v2680, %v2678
        %v2733 = vpack.c.b16 %v2681, %v2679
        %v2734 = vpack.c.b16 %v2684, %v2682
        %v2735 = vpack.c.b16 %v2685, %v2683
        %v2736 = vpack.c.b16 %v2688, %v2686
        %v2737 = vpack.c.b16 %v2689, %v2687
        %v2738 = vpack.c.b16 %v2692, %v2690
        %v2739 = vpack.c.b16 %v2693, %v2691
        %v2740 = vpack.c.b16 %v2696, %v2694
        %v2741 = vpack.c.b16 %v2697, %v2695
        %v2742 = vpack.c.b16 %v2700, %v2698
        %v2743 = vpack.c.b16 %v2701, %v2699
        %v2744 = vpack.c.b16 %v2704, %v2702
        %v2745 = vpack.c.b16 %v2705, %v2703
        %v2746 = vpack.c.b16 %v2708, %v2706
        %v2747 = vpack.c.b16 %v2709, %v2707
        %v2748 = vpack.c.b16 %v2712, %v2710
        %v2749 = vpack.c.b16 %v2713, %v2711
        %v2750 = vpack.c.b16 %v2716, %v2714
        %v2751 = vpack.c.b16 %v2717, %v2715
        %v2752 = vpack.c.b16 %v2720, %v2718
        %v2753 = vpack.c.b16 %v2721, %v2719
        %2786 = vmatpush.bf16.msra.mxu0 %v2736
        %2787 = vmatpush.bf16.msra.mxu0 %v2734
        %2788 = vmatpush.bf16.msra.mxu0 %v2732
        %2789 = vmatpush.bf16.msra.mxu0 %v2730
        %2790 = vmatpush.bf16.msra.mxu0 %v2728
        %2791 = vmatpush.bf16.msra.mxu0 %v2726
        %2792 = vmatpush.bf16.msra.mxu0 %v2724
        %2793 = vmatpush.bf16.msra.mxu0 %v2722
        %2794 = vmatmul.bf16.gmra.mxu0 %v2524
        %v2795 = vpop.f32.mrf.mxu0
        %v2796 = vadd.f32 %v2622, %v2795
        %v2797 = vpop.f32.mrf.mxu0
        %v2798 = vadd.f32 %v2622, %v2797
        %2799 = vmatmul.bf16.gmra.mxu0 %v2526
        %v2800 = vpop.f32.mrf.mxu0
        %v2801 = vadd.f32 %v2622, %v2800
        %v2802 = vpop.f32.mrf.mxu0
        %v2803 = vadd.f32 %v2622, %v2802
        %2804 = vmatmul.bf16.gmra.mxu0 %v2528
        %v2805 = vpop.f32.mrf.mxu0
        %v2806 = vadd.f32 %v2622, %v2805
        %v2807 = vpop.f32.mrf.mxu0
        %v2808 = vadd.f32 %v2622, %v2807
        %2809 = vmatmul.bf16.gmra.mxu0 %v2530
        %v2810 = vpop.f32.mrf.mxu0
        %v2811 = vadd.f32 %v2622, %v2810
        %v2812 = vpop.f32.mrf.mxu0
        %v2813 = vadd.f32 %v2622, %v2812
        %2814 = vmatmul.bf16.gmra.mxu0 %v2532
        %v2815 = vpop.f32.mrf.mxu0
        %v2816 = vadd.f32 %v2622, %v2815
        %v2817 = vpop.f32.mrf.mxu0
        %v2818 = vadd.f32 %v2622, %v2817
        %2819 = vmatmul.bf16.gmra.mxu0 %v2534
        %v2820 = vpop.f32.mrf.mxu0
        %v2821 = vadd.f32 %v2622, %v2820
        %v2822 = vpop.f32.mrf.mxu0
        %v2823 = vadd.f32 %v2622, %v2822
        %2824 = vmatmul.bf16.gmra.mxu0 %v2536
        %v2825 = vpop.f32.mrf.mxu0
        %v2826 = vadd.f32 %v2622, %v2825
        %v2827 = vpop.f32.mrf.mxu0
        %v2828 = vadd.f32 %v2622, %v2827
        %2829 = vmatmul.bf16.gmra.mxu0 %v2538
        %v2830 = vpop.f32.mrf.mxu0
        %v2831 = vadd.f32 %v2622, %v2830
        %v2832 = vpop.f32.mrf.mxu0
        %v2833 = vadd.f32 %v2622, %v2832
        %2834 = vmatmul.bf16.gmra.mxu0 %v2540
        %v2835 = vpop.f32.mrf.mxu0
        %v2836 = vadd.f32 %v2622, %v2835
        %v2837 = vpop.f32.mrf.mxu0
        %v2838 = vadd.f32 %v2622, %v2837
        %2839 = vmatmul.bf16.gmra.mxu0 %v2542
        %v2840 = vpop.f32.mrf.mxu0
        %v2841 = vadd.f32 %v2622, %v2840
        %v2842 = vpop.f32.mrf.mxu0
        %v2843 = vadd.f32 %v2622, %v2842
        %2844 = vmatmul.bf16.gmra.mxu0 %v2544
        %v2845 = vpop.f32.mrf.mxu0
        %v2846 = vadd.f32 %v2622, %v2845
        %v2847 = vpop.f32.mrf.mxu0
        %v2848 = vadd.f32 %v2622, %v2847
        %2849 = vmatmul.bf16.gmra.mxu0 %v2546
        %v2850 = vpop.f32.mrf.mxu0
        %v2851 = vadd.f32 %v2622, %v2850
        %v2852 = vpop.f32.mrf.mxu0
        %v2853 = vadd.f32 %v2622, %v2852
        %2854 = vmatmul.bf16.gmra.mxu0 %v2548
        %v2855 = vpop.f32.mrf.mxu0
        %v2856 = vadd.f32 %v2622, %v2855
        %v2857 = vpop.f32.mrf.mxu0
        %v2858 = vadd.f32 %v2622, %v2857
        %2859 = vmatmul.bf16.gmra.mxu0 %v2550
        %v2860 = vpop.f32.mrf.mxu0
        %v2861 = vadd.f32 %v2622, %v2860
        %v2862 = vpop.f32.mrf.mxu0
        %v2863 = vadd.f32 %v2622, %v2862
        %2864 = vmatmul.bf16.gmra.mxu0 %v2552
        %v2865 = vpop.f32.mrf.mxu0
        %v2866 = vadd.f32 %v2622, %v2865
        %v2867 = vpop.f32.mrf.mxu0
        %v2868 = vadd.f32 %v2622, %v2867
        %2869 = vmatmul.bf16.gmra.mxu0 %v2554
        %v2870 = vpop.f32.mrf.mxu0
        %v2871 = vadd.f32 %v2622, %v2870
        %v2872 = vpop.f32.mrf.mxu0
        %v2873 = vadd.f32 %v2622, %v2872
        %2874 = vmatmul.bf16.gmra.mxu0 %v2556
        %v2875 = vpop.f32.mrf.mxu0
        %v2876 = vadd.f32 %v2622, %v2875
        %v2877 = vpop.f32.mrf.mxu0
        %v2878 = vadd.f32 %v2622, %v2877
        %2879 = vmatmul.bf16.gmra.mxu0 %v2558
        %v2880 = vpop.f32.mrf.mxu0
        %v2881 = vadd.f32 %v2622, %v2880
        %v2882 = vpop.f32.mrf.mxu0
        %v2883 = vadd.f32 %v2622, %v2882
        %2884 = vmatmul.bf16.gmra.mxu0 %v2560
        %v2885 = vpop.f32.mrf.mxu0
        %v2886 = vadd.f32 %v2622, %v2885
        %v2887 = vpop.f32.mrf.mxu0
        %v2888 = vadd.f32 %v2622, %v2887
        %2889 = vmatmul.bf16.gmra.mxu0 %v2562
        %v2890 = vpop.f32.mrf.mxu0
        %v2891 = vadd.f32 %v2622, %v2890
        %v2892 = vpop.f32.mrf.mxu0
        %v2893 = vadd.f32 %v2622, %v2892
        %2894 = vmatmul.bf16.gmra.mxu0 %v2564
        %v2895 = vpop.f32.mrf.mxu0
        %v2896 = vadd.f32 %v2622, %v2895
        %v2897 = vpop.f32.mrf.mxu0
        %v2898 = vadd.f32 %v2622, %v2897
        %2899 = vmatmul.bf16.gmra.mxu0 %v2566
        %v2900 = vpop.f32.mrf.mxu0
        %v2901 = vadd.f32 %v2622, %v2900
        %v2902 = vpop.f32.mrf.mxu0
        %v2903 = vadd.f32 %v2622, %v2902
        %2904 = vmatmul.bf16.gmra.mxu0 %v2568
        %v2905 = vpop.f32.mrf.mxu0
        %v2906 = vadd.f32 %v2622, %v2905
        %v2907 = vpop.f32.mrf.mxu0
        %v2908 = vadd.f32 %v2622, %v2907
        %2909 = vmatmul.bf16.gmra.mxu0 %v2570
        %v2910 = vpop.f32.mrf.mxu0
        %v2911 = vadd.f32 %v2622, %v2910
        %v2912 = vpop.f32.mrf.mxu0
        %v2913 = vadd.f32 %v2622, %v2912
        %2914 = vmatmul.bf16.gmra.mxu0 %v2572
        %v2915 = vpop.f32.mrf.mxu0
        %v2916 = vadd.f32 %v2622, %v2915
        %v2917 = vpop.f32.mrf.mxu0
        %v2918 = vadd.f32 %v2622, %v2917
        %2919 = vmatmul.bf16.gmra.mxu0 %v2574
        %v2920 = vpop.f32.mrf.mxu0
        %v2921 = vadd.f32 %v2622, %v2920
        %v2922 = vpop.f32.mrf.mxu0
        %v2923 = vadd.f32 %v2622, %v2922
        %2924 = vmatmul.bf16.gmra.mxu0 %v2576
        %v2925 = vpop.f32.mrf.mxu0
        %v2926 = vadd.f32 %v2622, %v2925
        %v2927 = vpop.f32.mrf.mxu0
        %v2928 = vadd.f32 %v2622, %v2927
        %2929 = vmatmul.bf16.gmra.mxu0 %v2578
        %v2930 = vpop.f32.mrf.mxu0
        %v2931 = vadd.f32 %v2622, %v2930
        %v2932 = vpop.f32.mrf.mxu0
        %v2933 = vadd.f32 %v2622, %v2932
        %2934 = vmatmul.bf16.gmra.mxu0 %v2580
        %v2935 = vpop.f32.mrf.mxu0
        %v2936 = vadd.f32 %v2622, %v2935
        %v2937 = vpop.f32.mrf.mxu0
        %v2938 = vadd.f32 %v2622, %v2937
        %2939 = vmatmul.bf16.gmra.mxu0 %v2582
        %v2940 = vpop.f32.mrf.mxu0
        %v2941 = vadd.f32 %v2622, %v2940
        %v2942 = vpop.f32.mrf.mxu0
        %v2943 = vadd.f32 %v2622, %v2942
        %2944 = vmatmul.bf16.gmra.mxu0 %v2584
        %v2945 = vpop.f32.mrf.mxu0
        %v2946 = vadd.f32 %v2622, %v2945
        %v2947 = vpop.f32.mrf.mxu0
        %v2948 = vadd.f32 %v2622, %v2947
        %2949 = vmatmul.bf16.gmra.mxu0 %v2586
        %v2950 = vpop.f32.mrf.mxu0
        %v2951 = vadd.f32 %v2622, %v2950
        %v2952 = vpop.f32.mrf.mxu0
        %v2953 = vadd.f32 %v2622, %v2952
        %2954 = vdwg.mxu0
        %2955 = vmatpush.bf16.msra.mxu0 %v2752
        %2956 = vmatpush.bf16.msra.mxu0 %v2750
        %2957 = vmatpush.bf16.msra.mxu0 %v2748
        %2958 = vmatpush.bf16.msra.mxu0 %v2746
        %2959 = vmatpush.bf16.msra.mxu0 %v2744
        %2960 = vmatpush.bf16.msra.mxu0 %v2742
        %2961 = vmatpush.bf16.msra.mxu0 %v2740
        %2962 = vmatpush.bf16.msra.mxu0 %v2738
        %2963 = vmatmul.bf16.gmra.mxu0 %v2525
        %v2964 = vpop.f32.mrf.mxu0
        %v2965 = vadd.f32 %v2796, %v2964
        %v2966 = vpop.f32.mrf.mxu0
        %v2967 = vadd.f32 %v2798, %v2966
        %2968 = vmatmul.bf16.gmra.mxu0 %v2527
        %v2969 = vpop.f32.mrf.mxu0
        %v2970 = vadd.f32 %v2801, %v2969
        %v2971 = vpop.f32.mrf.mxu0
        %v2972 = vadd.f32 %v2803, %v2971
        %2973 = vmatmul.bf16.gmra.mxu0 %v2529
        %v2974 = vpop.f32.mrf.mxu0
        %v2975 = vadd.f32 %v2806, %v2974
        %v2976 = vpop.f32.mrf.mxu0
        %v2977 = vadd.f32 %v2808, %v2976
        %2978 = vmatmul.bf16.gmra.mxu0 %v2531
        %v2979 = vpop.f32.mrf.mxu0
        %v2980 = vadd.f32 %v2811, %v2979
        %v2981 = vpop.f32.mrf.mxu0
        %v2982 = vadd.f32 %v2813, %v2981
        %2983 = vmatmul.bf16.gmra.mxu0 %v2533
        %v2984 = vpop.f32.mrf.mxu0
        %v2985 = vadd.f32 %v2816, %v2984
        %v2986 = vpop.f32.mrf.mxu0
        %v2987 = vadd.f32 %v2818, %v2986
        %2988 = vmatmul.bf16.gmra.mxu0 %v2535
        %v2989 = vpop.f32.mrf.mxu0
        %v2990 = vadd.f32 %v2821, %v2989
        %v2991 = vpop.f32.mrf.mxu0
        %v2992 = vadd.f32 %v2823, %v2991
        %2993 = vmatmul.bf16.gmra.mxu0 %v2537
        %v2994 = vpop.f32.mrf.mxu0
        %v2995 = vadd.f32 %v2826, %v2994
        %v2996 = vpop.f32.mrf.mxu0
        %v2997 = vadd.f32 %v2828, %v2996
        %2998 = vmatmul.bf16.gmra.mxu0 %v2539
        %v2999 = vpop.f32.mrf.mxu0
        %v3000 = vadd.f32 %v2831, %v2999
        %v3001 = vpop.f32.mrf.mxu0
        %v3002 = vadd.f32 %v2833, %v3001
        %3003 = vmatmul.bf16.gmra.mxu0 %v2541
        %v3004 = vpop.f32.mrf.mxu0
        %v3005 = vadd.f32 %v2836, %v3004
        %v3006 = vpop.f32.mrf.mxu0
        %v3007 = vadd.f32 %v2838, %v3006
        %3008 = vmatmul.bf16.gmra.mxu0 %v2543
        %v3009 = vpop.f32.mrf.mxu0
        %v3010 = vadd.f32 %v2841, %v3009
        %v3011 = vpop.f32.mrf.mxu0
        %v3012 = vadd.f32 %v2843, %v3011
        %3013 = vmatmul.bf16.gmra.mxu0 %v2545
        %v3014 = vpop.f32.mrf.mxu0
        %v3015 = vadd.f32 %v2846, %v3014
        %v3016 = vpop.f32.mrf.mxu0
        %v3017 = vadd.f32 %v2848, %v3016
        %3018 = vmatmul.bf16.gmra.mxu0 %v2547
        %v3019 = vpop.f32.mrf.mxu0
        %v3020 = vadd.f32 %v2851, %v3019
        %v3021 = vpop.f32.mrf.mxu0
        %v3022 = vadd.f32 %v2853, %v3021
        %3023 = vmatmul.bf16.gmra.mxu0 %v2549
        %v3024 = vpop.f32.mrf.mxu0
        %v3025 = vadd.f32 %v2856, %v3024
        %v3026 = vpop.f32.mrf.mxu0
        %v3027 = vadd.f32 %v2858, %v3026
        %3028 = vmatmul.bf16.gmra.mxu0 %v2551
        %v3029 = vpop.f32.mrf.mxu0
        %v3030 = vadd.f32 %v2861, %v3029
        %v3031 = vpop.f32.mrf.mxu0
        %v3032 = vadd.f32 %v2863, %v3031
        %3033 = vmatmul.bf16.gmra.mxu0 %v2553
        %v3034 = vpop.f32.mrf.mxu0
        %v3035 = vadd.f32 %v2866, %v3034
        %v3036 = vpop.f32.mrf.mxu0
        %v3037 = vadd.f32 %v2868, %v3036
        %3038 = vmatmul.bf16.gmra.mxu0 %v2555
        %v3039 = vpop.f32.mrf.mxu0
        %v3040 = vadd.f32 %v2871, %v3039
        %v3041 = vpop.f32.mrf.mxu0
        %v3042 = vadd.f32 %v2873, %v3041
        %3043 = vmatmul.bf16.gmra.mxu0 %v2557
        %v3044 = vpop.f32.mrf.mxu0
        %v3045 = vadd.f32 %v2876, %v3044
        %v3046 = vpop.f32.mrf.mxu0
        %v3047 = vadd.f32 %v2878, %v3046
        %3048 = vmatmul.bf16.gmra.mxu0 %v2559
        %v3049 = vpop.f32.mrf.mxu0
        %v3050 = vadd.f32 %v2881, %v3049
        %v3051 = vpop.f32.mrf.mxu0
        %v3052 = vadd.f32 %v2883, %v3051
        %3053 = vmatmul.bf16.gmra.mxu0 %v2561
        %v3054 = vpop.f32.mrf.mxu0
        %v3055 = vadd.f32 %v2886, %v3054
        %v3056 = vpop.f32.mrf.mxu0
        %v3057 = vadd.f32 %v2888, %v3056
        %3058 = vmatmul.bf16.gmra.mxu0 %v2563
        %v3059 = vpop.f32.mrf.mxu0
        %v3060 = vadd.f32 %v2891, %v3059
        %v3061 = vpop.f32.mrf.mxu0
        %v3062 = vadd.f32 %v2893, %v3061
        %3063 = vmatmul.bf16.gmra.mxu0 %v2565
        %v3064 = vpop.f32.mrf.mxu0
        %v3065 = vadd.f32 %v2896, %v3064
        %v3066 = vpop.f32.mrf.mxu0
        %v3067 = vadd.f32 %v2898, %v3066
        %3068 = vmatmul.bf16.gmra.mxu0 %v2567
        %v3069 = vpop.f32.mrf.mxu0
        %v3070 = vadd.f32 %v2901, %v3069
        %v3071 = vpop.f32.mrf.mxu0
        %v3072 = vadd.f32 %v2903, %v3071
        %3073 = vmatmul.bf16.gmra.mxu0 %v2569
        %v3074 = vpop.f32.mrf.mxu0
        %v3075 = vadd.f32 %v2906, %v3074
        %v3076 = vpop.f32.mrf.mxu0
        %v3077 = vadd.f32 %v2908, %v3076
        %3078 = vmatmul.bf16.gmra.mxu0 %v2571
        %v3079 = vpop.f32.mrf.mxu0
        %v3080 = vadd.f32 %v2911, %v3079
        %v3081 = vpop.f32.mrf.mxu0
        %v3082 = vadd.f32 %v2913, %v3081
        %3083 = vmatmul.bf16.gmra.mxu0 %v2573
        %v3084 = vpop.f32.mrf.mxu0
        %v3085 = vadd.f32 %v2916, %v3084
        %v3086 = vpop.f32.mrf.mxu0
        %v3087 = vadd.f32 %v2918, %v3086
        %3088 = vmatmul.bf16.gmra.mxu0 %v2575
        %v3089 = vpop.f32.mrf.mxu0
        %v3090 = vadd.f32 %v2921, %v3089
        %v3091 = vpop.f32.mrf.mxu0
        %v3092 = vadd.f32 %v2923, %v3091
        %3093 = vmatmul.bf16.gmra.mxu0 %v2577
        %v3094 = vpop.f32.mrf.mxu0
        %v3095 = vadd.f32 %v2926, %v3094
        %v3096 = vpop.f32.mrf.mxu0
        %v3097 = vadd.f32 %v2928, %v3096
        %3098 = vmatmul.bf16.gmra.mxu0 %v2579
        %v3099 = vpop.f32.mrf.mxu0
        %v3100 = vadd.f32 %v2931, %v3099
        %v3101 = vpop.f32.mrf.mxu0
        %v3102 = vadd.f32 %v2933, %v3101
        %3103 = vmatmul.bf16.gmra.mxu0 %v2581
        %v3104 = vpop.f32.mrf.mxu0
        %v3105 = vadd.f32 %v2936, %v3104
        %v3106 = vpop.f32.mrf.mxu0
        %v3107 = vadd.f32 %v2938, %v3106
        %3108 = vmatmul.bf16.gmra.mxu0 %v2583
        %v3109 = vpop.f32.mrf.mxu0
        %v3110 = vadd.f32 %v2941, %v3109
        %v3111 = vpop.f32.mrf.mxu0
        %v3112 = vadd.f32 %v2943, %v3111
        %3113 = vmatmul.bf16.gmra.mxu0 %v2585
        %v3114 = vpop.f32.mrf.mxu0
        %v3115 = vadd.f32 %v2946, %v3114
        %v3116 = vpop.f32.mrf.mxu0
        %v3117 = vadd.f32 %v2948, %v3116
        %3118 = vmatmul.bf16.gmra.mxu0 %v2587
        %v3119 = vpop.f32.mrf.mxu0
        %v3120 = vadd.f32 %v2951, %v3119
        %v3121 = vpop.f32.mrf.mxu0
        %v3122 = vadd.f32 %v2953, %v3121
        %3123 = vdwg.mxu0
        %3124 = vmatpush.bf16.msra.mxu0 %v2737
        %3125 = vmatpush.bf16.msra.mxu0 %v2735
        %3126 = vmatpush.bf16.msra.mxu0 %v2733
        %3127 = vmatpush.bf16.msra.mxu0 %v2731
        %3128 = vmatpush.bf16.msra.mxu0 %v2729
        %3129 = vmatpush.bf16.msra.mxu0 %v2727
        %3130 = vmatpush.bf16.msra.mxu0 %v2725
        %3131 = vmatpush.bf16.msra.mxu0 %v2723
        %3132 = vmatmul.bf16.gmra.mxu0 %v2524
        %v3133 = vpop.f32.mrf.mxu0
        %v3134 = vadd.f32 %v2623, %v3133
        %v3135 = vpop.f32.mrf.mxu0
        %v3136 = vadd.f32 %v2623, %v3135
        %3137 = vmatmul.bf16.gmra.mxu0 %v2526
        %v3138 = vpop.f32.mrf.mxu0
        %v3139 = vadd.f32 %v2623, %v3138
        %v3140 = vpop.f32.mrf.mxu0
        %v3141 = vadd.f32 %v2623, %v3140
        %3142 = vmatmul.bf16.gmra.mxu0 %v2528
        %v3143 = vpop.f32.mrf.mxu0
        %v3144 = vadd.f32 %v2623, %v3143
        %v3145 = vpop.f32.mrf.mxu0
        %v3146 = vadd.f32 %v2623, %v3145
        %3147 = vmatmul.bf16.gmra.mxu0 %v2530
        %v3148 = vpop.f32.mrf.mxu0
        %v3149 = vadd.f32 %v2623, %v3148
        %v3150 = vpop.f32.mrf.mxu0
        %v3151 = vadd.f32 %v2623, %v3150
        %3152 = vmatmul.bf16.gmra.mxu0 %v2532
        %v3153 = vpop.f32.mrf.mxu0
        %v3154 = vadd.f32 %v2623, %v3153
        %v3155 = vpop.f32.mrf.mxu0
        %v3156 = vadd.f32 %v2623, %v3155
        %3157 = vmatmul.bf16.gmra.mxu0 %v2534
        %v3158 = vpop.f32.mrf.mxu0
        %v3159 = vadd.f32 %v2623, %v3158
        %v3160 = vpop.f32.mrf.mxu0
        %v3161 = vadd.f32 %v2623, %v3160
        %3162 = vmatmul.bf16.gmra.mxu0 %v2536
        %v3163 = vpop.f32.mrf.mxu0
        %v3164 = vadd.f32 %v2623, %v3163
        %v3165 = vpop.f32.mrf.mxu0
        %v3166 = vadd.f32 %v2623, %v3165
        %3167 = vmatmul.bf16.gmra.mxu0 %v2538
        %v3168 = vpop.f32.mrf.mxu0
        %v3169 = vadd.f32 %v2623, %v3168
        %v3170 = vpop.f32.mrf.mxu0
        %v3171 = vadd.f32 %v2623, %v3170
        %3172 = vmatmul.bf16.gmra.mxu0 %v2540
        %v3173 = vpop.f32.mrf.mxu0
        %v3174 = vadd.f32 %v2623, %v3173
        %v3175 = vpop.f32.mrf.mxu0
        %v3176 = vadd.f32 %v2623, %v3175
        %3177 = vmatmul.bf16.gmra.mxu0 %v2542
        %v3178 = vpop.f32.mrf.mxu0
        %v3179 = vadd.f32 %v2623, %v3178
        %v3180 = vpop.f32.mrf.mxu0
        %v3181 = vadd.f32 %v2623, %v3180
        %3182 = vmatmul.bf16.gmra.mxu0 %v2544
        %v3183 = vpop.f32.mrf.mxu0
        %v3184 = vadd.f32 %v2623, %v3183
        %v3185 = vpop.f32.mrf.mxu0
        %v3186 = vadd.f32 %v2623, %v3185
        %3187 = vmatmul.bf16.gmra.mxu0 %v2546
        %v3188 = vpop.f32.mrf.mxu0
        %v3189 = vadd.f32 %v2623, %v3188
        %v3190 = vpop.f32.mrf.mxu0
        %v3191 = vadd.f32 %v2623, %v3190
        %3192 = vmatmul.bf16.gmra.mxu0 %v2548
        %v3193 = vpop.f32.mrf.mxu0
        %v3194 = vadd.f32 %v2623, %v3193
        %v3195 = vpop.f32.mrf.mxu0
        %v3196 = vadd.f32 %v2623, %v3195
        %3197 = vmatmul.bf16.gmra.mxu0 %v2550
        %v3198 = vpop.f32.mrf.mxu0
        %v3199 = vadd.f32 %v2623, %v3198
        %v3200 = vpop.f32.mrf.mxu0
        %v3201 = vadd.f32 %v2623, %v3200
        %3202 = vmatmul.bf16.gmra.mxu0 %v2552
        %v3203 = vpop.f32.mrf.mxu0
        %v3204 = vadd.f32 %v2623, %v3203
        %v3205 = vpop.f32.mrf.mxu0
        %v3206 = vadd.f32 %v2623, %v3205
        %3207 = vmatmul.bf16.gmra.mxu0 %v2554
        %v3208 = vpop.f32.mrf.mxu0
        %v3209 = vadd.f32 %v2623, %v3208
        %v3210 = vpop.f32.mrf.mxu0
        %v3211 = vadd.f32 %v2623, %v3210
        %3212 = vmatmul.bf16.gmra.mxu0 %v2556
        %v3213 = vpop.f32.mrf.mxu0
        %v3214 = vadd.f32 %v2623, %v3213
        %v3215 = vpop.f32.mrf.mxu0
        %v3216 = vadd.f32 %v2623, %v3215
        %3217 = vmatmul.bf16.gmra.mxu0 %v2558
        %v3218 = vpop.f32.mrf.mxu0
        %v3219 = vadd.f32 %v2623, %v3218
        %v3220 = vpop.f32.mrf.mxu0
        %v3221 = vadd.f32 %v2623, %v3220
        %3222 = vmatmul.bf16.gmra.mxu0 %v2560
        %v3223 = vpop.f32.mrf.mxu0
        %v3224 = vadd.f32 %v2623, %v3223
        %v3225 = vpop.f32.mrf.mxu0
        %v3226 = vadd.f32 %v2623, %v3225
        %3227 = vmatmul.bf16.gmra.mxu0 %v2562
        %v3228 = vpop.f32.mrf.mxu0
        %v3229 = vadd.f32 %v2623, %v3228
        %v3230 = vpop.f32.mrf.mxu0
        %v3231 = vadd.f32 %v2623, %v3230
        %3232 = vmatmul.bf16.gmra.mxu0 %v2564
        %v3233 = vpop.f32.mrf.mxu0
        %v3234 = vadd.f32 %v2623, %v3233
        %v3235 = vpop.f32.mrf.mxu0
        %v3236 = vadd.f32 %v2623, %v3235
        %3237 = vmatmul.bf16.gmra.mxu0 %v2566
        %v3238 = vpop.f32.mrf.mxu0
        %v3239 = vadd.f32 %v2623, %v3238
        %v3240 = vpop.f32.mrf.mxu0
        %v3241 = vadd.f32 %v2623, %v3240
        %3242 = vmatmul.bf16.gmra.mxu0 %v2568
        %v3243 = vpop.f32.mrf.mxu0
        %v3244 = vadd.f32 %v2623, %v3243
        %v3245 = vpop.f32.mrf.mxu0
        %v3246 = vadd.f32 %v2623, %v3245
        %3247 = vmatmul.bf16.gmra.mxu0 %v2570
        %v3248 = vpop.f32.mrf.mxu0
        %v3249 = vadd.f32 %v2623, %v3248
        %v3250 = vpop.f32.mrf.mxu0
        %v3251 = vadd.f32 %v2623, %v3250
        %3252 = vmatmul.bf16.gmra.mxu0 %v2572
        %v3253 = vpop.f32.mrf.mxu0
        %v3254 = vadd.f32 %v2623, %v3253
        %v3255 = vpop.f32.mrf.mxu0
        %v3256 = vadd.f32 %v2623, %v3255
        %3257 = vmatmul.bf16.gmra.mxu0 %v2574
        %v3258 = vpop.f32.mrf.mxu0
        %v3259 = vadd.f32 %v2623, %v3258
        %v3260 = vpop.f32.mrf.mxu0
        %v3261 = vadd.f32 %v2623, %v3260
        %3262 = vmatmul.bf16.gmra.mxu0 %v2576
        %v3263 = vpop.f32.mrf.mxu0
        %v3264 = vadd.f32 %v2623, %v3263
        %v3265 = vpop.f32.mrf.mxu0
        %v3266 = vadd.f32 %v2623, %v3265
        %3267 = vmatmul.bf16.gmra.mxu0 %v2578
        %v3268 = vpop.f32.mrf.mxu0
        %v3269 = vadd.f32 %v2623, %v3268
        %v3270 = vpop.f32.mrf.mxu0
        %v3271 = vadd.f32 %v2623, %v3270
        %3272 = vmatmul.bf16.gmra.mxu0 %v2580
        %v3273 = vpop.f32.mrf.mxu0
        %v3274 = vadd.f32 %v2623, %v3273
        %v3275 = vpop.f32.mrf.mxu0
        %v3276 = vadd.f32 %v2623, %v3275
        %3277 = vmatmul.bf16.gmra.mxu0 %v2582
        %v3278 = vpop.f32.mrf.mxu0
        %v3279 = vadd.f32 %v2623, %v3278
        %v3280 = vpop.f32.mrf.mxu0
        %v3281 = vadd.f32 %v2623, %v3280
        %3282 = vmatmul.bf16.gmra.mxu0 %v2584
        %v3283 = vpop.f32.mrf.mxu0
        %v3284 = vadd.f32 %v2623, %v3283
        %v3285 = vpop.f32.mrf.mxu0
        %v3286 = vadd.f32 %v2623, %v3285
        %3287 = vmatmul.bf16.gmra.mxu0 %v2586
        %v3288 = vpop.f32.mrf.mxu0
        %v3289 = vadd.f32 %v2623, %v3288
        %v3290 = vpop.f32.mrf.mxu0
        %v3291 = vadd.f32 %v2623, %v3290
        %3292 = vdwg.mxu0
        %3293 = vmatpush.bf16.msra.mxu0 %v2753
        %3294 = vmatpush.bf16.msra.mxu0 %v2751
        %3295 = vmatpush.bf16.msra.mxu0 %v2749
        %3296 = vmatpush.bf16.msra.mxu0 %v2747
        %3297 = vmatpush.bf16.msra.mxu0 %v2745
        %3298 = vmatpush.bf16.msra.mxu0 %v2743
        %3299 = vmatpush.bf16.msra.mxu0 %v2741
        %3300 = vmatpush.bf16.msra.mxu0 %v2739
        %3301 = vmatmul.bf16.gmra.mxu0 %v2525
        %v3302 = vpop.f32.mrf.mxu0
        %v3303 = vadd.f32 %v3134, %v3302
        %v3304 = vpop.f32.mrf.mxu0
        %v3305 = vadd.f32 %v3136, %v3304
        %3306 = vmatmul.bf16.gmra.mxu0 %v2527
        %v3307 = vpop.f32.mrf.mxu0
        %v3308 = vadd.f32 %v3139, %v3307
        %v3309 = vpop.f32.mrf.mxu0
        %v3310 = vadd.f32 %v3141, %v3309
        %3311 = vmatmul.bf16.gmra.mxu0 %v2529
        %v3312 = vpop.f32.mrf.mxu0
        %v3313 = vadd.f32 %v3144, %v3312
        %v3314 = vpop.f32.mrf.mxu0
        %v3315 = vadd.f32 %v3146, %v3314
        %3316 = vmatmul.bf16.gmra.mxu0 %v2531
        %v3317 = vpop.f32.mrf.mxu0
        %v3318 = vadd.f32 %v3149, %v3317
        %v3319 = vpop.f32.mrf.mxu0
        %v3320 = vadd.f32 %v3151, %v3319
        %3321 = vmatmul.bf16.gmra.mxu0 %v2533
        %v3322 = vpop.f32.mrf.mxu0
        %v3323 = vadd.f32 %v3154, %v3322
        %v3324 = vpop.f32.mrf.mxu0
        %v3325 = vadd.f32 %v3156, %v3324
        %3326 = vmatmul.bf16.gmra.mxu0 %v2535
        %v3327 = vpop.f32.mrf.mxu0
        %v3328 = vadd.f32 %v3159, %v3327
        %v3329 = vpop.f32.mrf.mxu0
        %v3330 = vadd.f32 %v3161, %v3329
        %3331 = vmatmul.bf16.gmra.mxu0 %v2537
        %v3332 = vpop.f32.mrf.mxu0
        %v3333 = vadd.f32 %v3164, %v3332
        %v3334 = vpop.f32.mrf.mxu0
        %v3335 = vadd.f32 %v3166, %v3334
        %3336 = vmatmul.bf16.gmra.mxu0 %v2539
        %v3337 = vpop.f32.mrf.mxu0
        %v3338 = vadd.f32 %v3169, %v3337
        %v3339 = vpop.f32.mrf.mxu0
        %v3340 = vadd.f32 %v3171, %v3339
        %3341 = vmatmul.bf16.gmra.mxu0 %v2541
        %v3342 = vpop.f32.mrf.mxu0
        %v3343 = vadd.f32 %v3174, %v3342
        %v3344 = vpop.f32.mrf.mxu0
        %v3345 = vadd.f32 %v3176, %v3344
        %3346 = vmatmul.bf16.gmra.mxu0 %v2543
        %v3347 = vpop.f32.mrf.mxu0
        %v3348 = vadd.f32 %v3179, %v3347
        %v3349 = vpop.f32.mrf.mxu0
        %v3350 = vadd.f32 %v3181, %v3349
        %3351 = vmatmul.bf16.gmra.mxu0 %v2545
        %v3352 = vpop.f32.mrf.mxu0
        %v3353 = vadd.f32 %v3184, %v3352
        %v3354 = vpop.f32.mrf.mxu0
        %v3355 = vadd.f32 %v3186, %v3354
        %3356 = vmatmul.bf16.gmra.mxu0 %v2547
        %v3357 = vpop.f32.mrf.mxu0
        %v3358 = vadd.f32 %v3189, %v3357
        %v3359 = vpop.f32.mrf.mxu0
        %v3360 = vadd.f32 %v3191, %v3359
        %3361 = vmatmul.bf16.gmra.mxu0 %v2549
        %v3362 = vpop.f32.mrf.mxu0
        %v3363 = vadd.f32 %v3194, %v3362
        %v3364 = vpop.f32.mrf.mxu0
        %v3365 = vadd.f32 %v3196, %v3364
        %3366 = vmatmul.bf16.gmra.mxu0 %v2551
        %v3367 = vpop.f32.mrf.mxu0
        %v3368 = vadd.f32 %v3199, %v3367
        %v3369 = vpop.f32.mrf.mxu0
        %v3370 = vadd.f32 %v3201, %v3369
        %3371 = vmatmul.bf16.gmra.mxu0 %v2553
        %v3372 = vpop.f32.mrf.mxu0
        %v3373 = vadd.f32 %v3204, %v3372
        %v3374 = vpop.f32.mrf.mxu0
        %v3375 = vadd.f32 %v3206, %v3374
        %3376 = vmatmul.bf16.gmra.mxu0 %v2555
        %v3377 = vpop.f32.mrf.mxu0
        %v3378 = vadd.f32 %v3209, %v3377
        %v3379 = vpop.f32.mrf.mxu0
        %v3380 = vadd.f32 %v3211, %v3379
        %3381 = vmatmul.bf16.gmra.mxu0 %v2557
        %v3382 = vpop.f32.mrf.mxu0
        %v3383 = vadd.f32 %v3214, %v3382
        %v3384 = vpop.f32.mrf.mxu0
        %v3385 = vadd.f32 %v3216, %v3384
        %3386 = vmatmul.bf16.gmra.mxu0 %v2559
        %v3387 = vpop.f32.mrf.mxu0
        %v3388 = vadd.f32 %v3219, %v3387
        %v3389 = vpop.f32.mrf.mxu0
        %v3390 = vadd.f32 %v3221, %v3389
        %3391 = vmatmul.bf16.gmra.mxu0 %v2561
        %v3392 = vpop.f32.mrf.mxu0
        %v3393 = vadd.f32 %v3224, %v3392
        %v3394 = vpop.f32.mrf.mxu0
        %v3395 = vadd.f32 %v3226, %v3394
        %3396 = vmatmul.bf16.gmra.mxu0 %v2563
        %v3397 = vpop.f32.mrf.mxu0
        %v3398 = vadd.f32 %v3229, %v3397
        %v3399 = vpop.f32.mrf.mxu0
        %v3400 = vadd.f32 %v3231, %v3399
        %3401 = vmatmul.bf16.gmra.mxu0 %v2565
        %v3402 = vpop.f32.mrf.mxu0
        %v3403 = vadd.f32 %v3234, %v3402
        %v3404 = vpop.f32.mrf.mxu0
        %v3405 = vadd.f32 %v3236, %v3404
        %3406 = vmatmul.bf16.gmra.mxu0 %v2567
        %v3407 = vpop.f32.mrf.mxu0
        %v3408 = vadd.f32 %v3239, %v3407
        %v3409 = vpop.f32.mrf.mxu0
        %v3410 = vadd.f32 %v3241, %v3409
        %3411 = vmatmul.bf16.gmra.mxu0 %v2569
        %v3412 = vpop.f32.mrf.mxu0
        %v3413 = vadd.f32 %v3244, %v3412
        %v3414 = vpop.f32.mrf.mxu0
        %v3415 = vadd.f32 %v3246, %v3414
        %3416 = vmatmul.bf16.gmra.mxu0 %v2571
        %v3417 = vpop.f32.mrf.mxu0
        %v3418 = vadd.f32 %v3249, %v3417
        %v3419 = vpop.f32.mrf.mxu0
        %v3420 = vadd.f32 %v3251, %v3419
        %3421 = vmatmul.bf16.gmra.mxu0 %v2573
        %v3422 = vpop.f32.mrf.mxu0
        %v3423 = vadd.f32 %v3254, %v3422
        %v3424 = vpop.f32.mrf.mxu0
        %v3425 = vadd.f32 %v3256, %v3424
        %3426 = vmatmul.bf16.gmra.mxu0 %v2575
        %v3427 = vpop.f32.mrf.mxu0
        %v3428 = vadd.f32 %v3259, %v3427
        %v3429 = vpop.f32.mrf.mxu0
        %v3430 = vadd.f32 %v3261, %v3429
        %3431 = vmatmul.bf16.gmra.mxu0 %v2577
        %v3432 = vpop.f32.mrf.mxu0
        %v3433 = vadd.f32 %v3264, %v3432
        %v3434 = vpop.f32.mrf.mxu0
        %v3435 = vadd.f32 %v3266, %v3434
        %3436 = vmatmul.bf16.gmra.mxu0 %v2579
        %v3437 = vpop.f32.mrf.mxu0
        %v3438 = vadd.f32 %v3269, %v3437
        %v3439 = vpop.f32.mrf.mxu0
        %v3440 = vadd.f32 %v3271, %v3439
        %3441 = vmatmul.bf16.gmra.mxu0 %v2581
        %v3442 = vpop.f32.mrf.mxu0
        %v3443 = vadd.f32 %v3274, %v3442
        %v3444 = vpop.f32.mrf.mxu0
        %v3445 = vadd.f32 %v3276, %v3444
        %3446 = vmatmul.bf16.gmra.mxu0 %v2583
        %v3447 = vpop.f32.mrf.mxu0
        %v3448 = vadd.f32 %v3279, %v3447
        %v3449 = vpop.f32.mrf.mxu0
        %v3450 = vadd.f32 %v3281, %v3449
        %3451 = vmatmul.bf16.gmra.mxu0 %v2585
        %v3452 = vpop.f32.mrf.mxu0
        %v3453 = vadd.f32 %v3284, %v3452
        %v3454 = vpop.f32.mrf.mxu0
        %v3455 = vadd.f32 %v3286, %v3454
        %3456 = vmatmul.bf16.gmra.mxu0 %v2587
        %v3457 = vpop.f32.mrf.mxu0
        %v3458 = vadd.f32 %v3289, %v3457
        %v3459 = vpop.f32.mrf.mxu0
        %v3460 = vadd.f32 %v3291, %v3459
        %3461 = vdwg.mxu0
        %v3462 = vmul.f32 %v2965, 0.02
        %v3463 = vmul.f32 %v3303, 0.02
        %v3464 = vmul.f32 %v2967, 0.02
        %v3465 = vmul.f32 %v3305, 0.02
        %v3466 = vmul.f32 %v2970, 0.02
        %v3467 = vmul.f32 %v3308, 0.02
        %v3468 = vmul.f32 %v2972, 0.02
        %v3469 = vmul.f32 %v3310, 0.02
        %v3470 = vmul.f32 %v2975, 0.02
        %v3471 = vmul.f32 %v3313, 0.02
        %v3472 = vmul.f32 %v2977, 0.02
        %v3473 = vmul.f32 %v3315, 0.02
        %v3474 = vmul.f32 %v2980, 0.02
        %v3475 = vmul.f32 %v3318, 0.02
        %v3476 = vmul.f32 %v2982, 0.02
        %v3477 = vmul.f32 %v3320, 0.02
        %v3478 = vmul.f32 %v2985, 0.02
        %v3479 = vmul.f32 %v3323, 0.02
        %v3480 = vmul.f32 %v2987, 0.02
        %v3481 = vmul.f32 %v3325, 0.02
        %v3482 = vmul.f32 %v2990, 0.02
        %v3483 = vmul.f32 %v3328, 0.02
        %v3484 = vmul.f32 %v2992, 0.02
        %v3485 = vmul.f32 %v3330, 0.02
        %v3486 = vmul.f32 %v2995, 0.02
        %v3487 = vmul.f32 %v3333, 0.02
        %v3488 = vmul.f32 %v2997, 0.02
        %v3489 = vmul.f32 %v3335, 0.02
        %v3490 = vmul.f32 %v3000, 0.02
        %v3491 = vmul.f32 %v3338, 0.02
        %v3492 = vmul.f32 %v3002, 0.02
        %v3493 = vmul.f32 %v3340, 0.02
        %v3494 = vmul.f32 %v3005, 0.02
        %v3495 = vmul.f32 %v3343, 0.02
        %v3496 = vmul.f32 %v3007, 0.02
        %v3497 = vmul.f32 %v3345, 0.02
        %v3498 = vmul.f32 %v3010, 0.02
        %v3499 = vmul.f32 %v3348, 0.02
        %v3500 = vmul.f32 %v3012, 0.02
        %v3501 = vmul.f32 %v3350, 0.02
        %v3502 = vmul.f32 %v3015, 0.02
        %v3503 = vmul.f32 %v3353, 0.02
        %v3504 = vmul.f32 %v3017, 0.02
        %v3505 = vmul.f32 %v3355, 0.02
        %v3506 = vmul.f32 %v3020, 0.02
        %v3507 = vmul.f32 %v3358, 0.02
        %v3508 = vmul.f32 %v3022, 0.02
        %v3509 = vmul.f32 %v3360, 0.02
        %v3510 = vmul.f32 %v3025, 0.02
        %v3511 = vmul.f32 %v3363, 0.02
        %v3512 = vmul.f32 %v3027, 0.02
        %v3513 = vmul.f32 %v3365, 0.02
        %v3514 = vmul.f32 %v3030, 0.02
        %v3515 = vmul.f32 %v3368, 0.02
        %v3516 = vmul.f32 %v3032, 0.02
        %v3517 = vmul.f32 %v3370, 0.02
        %v3518 = vmul.f32 %v3035, 0.02
        %v3519 = vmul.f32 %v3373, 0.02
        %v3520 = vmul.f32 %v3037, 0.02
        %v3521 = vmul.f32 %v3375, 0.02
        %v3522 = vmul.f32 %v3040, 0.02
        %v3523 = vmul.f32 %v3378, 0.02
        %v3524 = vmul.f32 %v3042, 0.02
        %v3525 = vmul.f32 %v3380, 0.02
        %v3526 = vmul.f32 %v3045, 0.02
        %v3527 = vmul.f32 %v3383, 0.02
        %v3528 = vmul.f32 %v3047, 0.02
        %v3529 = vmul.f32 %v3385, 0.02
        %v3530 = vmul.f32 %v3050, 0.02
        %v3531 = vmul.f32 %v3388, 0.02
        %v3532 = vmul.f32 %v3052, 0.02
        %v3533 = vmul.f32 %v3390, 0.02
        %v3534 = vmul.f32 %v3055, 0.02
        %v3535 = vmul.f32 %v3393, 0.02
        %v3536 = vmul.f32 %v3057, 0.02
        %v3537 = vmul.f32 %v3395, 0.02
        %v3538 = vmul.f32 %v3060, 0.02
        %v3539 = vmul.f32 %v3398, 0.02
        %v3540 = vmul.f32 %v3062, 0.02
        %v3541 = vmul.f32 %v3400, 0.02
        %v3542 = vmul.f32 %v3065, 0.02
        %v3543 = vmul.f32 %v3403, 0.02
        %v3544 = vmul.f32 %v3067, 0.02
        %v3545 = vmul.f32 %v3405, 0.02
        %v3546 = vmul.f32 %v3070, 0.02
        %v3547 = vmul.f32 %v3408, 0.02
        %v3548 = vmul.f32 %v3072, 0.02
        %v3549 = vmul.f32 %v3410, 0.02
        %v3550 = vmul.f32 %v3075, 0.02
        %v3551 = vmul.f32 %v3413, 0.02
        %v3552 = vmul.f32 %v3077, 0.02
        %v3553 = vmul.f32 %v3415, 0.02
        %v3554 = vmul.f32 %v3080, 0.02
        %v3555 = vmul.f32 %v3418, 0.02
        %v3556 = vmul.f32 %v3082, 0.02
        %v3557 = vmul.f32 %v3420, 0.02
        %v3558 = vmul.f32 %v3085, 0.02
        %v3559 = vmul.f32 %v3423, 0.02
        %v3560 = vmul.f32 %v3087, 0.02
        %v3561 = vmul.f32 %v3425, 0.02
        %v3562 = vmul.f32 %v3090, 0.02
        %v3563 = vmul.f32 %v3428, 0.02
        %v3564 = vmul.f32 %v3092, 0.02
        %v3565 = vmul.f32 %v3430, 0.02
        %v3566 = vmul.f32 %v3095, 0.02
        %v3567 = vmul.f32 %v3433, 0.02
        %v3568 = vmul.f32 %v3097, 0.02
        %v3569 = vmul.f32 %v3435, 0.02
        %v3570 = vmul.f32 %v3100, 0.02
        %v3571 = vmul.f32 %v3438, 0.02
        %v3572 = vmul.f32 %v3102, 0.02
        %v3573 = vmul.f32 %v3440, 0.02
        %v3574 = vmul.f32 %v3105, 0.02
        %v3575 = vmul.f32 %v3443, 0.02
        %v3576 = vmul.f32 %v3107, 0.02
        %v3577 = vmul.f32 %v3445, 0.02
        %v3578 = vmul.f32 %v3110, 0.02
        %v3579 = vmul.f32 %v3448, 0.02
        %v3580 = vmul.f32 %v3112, 0.02
        %v3581 = vmul.f32 %v3450, 0.02
        %v3582 = vmul.f32 %v3115, 0.02
        %v3583 = vmul.f32 %v3453, 0.02
        %v3584 = vmul.f32 %v3117, 0.02
        %v3585 = vmul.f32 %v3455, 0.02
        %v3586 = vmul.f32 %v3120, 0.02
        %v3587 = vmul.f32 %v3458, 0.02
        %v3588 = vmul.f32 %v3122, 0.02
        %v3589 = vmul.f32 %v3460, 0.02
        %v3590 = vmax.f32 %v2965, %v3462
        %v3591 = vmax.f32 %v3303, %v3463
        %v3592 = vmax.f32 %v2967, %v3464
        %v3593 = vmax.f32 %v3305, %v3465
        %v3594 = vmax.f32 %v2970, %v3466
        %v3595 = vmax.f32 %v3308, %v3467
        %v3596 = vmax.f32 %v2972, %v3468
        %v3597 = vmax.f32 %v3310, %v3469
        %v3598 = vmax.f32 %v2975, %v3470
        %v3599 = vmax.f32 %v3313, %v3471
        %v3600 = vmax.f32 %v2977, %v3472
        %v3601 = vmax.f32 %v3315, %v3473
        %v3602 = vmax.f32 %v2980, %v3474
        %v3603 = vmax.f32 %v3318, %v3475
        %v3604 = vmax.f32 %v2982, %v3476
        %v3605 = vmax.f32 %v3320, %v3477
        %v3606 = vmax.f32 %v2985, %v3478
        %v3607 = vmax.f32 %v3323, %v3479
        %v3608 = vmax.f32 %v2987, %v3480
        %v3609 = vmax.f32 %v3325, %v3481
        %v3610 = vmax.f32 %v2990, %v3482
        %v3611 = vmax.f32 %v3328, %v3483
        %v3612 = vmax.f32 %v2992, %v3484
        %v3613 = vmax.f32 %v3330, %v3485
        %v3614 = vmax.f32 %v2995, %v3486
        %v3615 = vmax.f32 %v3333, %v3487
        %v3616 = vmax.f32 %v2997, %v3488
        %v3617 = vmax.f32 %v3335, %v3489
        %v3618 = vmax.f32 %v3000, %v3490
        %v3619 = vmax.f32 %v3338, %v3491
        %v3620 = vmax.f32 %v3002, %v3492
        %v3621 = vmax.f32 %v3340, %v3493
        %v3622 = vmax.f32 %v3005, %v3494
        %v3623 = vmax.f32 %v3343, %v3495
        %v3624 = vmax.f32 %v3007, %v3496
        %v3625 = vmax.f32 %v3345, %v3497
        %v3626 = vmax.f32 %v3010, %v3498
        %v3627 = vmax.f32 %v3348, %v3499
        %v3628 = vmax.f32 %v3012, %v3500
        %v3629 = vmax.f32 %v3350, %v3501
        %v3630 = vmax.f32 %v3015, %v3502
        %v3631 = vmax.f32 %v3353, %v3503
        %v3632 = vmax.f32 %v3017, %v3504
        %v3633 = vmax.f32 %v3355, %v3505
        %v3634 = vmax.f32 %v3020, %v3506
        %v3635 = vmax.f32 %v3358, %v3507
        %v3636 = vmax.f32 %v3022, %v3508
        %v3637 = vmax.f32 %v3360, %v3509
        %v3638 = vmax.f32 %v3025, %v3510
        %v3639 = vmax.f32 %v3363, %v3511
        %v3640 = vmax.f32 %v3027, %v3512
        %v3641 = vmax.f32 %v3365, %v3513
        %v3642 = vmax.f32 %v3030, %v3514
        %v3643 = vmax.f32 %v3368, %v3515
        %v3644 = vmax.f32 %v3032, %v3516
        %v3645 = vmax.f32 %v3370, %v3517
        %v3646 = vmax.f32 %v3035, %v3518
        %v3647 = vmax.f32 %v3373, %v3519
        %v3648 = vmax.f32 %v3037, %v3520
        %v3649 = vmax.f32 %v3375, %v3521
        %v3650 = vmax.f32 %v3040, %v3522
        %v3651 = vmax.f32 %v3378, %v3523
        %v3652 = vmax.f32 %v3042, %v3524
        %v3653 = vmax.f32 %v3380, %v3525
        %v3654 = vmax.f32 %v3045, %v3526
        %v3655 = vmax.f32 %v3383, %v3527
        %v3656 = vmax.f32 %v3047, %v3528
        %v3657 = vmax.f32 %v3385, %v3529
        %v3658 = vmax.f32 %v3050, %v3530
        %v3659 = vmax.f32 %v3388, %v3531
        %v3660 = vmax.f32 %v3052, %v3532
        %v3661 = vmax.f32 %v3390, %v3533
        %v3662 = vmax.f32 %v3055, %v3534
        %v3663 = vmax.f32 %v3393, %v3535
        %v3664 = vmax.f32 %v3057, %v3536
        %v3665 = vmax.f32 %v3395, %v3537
        %v3666 = vmax.f32 %v3060, %v3538
        %v3667 = vmax.f32 %v3398, %v3539
        %v3668 = vmax.f32 %v3062, %v3540
        %v3669 = vmax.f32 %v3400, %v3541
        %v3670 = vmax.f32 %v3065, %v3542
        %v3671 = vmax.f32 %v3403, %v3543
        %v3672 = vmax.f32 %v3067, %v3544
        %v3673 = vmax.f32 %v3405, %v3545
        %v3674 = vmax.f32 %v3070, %v3546
        %v3675 = vmax.f32 %v3408, %v3547
        %v3676 = vmax.f32 %v3072, %v3548
        %v3677 = vmax.f32 %v3410, %v3549
        %v3678 = vmax.f32 %v3075, %v3550
        %v3679 = vmax.f32 %v3413, %v3551
        %v3680 = vmax.f32 %v3077, %v3552
        %v3681 = vmax.f32 %v3415, %v3553
        %v3682 = vmax.f32 %v3080, %v3554
        %v3683 = vmax.f32 %v3418, %v3555
        %v3684 = vmax.f32 %v3082, %v3556
        %v3685 = vmax.f32 %v3420, %v3557
        %v3686 = vmax.f32 %v3085, %v3558
        %v3687 = vmax.f32 %v3423, %v3559
        %v3688 = vmax.f32 %v3087, %v3560
        %v3689 = vmax.f32 %v3425, %v3561
        %v3690 = vmax.f32 %v3090, %v3562
        %v3691 = vmax.f32 %v3428, %v3563
        %v3692 = vmax.f32 %v3092, %v3564
        %v3693 = vmax.f32 %v3430, %v3565
        %v3694 = vmax.f32 %v3095, %v3566
        %v3695 = vmax.f32 %v3433, %v3567
        %v3696 = vmax.f32 %v3097, %v3568
        %v3697 = vmax.f32 %v3435, %v3569
        %v3698 = vmax.f32 %v3100, %v3570
        %v3699 = vmax.f32 %v3438, %v3571
        %v3700 = vmax.f32 %v3102, %v3572
        %v3701 = vmax.f32 %v3440, %v3573
        %v3702 = vmax.f32 %v3105, %v3574
        %v3703 = vmax.f32 %v3443, %v3575
        %v3704 = vmax.f32 %v3107, %v3576
        %v3705 = vmax.f32 %v3445, %v3577
        %v3706 = vmax.f32 %v3110, %v3578
        %v3707 = vmax.f32 %v3448, %v3579
        %v3708 = vmax.f32 %v3112, %v3580
        %v3709 = vmax.f32 %v3450, %v3581
        %v3710 = vmax.f32 %v3115, %v3582
        %v3711 = vmax.f32 %v3453, %v3583
        %v3712 = vmax.f32 %v3117, %v3584
        %v3713 = vmax.f32 %v3455, %v3585
        %v3714 = vmax.f32 %v3120, %v3586
        %v3715 = vmax.f32 %v3458, %v3587
        %v3716 = vmax.f32 %v3122, %v3588
        %v3717 = vmax.f32 %v3460, %v3589
        %v3718 = vpack.c.bf16 %v3592, %v3590
        %v3719 = vpack.c.bf16 %v3593, %v3591
        %v3720 = vpack.c.bf16 %v3596, %v3594
        %v3721 = vpack.c.bf16 %v3597, %v3595
        %v3722 = vpack.c.bf16 %v3600, %v3598
        %v3723 = vpack.c.bf16 %v3601, %v3599
        %v3724 = vpack.c.bf16 %v3604, %v3602
        %v3725 = vpack.c.bf16 %v3605, %v3603
        %v3726 = vpack.c.bf16 %v3608, %v3606
        %v3727 = vpack.c.bf16 %v3609, %v3607
        %v3728 = vpack.c.bf16 %v3612, %v3610
        %v3729 = vpack.c.bf16 %v3613, %v3611
        %v3730 = vpack.c.bf16 %v3616, %v3614
        %v3731 = vpack.c.bf16 %v3617, %v3615
        %v3732 = vpack.c.bf16 %v3620, %v3618
        %v3733 = vpack.c.bf16 %v3621, %v3619
        %v3734 = vpack.c.bf16 %v3624, %v3622
        %v3735 = vpack.c.bf16 %v3625, %v3623
        %v3736 = vpack.c.bf16 %v3628, %v3626
        %v3737 = vpack.c.bf16 %v3629, %v3627
        %v3738 = vpack.c.bf16 %v3632, %v3630
        %v3739 = vpack.c.bf16 %v3633, %v3631
        %v3740 = vpack.c.bf16 %v3636, %v3634
        %v3741 = vpack.c.bf16 %v3637, %v3635
        %v3742 = vpack.c.bf16 %v3640, %v3638
        %v3743 = vpack.c.bf16 %v3641, %v3639
        %v3744 = vpack.c.bf16 %v3644, %v3642
        %v3745 = vpack.c.bf16 %v3645, %v3643
        %v3746 = vpack.c.bf16 %v3648, %v3646
        %v3747 = vpack.c.bf16 %v3649, %v3647
        %v3748 = vpack.c.bf16 %v3652, %v3650
        %v3749 = vpack.c.bf16 %v3653, %v3651
        %v3750 = vpack.c.bf16 %v3656, %v3654
        %v3751 = vpack.c.bf16 %v3657, %v3655
        %v3752 = vpack.c.bf16 %v3660, %v3658
        %v3753 = vpack.c.bf16 %v3661, %v3659
        %v3754 = vpack.c.bf16 %v3664, %v3662
        %v3755 = vpack.c.bf16 %v3665, %v3663
        %v3756 = vpack.c.bf16 %v3668, %v3666
        %v3757 = vpack.c.bf16 %v3669, %v3667
        %v3758 = vpack.c.bf16 %v3672, %v3670
        %v3759 = vpack.c.bf16 %v3673, %v3671
        %v3760 = vpack.c.bf16 %v3676, %v3674
        %v3761 = vpack.c.bf16 %v3677, %v3675
        %v3762 = vpack.c.bf16 %v3680, %v3678
        %v3763 = vpack.c.bf16 %v3681, %v3679
        %v3764 = vpack.c.bf16 %v3684, %v3682
        %v3765 = vpack.c.bf16 %v3685, %v3683
        %v3766 = vpack.c.bf16 %v3688, %v3686
        %v3767 = vpack.c.bf16 %v3689, %v3687
        %v3768 = vpack.c.bf16 %v3692, %v3690
        %v3769 = vpack.c.bf16 %v3693, %v3691
        %v3770 = vpack.c.bf16 %v3696, %v3694
        %v3771 = vpack.c.bf16 %v3697, %v3695
        %v3772 = vpack.c.bf16 %v3700, %v3698
        %v3773 = vpack.c.bf16 %v3701, %v3699
        %v3774 = vpack.c.bf16 %v3704, %v3702
        %v3775 = vpack.c.bf16 %v3705, %v3703
        %v3776 = vpack.c.bf16 %v3708, %v3706
        %v3777 = vpack.c.bf16 %v3709, %v3707
        %v3778 = vpack.c.bf16 %v3712, %v3710
        %v3779 = vpack.c.bf16 %v3713, %v3711
        %v3780 = vpack.c.bf16 %v3716, %v3714
        %v3781 = vpack.c.bf16 %v3717, %v3715
        %v3782 = vld [vmem:[%s7] sm:$0xf]
        %v3783 = vld [vmem:[%s7 + $0x4] sm:$0xf]
        %v3784 = vld [vmem:[%s7 + $0x8] sm:$0xf]
        %v3785 = vld [vmem:[%s7 + $0xc] sm:$0xf]
        %v3786 = vld [vmem:[%s7 + $0x10] sm:$0xf]
        %v3787 = vld [vmem:[%s7 + $0x14] sm:$0xf]
        %v3788 = vld [vmem:[%s7 + $0x18] sm:$0xf]
        %v3789 = vld [vmem:[%s7 + $0x1c] sm:$0xf]
        %v3790 = vld [vmem:[%s7 + $0x20] sm:$0xf]
        %v3791 = vld [vmem:[%s7 + $0x24] sm:$0xf]
        %v3792 = vld [vmem:[%s7 + $0x28] sm:$0xf]
        %v3793 = vld [vmem:[%s7 + $0x2c] sm:$0xf]
        %v3794 = vld [vmem:[%s7 + $0x30] sm:$0xf]
        %v3795 = vld [vmem:[%s7 + $0x34] sm:$0xf]
        %v3796 = vld [vmem:[%s7 + $0x38] sm:$0xf]
        %v3797 = vld [vmem:[%s7 + $0x3c] sm:$0xf]
        %v3798 = vld [vmem:[%s7 + $0x40] sm:$0xf]
        %v3799 = vld [vmem:[%s7 + $0x44] sm:$0xf]
        %v3800 = vld [vmem:[%s7 + $0x48] sm:$0xf]
        %v3801 = vld [vmem:[%s7 + $0x4c] sm:$0xf]
        %v3802 = vld [vmem:[%s7 + $0x50] sm:$0xf]
        %v3803 = vld [vmem:[%s7 + $0x54] sm:$0xf]
        %v3804 = vld [vmem:[%s7 + $0x58] sm:$0xf]
        %v3805 = vld [vmem:[%s7 + $0x5c] sm:$0xf]
        %v3806 = vld [vmem:[%s7 + $0x60] sm:$0xf]
        %v3807 = vld [vmem:[%s7 + $0x64] sm:$0xf]
        %v3808 = vld [vmem:[%s7 + $0x68] sm:$0xf]
        %v3809 = vld [vmem:[%s7 + $0x6c] sm:$0xf]
        %v3810 = vld [vmem:[%s7 + $0x70] sm:$0xf]
        %v3811 = vld [vmem:[%s7 + $0x74] sm:$0xf]
        %v3812 = vld [vmem:[%s7 + $0x78] sm:$0xf]
        %v3813 = vld [vmem:[%s7 + $0x7c] sm:$0xf]
        %v3814 = vld [vmem:[%s8] sm:$0x1]
        %v3816 = vperm.slane %v3814, 0
        %v3850 = vunpack.c.l.b16 %v3782
        %v3851 = vunpack.c.l.b16 %v3783
        %v3852 = vunpack.c.l.b16 %v3784
        %v3853 = vunpack.c.l.b16 %v3785
        %v3854 = vunpack.c.l.b16 %v3786
        %v3855 = vunpack.c.l.b16 %v3787
        %v3856 = vunpack.c.l.b16 %v3788
        %v3857 = vunpack.c.l.b16 %v3789
        %v3858 = vunpack.c.l.b16 %v3790
        %v3859 = vunpack.c.l.b16 %v3791
        %v3860 = vunpack.c.l.b16 %v3792
        %v3861 = vunpack.c.l.b16 %v3793
        %v3862 = vunpack.c.l.b16 %v3794
        %v3863 = vunpack.c.l.b16 %v3795
        %v3864 = vunpack.c.l.b16 %v3796
        %v3865 = vunpack.c.l.b16 %v3797
        %v3866 = vunpack.c.l.b16 %v3798
        %v3867 = vunpack.c.l.b16 %v3799
        %v3868 = vunpack.c.l.b16 %v3800
        %v3869 = vunpack.c.l.b16 %v3801
        %v3870 = vunpack.c.l.b16 %v3802
        %v3871 = vunpack.c.l.b16 %v3803
        %v3872 = vunpack.c.l.b16 %v3804
        %v3873 = vunpack.c.l.b16 %v3805
        %v3874 = vunpack.c.l.b16 %v3806
        %v3875 = vunpack.c.l.b16 %v3807
        %v3876 = vunpack.c.l.b16 %v3808
        %v3877 = vunpack.c.l.b16 %v3809
        %v3878 = vunpack.c.l.b16 %v3810
        %v3879 = vunpack.c.l.b16 %v3811
        %v3880 = vunpack.c.l.b16 %v3812
        %v3881 = vunpack.c.l.b16 %v3813
        %v3882 = vpack.c.b16 %v3851, %v3850
        %v3883 = vpack.c.b16 %v3853, %v3852
        %v3884 = vpack.c.b16 %v3855, %v3854
        %v3885 = vpack.c.b16 %v3857, %v3856
        %v3886 = vpack.c.b16 %v3859, %v3858
        %v3887 = vpack.c.b16 %v3861, %v3860
        %v3888 = vpack.c.b16 %v3863, %v3862
        %v3889 = vpack.c.b16 %v3865, %v3864
        %v3890 = vpack.c.b16 %v3867, %v3866
        %v3891 = vpack.c.b16 %v3869, %v3868
        %v3892 = vpack.c.b16 %v3871, %v3870
        %v3893 = vpack.c.b16 %v3873, %v3872
        %v3894 = vpack.c.b16 %v3875, %v3874
        %v3895 = vpack.c.b16 %v3877, %v3876
        %v3896 = vpack.c.b16 %v3879, %v3878
        %v3897 = vpack.c.b16 %v3881, %v3880
        %3914 = vmatpush.bf16.msra.mxu0 %v3889
        %3915 = vmatpush.bf16.msra.mxu0 %v3888
        %3916 = vmatpush.bf16.msra.mxu0 %v3887
        %3917 = vmatpush.bf16.msra.mxu0 %v3886
        %3918 = vmatpush.bf16.msra.mxu0 %v3885
        %3919 = vmatpush.bf16.msra.mxu0 %v3884
        %3920 = vmatpush.bf16.msra.mxu0 %v3883
        %3921 = vmatpush.bf16.msra.mxu0 %v3882
        %3922 = vmatmul.bf16.gmra.mxu0 %v3718
        %v3923 = vpop.f32.mrf.mxu0
        %v3924 = vadd.f32 %v3816, %v3923
        %v3925 = vpop.f32.mrf.mxu0
        %v3926 = vadd.f32 %v3816, %v3925
        %3927 = vmatmul.bf16.gmra.mxu0 %v3720
        %v3928 = vpop.f32.mrf.mxu0
        %v3929 = vadd.f32 %v3816, %v3928
        %v3930 = vpop.f32.mrf.mxu0
        %v3931 = vadd.f32 %v3816, %v3930
        %3932 = vmatmul.bf16.gmra.mxu0 %v3722
        %v3933 = vpop.f32.mrf.mxu0
        %v3934 = vadd.f32 %v3816, %v3933
        %v3935 = vpop.f32.mrf.mxu0
        %v3936 = vadd.f32 %v3816, %v3935
        %3937 = vmatmul.bf16.gmra.mxu0 %v3724
        %v3938 = vpop.f32.mrf.mxu0
        %v3939 = vadd.f32 %v3816, %v3938
        %v3940 = vpop.f32.mrf.mxu0
        %v3941 = vadd.f32 %v3816, %v3940
        %3942 = vmatmul.bf16.gmra.mxu0 %v3726
        %v3943 = vpop.f32.mrf.mxu0
        %v3944 = vadd.f32 %v3816, %v3943
        %v3945 = vpop.f32.mrf.mxu0
        %v3946 = vadd.f32 %v3816, %v3945
        %3947 = vmatmul.bf16.gmra.mxu0 %v3728
        %v3948 = vpop.f32.mrf.mxu0
        %v3949 = vadd.f32 %v3816, %v3948
        %v3950 = vpop.f32.mrf.mxu0
        %v3951 = vadd.f32 %v3816, %v3950
        %3952 = vmatmul.bf16.gmra.mxu0 %v3730
        %v3953 = vpop.f32.mrf.mxu0
        %v3954 = vadd.f32 %v3816, %v3953
        %v3955 = vpop.f32.mrf.mxu0
        %v3956 = vadd.f32 %v3816, %v3955
        %3957 = vmatmul.bf16.gmra.mxu0 %v3732
        %v3958 = vpop.f32.mrf.mxu0
        %v3959 = vadd.f32 %v3816, %v3958
        %v3960 = vpop.f32.mrf.mxu0
        %v3961 = vadd.f32 %v3816, %v3960
        %3962 = vmatmul.bf16.gmra.mxu0 %v3734
        %v3963 = vpop.f32.mrf.mxu0
        %v3964 = vadd.f32 %v3816, %v3963
        %v3965 = vpop.f32.mrf.mxu0
        %v3966 = vadd.f32 %v3816, %v3965
        %3967 = vmatmul.bf16.gmra.mxu0 %v3736
        %v3968 = vpop.f32.mrf.mxu0
        %v3969 = vadd.f32 %v3816, %v3968
        %v3970 = vpop.f32.mrf.mxu0
        %v3971 = vadd.f32 %v3816, %v3970
        %3972 = vmatmul.bf16.gmra.mxu0 %v3738
        %v3973 = vpop.f32.mrf.mxu0
        %v3974 = vadd.f32 %v3816, %v3973
        %v3975 = vpop.f32.mrf.mxu0
        %v3976 = vadd.f32 %v3816, %v3975
        %3977 = vmatmul.bf16.gmra.mxu0 %v3740
        %v3978 = vpop.f32.mrf.mxu0
        %v3979 = vadd.f32 %v3816, %v3978
        %v3980 = vpop.f32.mrf.mxu0
        %v3981 = vadd.f32 %v3816, %v3980
        %3982 = vmatmul.bf16.gmra.mxu0 %v3742
        %v3983 = vpop.f32.mrf.mxu0
        %v3984 = vadd.f32 %v3816, %v3983
        %v3985 = vpop.f32.mrf.mxu0
        %v3986 = vadd.f32 %v3816, %v3985
        %3987 = vmatmul.bf16.gmra.mxu0 %v3744
        %v3988 = vpop.f32.mrf.mxu0
        %v3989 = vadd.f32 %v3816, %v3988
        %v3990 = vpop.f32.mrf.mxu0
        %v3991 = vadd.f32 %v3816, %v3990
        %3992 = vmatmul.bf16.gmra.mxu0 %v3746
        %v3993 = vpop.f32.mrf.mxu0
        %v3994 = vadd.f32 %v3816, %v3993
        %v3995 = vpop.f32.mrf.mxu0
        %v3996 = vadd.f32 %v3816, %v3995
        %3997 = vmatmul.bf16.gmra.mxu0 %v3748
        %v3998 = vpop.f32.mrf.mxu0
        %v3999 = vadd.f32 %v3816, %v3998
        %v4000 = vpop.f32.mrf.mxu0
        %v4001 = vadd.f32 %v3816, %v4000
        %4002 = vmatmul.bf16.gmra.mxu0 %v3750
        %v4003 = vpop.f32.mrf.mxu0
        %v4004 = vadd.f32 %v3816, %v4003
        %v4005 = vpop.f32.mrf.mxu0
        %v4006 = vadd.f32 %v3816, %v4005
        %4007 = vmatmul.bf16.gmra.mxu0 %v3752
        %v4008 = vpop.f32.mrf.mxu0
        %v4009 = vadd.f32 %v3816, %v4008
        %v4010 = vpop.f32.mrf.mxu0
        %v4011 = vadd.f32 %v3816, %v4010
        %4012 = vmatmul.bf16.gmra.mxu0 %v3754
        %v4013 = vpop.f32.mrf.mxu0
        %v4014 = vadd.f32 %v3816, %v4013
        %v4015 = vpop.f32.mrf.mxu0
        %v4016 = vadd.f32 %v3816, %v4015
        %4017 = vmatmul.bf16.gmra.mxu0 %v3756
        %v4018 = vpop.f32.mrf.mxu0
        %v4019 = vadd.f32 %v3816, %v4018
        %v4020 = vpop.f32.mrf.mxu0
        %v4021 = vadd.f32 %v3816, %v4020
        %4022 = vmatmul.bf16.gmra.mxu0 %v3758
        %v4023 = vpop.f32.mrf.mxu0
        %v4024 = vadd.f32 %v3816, %v4023
        %v4025 = vpop.f32.mrf.mxu0
        %v4026 = vadd.f32 %v3816, %v4025
        %4027 = vmatmul.bf16.gmra.mxu0 %v3760
        %v4028 = vpop.f32.mrf.mxu0
        %v4029 = vadd.f32 %v3816, %v4028
        %v4030 = vpop.f32.mrf.mxu0
        %v4031 = vadd.f32 %v3816, %v4030
        %4032 = vmatmul.bf16.gmra.mxu0 %v3762
        %v4033 = vpop.f32.mrf.mxu0
        %v4034 = vadd.f32 %v3816, %v4033
        %v4035 = vpop.f32.mrf.mxu0
        %v4036 = vadd.f32 %v3816, %v4035
        %4037 = vmatmul.bf16.gmra.mxu0 %v3764
        %v4038 = vpop.f32.mrf.mxu0
        %v4039 = vadd.f32 %v3816, %v4038
        %v4040 = vpop.f32.mrf.mxu0
        %v4041 = vadd.f32 %v3816, %v4040
        %4042 = vmatmul.bf16.gmra.mxu0 %v3766
        %v4043 = vpop.f32.mrf.mxu0
        %v4044 = vadd.f32 %v3816, %v4043
        %v4045 = vpop.f32.mrf.mxu0
        %v4046 = vadd.f32 %v3816, %v4045
        %4047 = vmatmul.bf16.gmra.mxu0 %v3768
        %v4048 = vpop.f32.mrf.mxu0
        %v4049 = vadd.f32 %v3816, %v4048
        %v4050 = vpop.f32.mrf.mxu0
        %v4051 = vadd.f32 %v3816, %v4050
        %4052 = vmatmul.bf16.gmra.mxu0 %v3770
        %v4053 = vpop.f32.mrf.mxu0
        %v4054 = vadd.f32 %v3816, %v4053
        %v4055 = vpop.f32.mrf.mxu0
        %v4056 = vadd.f32 %v3816, %v4055
        %4057 = vmatmul.bf16.gmra.mxu0 %v3772
        %v4058 = vpop.f32.mrf.mxu0
        %v4059 = vadd.f32 %v3816, %v4058
        %v4060 = vpop.f32.mrf.mxu0
        %v4061 = vadd.f32 %v3816, %v4060
        %4062 = vmatmul.bf16.gmra.mxu0 %v3774
        %v4063 = vpop.f32.mrf.mxu0
        %v4064 = vadd.f32 %v3816, %v4063
        %v4065 = vpop.f32.mrf.mxu0
        %v4066 = vadd.f32 %v3816, %v4065
        %4067 = vmatmul.bf16.gmra.mxu0 %v3776
        %v4068 = vpop.f32.mrf.mxu0
        %v4069 = vadd.f32 %v3816, %v4068
        %v4070 = vpop.f32.mrf.mxu0
        %v4071 = vadd.f32 %v3816, %v4070
        %4072 = vmatmul.bf16.gmra.mxu0 %v3778
        %v4073 = vpop.f32.mrf.mxu0
        %v4074 = vadd.f32 %v3816, %v4073
        %v4075 = vpop.f32.mrf.mxu0
        %v4076 = vadd.f32 %v3816, %v4075
        %4077 = vmatmul.bf16.gmra.mxu0 %v3780
        %v4078 = vpop.f32.mrf.mxu0
        %v4079 = vadd.f32 %v3816, %v4078
        %v4080 = vpop.f32.mrf.mxu0
        %v4081 = vadd.f32 %v3816, %v4080
        %4082 = vdwg.mxu0
        %4083 = vmatpush.bf16.msra.mxu0 %v3897
        %4084 = vmatpush.bf16.msra.mxu0 %v3896
        %4085 = vmatpush.bf16.msra.mxu0 %v3895
        %4086 = vmatpush.bf16.msra.mxu0 %v3894
        %4087 = vmatpush.bf16.msra.mxu0 %v3893
        %4088 = vmatpush.bf16.msra.mxu0 %v3892
        %4089 = vmatpush.bf16.msra.mxu0 %v3891
        %4090 = vmatpush.bf16.msra.mxu0 %v3890
        %4091 = vmatmul.bf16.gmra.mxu0 %v3719
        %v4092 = vpop.f32.mrf.mxu0
        %v4093 = vadd.f32 %v3924, %v4092
        %v4094 = vpop.f32.mrf.mxu0
        %v4095 = vadd.f32 %v3926, %v4094
        %4096 = vmatmul.bf16.gmra.mxu0 %v3721
        %v4097 = vpop.f32.mrf.mxu0
        %v4098 = vadd.f32 %v3929, %v4097
        %v4099 = vpop.f32.mrf.mxu0
        %v4100 = vadd.f32 %v3931, %v4099
        %4101 = vmatmul.bf16.gmra.mxu0 %v3723
        %v4102 = vpop.f32.mrf.mxu0
        %v4103 = vadd.f32 %v3934, %v4102
        %v4104 = vpop.f32.mrf.mxu0
        %v4105 = vadd.f32 %v3936, %v4104
        %4106 = vmatmul.bf16.gmra.mxu0 %v3725
        %v4107 = vpop.f32.mrf.mxu0
        %v4108 = vadd.f32 %v3939, %v4107
        %v4109 = vpop.f32.mrf.mxu0
        %v4110 = vadd.f32 %v3941, %v4109
        %4111 = vmatmul.bf16.gmra.mxu0 %v3727
        %v4112 = vpop.f32.mrf.mxu0
        %v4113 = vadd.f32 %v3944, %v4112
        %v4114 = vpop.f32.mrf.mxu0
        %v4115 = vadd.f32 %v3946, %v4114
        %4116 = vmatmul.bf16.gmra.mxu0 %v3729
        %v4117 = vpop.f32.mrf.mxu0
        %v4118 = vadd.f32 %v3949, %v4117
        %v4119 = vpop.f32.mrf.mxu0
        %v4120 = vadd.f32 %v3951, %v4119
        %4121 = vmatmul.bf16.gmra.mxu0 %v3731
        %v4122 = vpop.f32.mrf.mxu0
        %v4123 = vadd.f32 %v3954, %v4122
        %v4124 = vpop.f32.mrf.mxu0
        %v4125 = vadd.f32 %v3956, %v4124
        %4126 = vmatmul.bf16.gmra.mxu0 %v3733
        %v4127 = vpop.f32.mrf.mxu0
        %v4128 = vadd.f32 %v3959, %v4127
        %v4129 = vpop.f32.mrf.mxu0
        %v4130 = vadd.f32 %v3961, %v4129
        %4131 = vmatmul.bf16.gmra.mxu0 %v3735
        %v4132 = vpop.f32.mrf.mxu0
        %v4133 = vadd.f32 %v3964, %v4132
        %v4134 = vpop.f32.mrf.mxu0
        %v4135 = vadd.f32 %v3966, %v4134
        %4136 = vmatmul.bf16.gmra.mxu0 %v3737
        %v4137 = vpop.f32.mrf.mxu0
        %v4138 = vadd.f32 %v3969, %v4137
        %v4139 = vpop.f32.mrf.mxu0
        %v4140 = vadd.f32 %v3971, %v4139
        %4141 = vmatmul.bf16.gmra.mxu0 %v3739
        %v4142 = vpop.f32.mrf.mxu0
        %v4143 = vadd.f32 %v3974, %v4142
        %v4144 = vpop.f32.mrf.mxu0
        %v4145 = vadd.f32 %v3976, %v4144
        %4146 = vmatmul.bf16.gmra.mxu0 %v3741
        %v4147 = vpop.f32.mrf.mxu0
        %v4148 = vadd.f32 %v3979, %v4147
        %v4149 = vpop.f32.mrf.mxu0
        %v4150 = vadd.f32 %v3981, %v4149
        %4151 = vmatmul.bf16.gmra.mxu0 %v3743
        %v4152 = vpop.f32.mrf.mxu0
        %v4153 = vadd.f32 %v3984, %v4152
        %v4154 = vpop.f32.mrf.mxu0
        %v4155 = vadd.f32 %v3986, %v4154
        %4156 = vmatmul.bf16.gmra.mxu0 %v3745
        %v4157 = vpop.f32.mrf.mxu0
        %v4158 = vadd.f32 %v3989, %v4157
        %v4159 = vpop.f32.mrf.mxu0
        %v4160 = vadd.f32 %v3991, %v4159
        %4161 = vmatmul.bf16.gmra.mxu0 %v3747
        %v4162 = vpop.f32.mrf.mxu0
        %v4163 = vadd.f32 %v3994, %v4162
        %v4164 = vpop.f32.mrf.mxu0
        %v4165 = vadd.f32 %v3996, %v4164
        %4166 = vmatmul.bf16.gmra.mxu0 %v3749
        %v4167 = vpop.f32.mrf.mxu0
        %v4168 = vadd.f32 %v3999, %v4167
        %v4169 = vpop.f32.mrf.mxu0
        %v4170 = vadd.f32 %v4001, %v4169
        %4171 = vmatmul.bf16.gmra.mxu0 %v3751
        %v4172 = vpop.f32.mrf.mxu0
        %v4173 = vadd.f32 %v4004, %v4172
        %v4174 = vpop.f32.mrf.mxu0
        %v4175 = vadd.f32 %v4006, %v4174
        %4176 = vmatmul.bf16.gmra.mxu0 %v3753
        %v4177 = vpop.f32.mrf.mxu0
        %v4178 = vadd.f32 %v4009, %v4177
        %v4179 = vpop.f32.mrf.mxu0
        %v4180 = vadd.f32 %v4011, %v4179
        %4181 = vmatmul.bf16.gmra.mxu0 %v3755
        %v4182 = vpop.f32.mrf.mxu0
        %v4183 = vadd.f32 %v4014, %v4182
        %v4184 = vpop.f32.mrf.mxu0
        %v4185 = vadd.f32 %v4016, %v4184
        %4186 = vmatmul.bf16.gmra.mxu0 %v3757
        %v4187 = vpop.f32.mrf.mxu0
        %v4188 = vadd.f32 %v4019, %v4187
        %v4189 = vpop.f32.mrf.mxu0
        %v4190 = vadd.f32 %v4021, %v4189
        %4191 = vmatmul.bf16.gmra.mxu0 %v3759
        %v4192 = vpop.f32.mrf.mxu0
        %v4193 = vadd.f32 %v4024, %v4192
        %v4194 = vpop.f32.mrf.mxu0
        %v4195 = vadd.f32 %v4026, %v4194
        %4196 = vmatmul.bf16.gmra.mxu0 %v3761
        %v4197 = vpop.f32.mrf.mxu0
        %v4198 = vadd.f32 %v4029, %v4197
        %v4199 = vpop.f32.mrf.mxu0
        %v4200 = vadd.f32 %v4031, %v4199
        %4201 = vmatmul.bf16.gmra.mxu0 %v3763
        %v4202 = vpop.f32.mrf.mxu0
        %v4203 = vadd.f32 %v4034, %v4202
        %v4204 = vpop.f32.mrf.mxu0
        %v4205 = vadd.f32 %v4036, %v4204
        %4206 = vmatmul.bf16.gmra.mxu0 %v3765
        %v4207 = vpop.f32.mrf.mxu0
        %v4208 = vadd.f32 %v4039, %v4207
        %v4209 = vpop.f32.mrf.mxu0
        %v4210 = vadd.f32 %v4041, %v4209
        %4211 = vmatmul.bf16.gmra.mxu0 %v3767
        %v4212 = vpop.f32.mrf.mxu0
        %v4213 = vadd.f32 %v4044, %v4212
        %v4214 = vpop.f32.mrf.mxu0
        %v4215 = vadd.f32 %v4046, %v4214
        %4216 = vmatmul.bf16.gmra.mxu0 %v3769
        %v4217 = vpop.f32.mrf.mxu0
        %v4218 = vadd.f32 %v4049, %v4217
        %v4219 = vpop.f32.mrf.mxu0
        %v4220 = vadd.f32 %v4051, %v4219
        %4221 = vmatmul.bf16.gmra.mxu0 %v3771
        %v4222 = vpop.f32.mrf.mxu0
        %v4223 = vadd.f32 %v4054, %v4222
        %v4224 = vpop.f32.mrf.mxu0
        %v4225 = vadd.f32 %v4056, %v4224
        %4226 = vmatmul.bf16.gmra.mxu0 %v3773
        %v4227 = vpop.f32.mrf.mxu0
        %v4228 = vadd.f32 %v4059, %v4227
        %v4229 = vpop.f32.mrf.mxu0
        %v4230 = vadd.f32 %v4061, %v4229
        %4231 = vmatmul.bf16.gmra.mxu0 %v3775
        %v4232 = vpop.f32.mrf.mxu0
        %v4233 = vadd.f32 %v4064, %v4232
        %v4234 = vpop.f32.mrf.mxu0
        %v4235 = vadd.f32 %v4066, %v4234
        %4236 = vmatmul.bf16.gmra.mxu0 %v3777
        %v4237 = vpop.f32.mrf.mxu0
        %v4238 = vadd.f32 %v4069, %v4237
        %v4239 = vpop.f32.mrf.mxu0
        %v4240 = vadd.f32 %v4071, %v4239
        %4241 = vmatmul.bf16.gmra.mxu0 %v3779
        %v4242 = vpop.f32.mrf.mxu0
        %v4243 = vadd.f32 %v4074, %v4242
        %v4244 = vpop.f32.mrf.mxu0
        %v4245 = vadd.f32 %v4076, %v4244
        %4246 = vmatmul.bf16.gmra.mxu0 %v3781
        %v4247 = vpop.f32.mrf.mxu0
        %v4248 = vadd.f32 %v4079, %v4247
        %v4249 = vpop.f32.mrf.mxu0
        %v4250 = vadd.f32 %v4081, %v4249
        %4251 = vdwg.mxu0
        %v4252 = vmul.f32 %v4093, 0.02
        %v4253 = vmul.f32 %v4095, 0.02
        %v4254 = vmul.f32 %v4098, 0.02
        %v4255 = vmul.f32 %v4100, 0.02
        %v4256 = vmul.f32 %v4103, 0.02
        %v4257 = vmul.f32 %v4105, 0.02
        %v4258 = vmul.f32 %v4108, 0.02
        %v4259 = vmul.f32 %v4110, 0.02
        %v4260 = vmul.f32 %v4113, 0.02
        %v4261 = vmul.f32 %v4115, 0.02
        %v4262 = vmul.f32 %v4118, 0.02
        %v4263 = vmul.f32 %v4120, 0.02
        %v4264 = vmul.f32 %v4123, 0.02
        %v4265 = vmul.f32 %v4125, 0.02
        %v4266 = vmul.f32 %v4128, 0.02
        %v4267 = vmul.f32 %v4130, 0.02
        %v4268 = vmul.f32 %v4133, 0.02
        %v4269 = vmul.f32 %v4135, 0.02
        %v4270 = vmul.f32 %v4138, 0.02
        %v4271 = vmul.f32 %v4140, 0.02
        %v4272 = vmul.f32 %v4143, 0.02
        %v4273 = vmul.f32 %v4145, 0.02
        %v4274 = vmul.f32 %v4148, 0.02
        %v4275 = vmul.f32 %v4150, 0.02
        %v4276 = vmul.f32 %v4153, 0.02
        %v4277 = vmul.f32 %v4155, 0.02
        %v4278 = vmul.f32 %v4158, 0.02
        %v4279 = vmul.f32 %v4160, 0.02
        %v4280 = vmul.f32 %v4163, 0.02
        %v4281 = vmul.f32 %v4165, 0.02
        %v4282 = vmul.f32 %v4168, 0.02
        %v4283 = vmul.f32 %v4170, 0.02
        %v4284 = vmul.f32 %v4173, 0.02
        %v4285 = vmul.f32 %v4175, 0.02
        %v4286 = vmul.f32 %v4178, 0.02
        %v4287 = vmul.f32 %v4180, 0.02
        %v4288 = vmul.f32 %v4183, 0.02
        %v4289 = vmul.f32 %v4185, 0.02
        %v4290 = vmul.f32 %v4188, 0.02
        %v4291 = vmul.f32 %v4190, 0.02
        %v4292 = vmul.f32 %v4193, 0.02
        %v4293 = vmul.f32 %v4195, 0.02
        %v4294 = vmul.f32 %v4198, 0.02
        %v4295 = vmul.f32 %v4200, 0.02
        %v4296 = vmul.f32 %v4203, 0.02
        %v4297 = vmul.f32 %v4205, 0.02
        %v4298 = vmul.f32 %v4208, 0.02
        %v4299 = vmul.f32 %v4210, 0.02
        %v4300 = vmul.f32 %v4213, 0.02
        %v4301 = vmul.f32 %v4215, 0.02
        %v4302 = vmul.f32 %v4218, 0.02
        %v4303 = vmul.f32 %v4220, 0.02
        %v4304 = vmul.f32 %v4223, 0.02
        %v4305 = vmul.f32 %v4225, 0.02
        %v4306 = vmul.f32 %v4228, 0.02
        %v4307 = vmul.f32 %v4230, 0.02
        %v4308 = vmul.f32 %v4233, 0.02
        %v4309 = vmul.f32 %v4235, 0.02
        %v4310 = vmul.f32 %v4238, 0.02
        %v4311 = vmul.f32 %v4240, 0.02
        %v4312 = vmul.f32 %v4243, 0.02
        %v4313 = vmul.f32 %v4245, 0.02
        %v4314 = vmul.f32 %v4248, 0.02
        %v4315 = vmul.f32 %v4250, 0.02
        %v4316 = vmax.f32 %v4093, %v4252
        %v4317 = vmax.f32 %v4095, %v4253
        %v4318 = vmax.f32 %v4098, %v4254
        %v4319 = vmax.f32 %v4100, %v4255
        %v4320 = vmax.f32 %v4103, %v4256
        %v4321 = vmax.f32 %v4105, %v4257
        %v4322 = vmax.f32 %v4108, %v4258
        %v4323 = vmax.f32 %v4110, %v4259
        %v4324 = vmax.f32 %v4113, %v4260
        %v4325 = vmax.f32 %v4115, %v4261
        %v4326 = vmax.f32 %v4118, %v4262
        %v4327 = vmax.f32 %v4120, %v4263
        %v4328 = vmax.f32 %v4123, %v4264
        %v4329 = vmax.f32 %v4125, %v4265
        %v4330 = vmax.f32 %v4128, %v4266
        %v4331 = vmax.f32 %v4130, %v4267
        %v4332 = vmax.f32 %v4133, %v4268
        %v4333 = vmax.f32 %v4135, %v4269
        %v4334 = vmax.f32 %v4138, %v4270
        %v4335 = vmax.f32 %v4140, %v4271
        %v4336 = vmax.f32 %v4143, %v4272
        %v4337 = vmax.f32 %v4145, %v4273
        %v4338 = vmax.f32 %v4148, %v4274
        %v4339 = vmax.f32 %v4150, %v4275
        %v4340 = vmax.f32 %v4153, %v4276
        %v4341 = vmax.f32 %v4155, %v4277
        %v4342 = vmax.f32 %v4158, %v4278
        %v4343 = vmax.f32 %v4160, %v4279
        %v4344 = vmax.f32 %v4163, %v4280
        %v4345 = vmax.f32 %v4165, %v4281
        %v4346 = vmax.f32 %v4168, %v4282
        %v4347 = vmax.f32 %v4170, %v4283
        %v4348 = vmax.f32 %v4173, %v4284
        %v4349 = vmax.f32 %v4175, %v4285
        %v4350 = vmax.f32 %v4178, %v4286
        %v4351 = vmax.f32 %v4180, %v4287
        %v4352 = vmax.f32 %v4183, %v4288
        %v4353 = vmax.f32 %v4185, %v4289
        %v4354 = vmax.f32 %v4188, %v4290
        %v4355 = vmax.f32 %v4190, %v4291
        %v4356 = vmax.f32 %v4193, %v4292
        %v4357 = vmax.f32 %v4195, %v4293
        %v4358 = vmax.f32 %v4198, %v4294
        %v4359 = vmax.f32 %v4200, %v4295
        %v4360 = vmax.f32 %v4203, %v4296
        %v4361 = vmax.f32 %v4205, %v4297
        %v4362 = vmax.f32 %v4208, %v4298
        %v4363 = vmax.f32 %v4210, %v4299
        %v4364 = vmax.f32 %v4213, %v4300
        %v4365 = vmax.f32 %v4215, %v4301
        %v4366 = vmax.f32 %v4218, %v4302
        %v4367 = vmax.f32 %v4220, %v4303
        %v4368 = vmax.f32 %v4223, %v4304
        %v4369 = vmax.f32 %v4225, %v4305
        %v4370 = vmax.f32 %v4228, %v4306
        %v4371 = vmax.f32 %v4230, %v4307
        %v4372 = vmax.f32 %v4233, %v4308
        %v4373 = vmax.f32 %v4235, %v4309
        %v4374 = vmax.f32 %v4238, %v4310
        %v4375 = vmax.f32 %v4240, %v4311
        %v4376 = vmax.f32 %v4243, %v4312
        %v4377 = vmax.f32 %v4245, %v4313
        %v4378 = vmax.f32 %v4248, %v4314
        %v4379 = vmax.f32 %v4250, %v4315
        %v4380 = vpack.c.bf16 %v4317, %v4316
        %v4381 = vpack.c.bf16 %v4319, %v4318
        %v4382 = vpack.c.bf16 %v4321, %v4320
        %v4383 = vpack.c.bf16 %v4323, %v4322
        %v4384 = vpack.c.bf16 %v4325, %v4324
        %v4385 = vpack.c.bf16 %v4327, %v4326
        %v4386 = vpack.c.bf16 %v4329, %v4328
        %v4387 = vpack.c.bf16 %v4331, %v4330
        %v4388 = vpack.c.bf16 %v4333, %v4332
        %v4389 = vpack.c.bf16 %v4335, %v4334
        %v4390 = vpack.c.bf16 %v4337, %v4336
        %v4391 = vpack.c.bf16 %v4339, %v4338
        %v4392 = vpack.c.bf16 %v4341, %v4340
        %v4393 = vpack.c.bf16 %v4343, %v4342
        %v4394 = vpack.c.bf16 %v4345, %v4344
        %v4395 = vpack.c.bf16 %v4347, %v4346
        %v4396 = vpack.c.bf16 %v4349, %v4348
        %v4397 = vpack.c.bf16 %v4351, %v4350
        %v4398 = vpack.c.bf16 %v4353, %v4352
        %v4399 = vpack.c.bf16 %v4355, %v4354
        %v4400 = vpack.c.bf16 %v4357, %v4356
        %v4401 = vpack.c.bf16 %v4359, %v4358
        %v4402 = vpack.c.bf16 %v4361, %v4360
        %v4403 = vpack.c.bf16 %v4363, %v4362
        %v4404 = vpack.c.bf16 %v4365, %v4364
        %v4405 = vpack.c.bf16 %v4367, %v4366
        %v4406 = vpack.c.bf16 %v4369, %v4368
        %v4407 = vpack.c.bf16 %v4371, %v4370
        %v4408 = vpack.c.bf16 %v4373, %v4372
        %v4409 = vpack.c.bf16 %v4375, %v4374
        %v4410 = vpack.c.bf16 %v4377, %v4376
        %v4411 = vpack.c.bf16 %v4379, %v4378
        %v4412 = vld [vmem:[%s9] sm:$0xf]
        %v4413 = vld [vmem:[%s9 + $0x4] sm:$0xf]
        %v4414 = vld [vmem:[%s9 + $0x8] sm:$0xf]
        %v4415 = vld [vmem:[%s9 + $0xc] sm:$0xf]
        %v4416 = vld [vmem:[%s9 + $0x10] sm:$0xf]
        %v4417 = vld [vmem:[%s9 + $0x14] sm:$0xf]
        %v4418 = vld [vmem:[%s9 + $0x18] sm:$0xf]
        %v4419 = vld [vmem:[%s9 + $0x1c] sm:$0xf]
        %v4420 = vld [vmem:[%s9 + $0x20] sm:$0xf]
        %v4421 = vld [vmem:[%s9 + $0x24] sm:$0xf]
        %v4422 = vld [vmem:[%s9 + $0x28] sm:$0xf]
        %v4423 = vld [vmem:[%s9 + $0x2c] sm:$0xf]
        %v4424 = vld [vmem:[%s9 + $0x30] sm:$0xf]
        %v4425 = vld [vmem:[%s9 + $0x34] sm:$0xf]
        %v4426 = vld [vmem:[%s9 + $0x38] sm:$0xf]
        %v4427 = vld [vmem:[%s9 + $0x3c] sm:$0xf]
        %v4428 = vld [vmem:[%s10] sm:$0x1]
        %v4430 = vperm.slane %v4428, 0
        %v4448 = vunpack.c.l.b16 %v4412
        %v4449 = vunpack.c.l.b16 %v4413
        %v4450 = vunpack.c.l.b16 %v4414
        %v4451 = vunpack.c.l.b16 %v4415
        %v4452 = vunpack.c.l.b16 %v4416
        %v4453 = vunpack.c.l.b16 %v4417
        %v4454 = vunpack.c.l.b16 %v4418
        %v4455 = vunpack.c.l.b16 %v4419
        %v4456 = vunpack.c.l.b16 %v4420
        %v4457 = vunpack.c.l.b16 %v4421
        %v4458 = vunpack.c.l.b16 %v4422
        %v4459 = vunpack.c.l.b16 %v4423
        %v4460 = vunpack.c.l.b16 %v4424
        %v4461 = vunpack.c.l.b16 %v4425
        %v4462 = vunpack.c.l.b16 %v4426
        %v4463 = vunpack.c.l.b16 %v4427
        %v4464 = vpack.c.b16 %v4449, %v4448
        %v4465 = vpack.c.b16 %v4451, %v4450
        %v4466 = vpack.c.b16 %v4453, %v4452
        %v4467 = vpack.c.b16 %v4455, %v4454
        %v4468 = vpack.c.b16 %v4457, %v4456
        %v4469 = vpack.c.b16 %v4459, %v4458
        %v4470 = vpack.c.b16 %v4461, %v4460
        %v4471 = vpack.c.b16 %v4463, %v4462
        %4480 = vmatpush.bf16.msra.mxu0 %v4471
        %4481 = vmatpush.bf16.msra.mxu0 %v4470
        %4482 = vmatpush.bf16.msra.mxu0 %v4469
        %4483 = vmatpush.bf16.msra.mxu0 %v4468
        %4484 = vmatpush.bf16.msra.mxu0 %v4467
        %4485 = vmatpush.bf16.msra.mxu0 %v4466
        %4486 = vmatpush.bf16.msra.mxu0 %v4465
        %4487 = vmatpush.bf16.msra.mxu0 %v4464
        %4488 = vmatmul.bf16.gmra.mxu0 %v4380
        %v4489 = vpop.f32.mrf.mxu0
        %v4490 = vadd.f32 %v4430, %v4489
        %v4491 = vpop.f32.mrf.mxu0
        %v4492 = vadd.f32 %v4430, %v4491
        %4493 = vmatmul.bf16.gmra.mxu0 %v4381
        %v4494 = vpop.f32.mrf.mxu0
        %v4495 = vadd.f32 %v4430, %v4494
        %v4496 = vpop.f32.mrf.mxu0
        %v4497 = vadd.f32 %v4430, %v4496
        %4498 = vmatmul.bf16.gmra.mxu0 %v4382
        %v4499 = vpop.f32.mrf.mxu0
        %v4500 = vadd.f32 %v4430, %v4499
        %v4501 = vpop.f32.mrf.mxu0
        %v4502 = vadd.f32 %v4430, %v4501
        %4503 = vmatmul.bf16.gmra.mxu0 %v4383
        %v4504 = vpop.f32.mrf.mxu0
        %v4505 = vadd.f32 %v4430, %v4504
        %v4506 = vpop.f32.mrf.mxu0
        %v4507 = vadd.f32 %v4430, %v4506
        %4508 = vmatmul.bf16.gmra.mxu0 %v4384
        %v4509 = vpop.f32.mrf.mxu0
        %v4510 = vadd.f32 %v4430, %v4509
        %v4511 = vpop.f32.mrf.mxu0
        %v4512 = vadd.f32 %v4430, %v4511
        %4513 = vmatmul.bf16.gmra.mxu0 %v4385
        %v4514 = vpop.f32.mrf.mxu0
        %v4515 = vadd.f32 %v4430, %v4514
        %v4516 = vpop.f32.mrf.mxu0
        %v4517 = vadd.f32 %v4430, %v4516
        %4518 = vmatmul.bf16.gmra.mxu0 %v4386
        %v4519 = vpop.f32.mrf.mxu0
        %v4520 = vadd.f32 %v4430, %v4519
        %v4521 = vpop.f32.mrf.mxu0
        %v4522 = vadd.f32 %v4430, %v4521
        %4523 = vmatmul.bf16.gmra.mxu0 %v4387
        %v4524 = vpop.f32.mrf.mxu0
        %v4525 = vadd.f32 %v4430, %v4524
        %v4526 = vpop.f32.mrf.mxu0
        %v4527 = vadd.f32 %v4430, %v4526
        %4528 = vmatmul.bf16.gmra.mxu0 %v4388
        %v4529 = vpop.f32.mrf.mxu0
        %v4530 = vadd.f32 %v4430, %v4529
        %v4531 = vpop.f32.mrf.mxu0
        %v4532 = vadd.f32 %v4430, %v4531
        %4533 = vmatmul.bf16.gmra.mxu0 %v4389
        %v4534 = vpop.f32.mrf.mxu0
        %v4535 = vadd.f32 %v4430, %v4534
        %v4536 = vpop.f32.mrf.mxu0
        %v4537 = vadd.f32 %v4430, %v4536
        %4538 = vmatmul.bf16.gmra.mxu0 %v4390
        %v4539 = vpop.f32.mrf.mxu0
        %v4540 = vadd.f32 %v4430, %v4539
        %v4541 = vpop.f32.mrf.mxu0
        %v4542 = vadd.f32 %v4430, %v4541
        %4543 = vmatmul.bf16.gmra.mxu0 %v4391
        %v4544 = vpop.f32.mrf.mxu0
        %v4545 = vadd.f32 %v4430, %v4544
        %v4546 = vpop.f32.mrf.mxu0
        %v4547 = vadd.f32 %v4430, %v4546
        %4548 = vmatmul.bf16.gmra.mxu0 %v4392
        %v4549 = vpop.f32.mrf.mxu0
        %v4550 = vadd.f32 %v4430, %v4549
        %v4551 = vpop.f32.mrf.mxu0
        %v4552 = vadd.f32 %v4430, %v4551
        %4553 = vmatmul.bf16.gmra.mxu0 %v4393
        %v4554 = vpop.f32.mrf.mxu0
        %v4555 = vadd.f32 %v4430, %v4554
        %v4556 = vpop.f32.mrf.mxu0
        %v4557 = vadd.f32 %v4430, %v4556
        %4558 = vmatmul.bf16.gmra.mxu0 %v4394
        %v4559 = vpop.f32.mrf.mxu0
        %v4560 = vadd.f32 %v4430, %v4559
        %v4561 = vpop.f32.mrf.mxu0
        %v4562 = vadd.f32 %v4430, %v4561
        %4563 = vmatmul.bf16.gmra.mxu0 %v4395
        %v4564 = vpop.f32.mrf.mxu0
        %v4565 = vadd.f32 %v4430, %v4564
        %v4566 = vpop.f32.mrf.mxu0
        %v4567 = vadd.f32 %v4430, %v4566
        %4568 = vmatmul.bf16.gmra.mxu0 %v4396
        %v4569 = vpop.f32.mrf.mxu0
        %v4570 = vadd.f32 %v4430, %v4569
        %v4571 = vpop.f32.mrf.mxu0
        %v4572 = vadd.f32 %v4430, %v4571
        %4573 = vmatmul.bf16.gmra.mxu0 %v4397
        %v4574 = vpop.f32.mrf.mxu0
        %v4575 = vadd.f32 %v4430, %v4574
        %v4576 = vpop.f32.mrf.mxu0
        %v4577 = vadd.f32 %v4430, %v4576
        %4578 = vmatmul.bf16.gmra.mxu0 %v4398
        %v4579 = vpop.f32.mrf.mxu0
        %v4580 = vadd.f32 %v4430, %v4579
        %v4581 = vpop.f32.mrf.mxu0
        %v4582 = vadd.f32 %v4430, %v4581
        %4583 = vmatmul.bf16.gmra.mxu0 %v4399
        %v4584 = vpop.f32.mrf.mxu0
        %v4585 = vadd.f32 %v4430, %v4584
        %v4586 = vpop.f32.mrf.mxu0
        %v4587 = vadd.f32 %v4430, %v4586
        %4588 = vmatmul.bf16.gmra.mxu0 %v4400
        %v4589 = vpop.f32.mrf.mxu0
        %v4590 = vadd.f32 %v4430, %v4589
        %v4591 = vpop.f32.mrf.mxu0
        %v4592 = vadd.f32 %v4430, %v4591
        %4593 = vmatmul.bf16.gmra.mxu0 %v4401
        %v4594 = vpop.f32.mrf.mxu0
        %v4595 = vadd.f32 %v4430, %v4594
        %v4596 = vpop.f32.mrf.mxu0
        %v4597 = vadd.f32 %v4430, %v4596
        %4598 = vmatmul.bf16.gmra.mxu0 %v4402
        %v4599 = vpop.f32.mrf.mxu0
        %v4600 = vadd.f32 %v4430, %v4599
        %v4601 = vpop.f32.mrf.mxu0
        %v4602 = vadd.f32 %v4430, %v4601
        %4603 = vmatmul.bf16.gmra.mxu0 %v4403
        %v4604 = vpop.f32.mrf.mxu0
        %v4605 = vadd.f32 %v4430, %v4604
        %v4606 = vpop.f32.mrf.mxu0
        %v4607 = vadd.f32 %v4430, %v4606
        %4608 = vmatmul.bf16.gmra.mxu0 %v4404
        %v4609 = vpop.f32.mrf.mxu0
        %v4610 = vadd.f32 %v4430, %v4609
        %v4611 = vpop.f32.mrf.mxu0
        %v4612 = vadd.f32 %v4430, %v4611
        %4613 = vmatmul.bf16.gmra.mxu0 %v4405
        %v4614 = vpop.f32.mrf.mxu0
        %v4615 = vadd.f32 %v4430, %v4614
        %v4616 = vpop.f32.mrf.mxu0
        %v4617 = vadd.f32 %v4430, %v4616
        %4618 = vmatmul.bf16.gmra.mxu0 %v4406
        %v4619 = vpop.f32.mrf.mxu0
        %v4620 = vadd.f32 %v4430, %v4619
        %v4621 = vpop.f32.mrf.mxu0
        %v4622 = vadd.f32 %v4430, %v4621
        %4623 = vmatmul.bf16.gmra.mxu0 %v4407
        %v4624 = vpop.f32.mrf.mxu0
        %v4625 = vadd.f32 %v4430, %v4624
        %v4626 = vpop.f32.mrf.mxu0
        %v4627 = vadd.f32 %v4430, %v4626
        %4628 = vmatmul.bf16.gmra.mxu0 %v4408
        %v4629 = vpop.f32.mrf.mxu0
        %v4630 = vadd.f32 %v4430, %v4629
        %v4631 = vpop.f32.mrf.mxu0
        %v4632 = vadd.f32 %v4430, %v4631
        %4633 = vmatmul.bf16.gmra.mxu0 %v4409
        %v4634 = vpop.f32.mrf.mxu0
        %v4635 = vadd.f32 %v4430, %v4634
        %v4636 = vpop.f32.mrf.mxu0
        %v4637 = vadd.f32 %v4430, %v4636
        %4638 = vmatmul.bf16.gmra.mxu0 %v4410
        %v4639 = vpop.f32.mrf.mxu0
        %v4640 = vadd.f32 %v4430, %v4639
        %v4641 = vpop.f32.mrf.mxu0
        %v4642 = vadd.f32 %v4430, %v4641
        %4643 = vmatmul.bf16.gmra.mxu0 %v4411
        %v4644 = vpop.f32.mrf.mxu0
        %v4645 = vadd.f32 %v4430, %v4644
        %v4646 = vpop.f32.mrf.mxu0
        %v4647 = vadd.f32 %v4430, %v4646
        %4648 = vdwg.mxu0
        %v4649 = vmul.f32 %v4490, 0.02
        %v4650 = vmul.f32 %v4492, 0.02
        %v4651 = vmul.f32 %v4495, 0.02
        %v4652 = vmul.f32 %v4497, 0.02
        %v4653 = vmul.f32 %v4500, 0.02
        %v4654 = vmul.f32 %v4502, 0.02
        %v4655 = vmul.f32 %v4505, 0.02
        %v4656 = vmul.f32 %v4507, 0.02
        %v4657 = vmul.f32 %v4510, 0.02
        %v4658 = vmul.f32 %v4512, 0.02
        %v4659 = vmul.f32 %v4515, 0.02
        %v4660 = vmul.f32 %v4517, 0.02
        %v4661 = vmul.f32 %v4520, 0.02
        %v4662 = vmul.f32 %v4522, 0.02
        %v4663 = vmul.f32 %v4525, 0.02
        %v4664 = vmul.f32 %v4527, 0.02
        %v4665 = vmul.f32 %v4530, 0.02
        %v4666 = vmul.f32 %v4532, 0.02
        %v4667 = vmul.f32 %v4535, 0.02
        %v4668 = vmul.f32 %v4537, 0.02
        %v4669 = vmul.f32 %v4540, 0.02
        %v4670 = vmul.f32 %v4542, 0.02
        %v4671 = vmul.f32 %v4545, 0.02
        %v4672 = vmul.f32 %v4547, 0.02
        %v4673 = vmul.f32 %v4550, 0.02
        %v4674 = vmul.f32 %v4552, 0.02
        %v4675 = vmul.f32 %v4555, 0.02
        %v4676 = vmul.f32 %v4557, 0.02
        %v4677 = vmul.f32 %v4560, 0.02
        %v4678 = vmul.f32 %v4562, 0.02
        %v4679 = vmul.f32 %v4565, 0.02
        %v4680 = vmul.f32 %v4567, 0.02
        %v4681 = vmul.f32 %v4570, 0.02
        %v4682 = vmul.f32 %v4572, 0.02
        %v4683 = vmul.f32 %v4575, 0.02
        %v4684 = vmul.f32 %v4577, 0.02
        %v4685 = vmul.f32 %v4580, 0.02
        %v4686 = vmul.f32 %v4582, 0.02
        %v4687 = vmul.f32 %v4585, 0.02
        %v4688 = vmul.f32 %v4587, 0.02
        %v4689 = vmul.f32 %v4590, 0.02
        %v4690 = vmul.f32 %v4592, 0.02
        %v4691 = vmul.f32 %v4595, 0.02
        %v4692 = vmul.f32 %v4597, 0.02
        %v4693 = vmul.f32 %v4600, 0.02
        %v4694 = vmul.f32 %v4602, 0.02
        %v4695 = vmul.f32 %v4605, 0.02
        %v4696 = vmul.f32 %v4607, 0.02
        %v4697 = vmul.f32 %v4610, 0.02
        %v4698 = vmul.f32 %v4612, 0.02
        %v4699 = vmul.f32 %v4615, 0.02
        %v4700 = vmul.f32 %v4617, 0.02
        %v4701 = vmul.f32 %v4620, 0.02
        %v4702 = vmul.f32 %v4622, 0.02
        %v4703 = vmul.f32 %v4625, 0.02
        %v4704 = vmul.f32 %v4627, 0.02
        %v4705 = vmul.f32 %v4630, 0.02
        %v4706 = vmul.f32 %v4632, 0.02
        %v4707 = vmul.f32 %v4635, 0.02
        %v4708 = vmul.f32 %v4637, 0.02
        %v4709 = vmul.f32 %v4640, 0.02
        %v4710 = vmul.f32 %v4642, 0.02
        %v4711 = vmul.f32 %v4645, 0.02
        %v4712 = vmul.f32 %v4647, 0.02
        %v4713 = vmax.f32 %v4490, %v4649
        %v4714 = vmax.f32 %v4492, %v4650
        %v4715 = vmax.f32 %v4495, %v4651
        %v4716 = vmax.f32 %v4497, %v4652
        %v4717 = vmax.f32 %v4500, %v4653
        %v4718 = vmax.f32 %v4502, %v4654
        %v4719 = vmax.f32 %v4505, %v4655
        %v4720 = vmax.f32 %v4507, %v4656
        %v4721 = vmax.f32 %v4510, %v4657
        %v4722 = vmax.f32 %v4512, %v4658
        %v4723 = vmax.f32 %v4515, %v4659
        %v4724 = vmax.f32 %v4517, %v4660
        %v4725 = vmax.f32 %v4520, %v4661
        %v4726 = vmax.f32 %v4522, %v4662
        %v4727 = vmax.f32 %v4525, %v4663
        %v4728 = vmax.f32 %v4527, %v4664
        %v4729 = vmax.f32 %v4530, %v4665
        %v4730 = vmax.f32 %v4532, %v4666
        %v4731 = vmax.f32 %v4535, %v4667
        %v4732 = vmax.f32 %v4537, %v4668
        %v4733 = vmax.f32 %v4540, %v4669
        %v4734 = vmax.f32 %v4542, %v4670
        %v4735 = vmax.f32 %v4545, %v4671
        %v4736 = vmax.f32 %v4547, %v4672
        %v4737 = vmax.f32 %v4550, %v4673
        %v4738 = vmax.f32 %v4552, %v4674
        %v4739 = vmax.f32 %v4555, %v4675
        %v4740 = vmax.f32 %v4557, %v4676
        %v4741 = vmax.f32 %v4560, %v4677
        %v4742 = vmax.f32 %v4562, %v4678
        %v4743 = vmax.f32 %v4565, %v4679
        %v4744 = vmax.f32 %v4567, %v4680
        %v4745 = vmax.f32 %v4570, %v4681
        %v4746 = vmax.f32 %v4572, %v4682
        %v4747 = vmax.f32 %v4575, %v4683
        %v4748 = vmax.f32 %v4577, %v4684
        %v4749 = vmax.f32 %v4580, %v4685
        %v4750 = vmax.f32 %v4582, %v4686
        %v4751 = vmax.f32 %v4585, %v4687
        %v4752 = vmax.f32 %v4587, %v4688
        %v4753 = vmax.f32 %v4590, %v4689
        %v4754 = vmax.f32 %v4592, %v4690
        %v4755 = vmax.f32 %v4595, %v4691
        %v4756 = vmax.f32 %v4597, %v4692
        %v4757 = vmax.f32 %v4600, %v4693
        %v4758 = vmax.f32 %v4602, %v4694
        %v4759 = vmax.f32 %v4605, %v4695
        %v4760 = vmax.f32 %v4607, %v4696
        %v4761 = vmax.f32 %v4610, %v4697
        %v4762 = vmax.f32 %v4612, %v4698
        %v4763 = vmax.f32 %v4615, %v4699
        %v4764 = vmax.f32 %v4617, %v4700
        %v4765 = vmax.f32 %v4620, %v4701
        %v4766 = vmax.f32 %v4622, %v4702
        %v4767 = vmax.f32 %v4625, %v4703
        %v4768 = vmax.f32 %v4627, %v4704
        %v4769 = vmax.f32 %v4630, %v4705
        %v4770 = vmax.f32 %v4632, %v4706
        %v4771 = vmax.f32 %v4635, %v4707
        %v4772 = vmax.f32 %v4637, %v4708
        %v4773 = vmax.f32 %v4640, %v4709
        %v4774 = vmax.f32 %v4642, %v4710
        %v4775 = vmax.f32 %v4645, %v4711
        %v4776 = vmax.f32 %v4647, %v4712
        %v4777 = vpack.c.bf16 %v4714, %v4713
        %v4778 = vpack.c.bf16 %v4716, %v4715
        %v4779 = vpack.c.bf16 %v4718, %v4717
        %v4780 = vpack.c.bf16 %v4720, %v4719
        %v4781 = vpack.c.bf16 %v4722, %v4721
        %v4782 = vpack.c.bf16 %v4724, %v4723
        %v4783 = vpack.c.bf16 %v4726, %v4725
        %v4784 = vpack.c.bf16 %v4728, %v4727
        %v4785 = vpack.c.bf16 %v4730, %v4729
        %v4786 = vpack.c.bf16 %v4732, %v4731
        %v4787 = vpack.c.bf16 %v4734, %v4733
        %v4788 = vpack.c.bf16 %v4736, %v4735
        %v4789 = vpack.c.bf16 %v4738, %v4737
        %v4790 = vpack.c.bf16 %v4740, %v4739
        %v4791 = vpack.c.bf16 %v4742, %v4741
        %v4792 = vpack.c.bf16 %v4744, %v4743
        %v4793 = vpack.c.bf16 %v4746, %v4745
        %v4794 = vpack.c.bf16 %v4748, %v4747
        %v4795 = vpack.c.bf16 %v4750, %v4749
        %v4796 = vpack.c.bf16 %v4752, %v4751
        %v4797 = vpack.c.bf16 %v4754, %v4753
        %v4798 = vpack.c.bf16 %v4756, %v4755
        %v4799 = vpack.c.bf16 %v4758, %v4757
        %v4800 = vpack.c.bf16 %v4760, %v4759
        %v4801 = vpack.c.bf16 %v4762, %v4761
        %v4802 = vpack.c.bf16 %v4764, %v4763
        %v4803 = vpack.c.bf16 %v4766, %v4765
        %v4804 = vpack.c.bf16 %v4768, %v4767
        %v4805 = vpack.c.bf16 %v4770, %v4769
        %v4806 = vpack.c.bf16 %v4772, %v4771
        %v4807 = vpack.c.bf16 %v4774, %v4773
        %v4808 = vpack.c.bf16 %v4776, %v4775
        %v4809 = vld [vmem:[%s11] sm:$0xf]
        %v4810 = vld [vmem:[%s11 + $0x4] sm:$0xf]
        %v4811 = vld [vmem:[%s11 + $0x8] sm:$0xf]
        %v4812 = vld [vmem:[%s11 + $0xc] sm:$0xf]
        %v4813 = vld [vmem:[%s11 + $0x10] sm:$0xf]
        %v4814 = vld [vmem:[%s11 + $0x14] sm:$0xf]
        %v4815 = vld [vmem:[%s11 + $0x18] sm:$0xf]
        %v4816 = vld [vmem:[%s11 + $0x1c] sm:$0xf]
        %v4817 = vld [vmem:[%s12] sm:$0x1]
        %v4819 = vperm.slane %v4817, 0
        %v4829 = vunpack.c.l.b16 %v4809
        %v4830 = vunpack.c.l.b16 %v4810
        %v4831 = vunpack.c.l.b16 %v4811
        %v4832 = vunpack.c.l.b16 %v4812
        %v4833 = vunpack.c.l.b16 %v4813
        %v4834 = vunpack.c.l.b16 %v4814
        %v4835 = vunpack.c.l.b16 %v4815
        %v4836 = vunpack.c.l.b16 %v4816
        %v4837 = vpack.c.b16 %v4830, %v4829
        %v4838 = vpack.c.b16 %v4832, %v4831
        %v4839 = vpack.c.b16 %v4834, %v4833
        %v4840 = vpack.c.b16 %v4836, %v4835
        %vm4845 = vcmask 523264
        %v4847 = vsel %vm4845, %v4777, 0
        %v4850 = vsel %vm4845, %v4778, 0
        %v4853 = vsel %vm4845, %v4779, 0
        %v4856 = vsel %vm4845, %v4780, 0
        %v4859 = vsel %vm4845, %v4781, 0
        %v4862 = vsel %vm4845, %v4782, 0
        %v4865 = vsel %vm4845, %v4783, 0
        %v4868 = vsel %vm4845, %v4784, 0
        %v4871 = vsel %vm4845, %v4785, 0
        %v4874 = vsel %vm4845, %v4786, 0
        %v4877 = vsel %vm4845, %v4787, 0
        %v4880 = vsel %vm4845, %v4788, 0
        %v4883 = vsel %vm4845, %v4789, 0
        %v4886 = vsel %vm4845, %v4790, 0
        %v4889 = vsel %vm4845, %v4791, 0
        %v4892 = vsel %vm4845, %v4792, 0
        %v4895 = vsel %vm4845, %v4793, 0
        %v4898 = vsel %vm4845, %v4794, 0
        %v4901 = vsel %vm4845, %v4795, 0
        %v4904 = vsel %vm4845, %v4796, 0
        %v4907 = vsel %vm4845, %v4797, 0
        %v4910 = vsel %vm4845, %v4798, 0
        %v4913 = vsel %vm4845, %v4799, 0
        %v4916 = vsel %vm4845, %v4800, 0
        %v4919 = vsel %vm4845, %v4801, 0
        %v4922 = vsel %vm4845, %v4802, 0
        %v4925 = vsel %vm4845, %v4803, 0
        %v4928 = vsel %vm4845, %v4804, 0
        %v4931 = vsel %vm4845, %v4805, 0
        %v4934 = vsel %vm4845, %v4806, 0
        %v4937 = vsel %vm4845, %v4807, 0
        %v4940 = vsel %vm4845, %v4808, 0
        %4942 = vmatpush.bf16.msra.mxu0 0
        %4943 = vmatpush.bf16.msra.mxu0 0
        %4944 = vmatpush.bf16.msra.mxu0 0
        %4945 = vmatpush.bf16.msra.mxu0 0
        %4946 = vmatpush.bf16.msra.mxu0 %v4840
        %4947 = vmatpush.bf16.msra.mxu0 %v4839
        %4948 = vmatpush.bf16.msra.mxu0 %v4838
        %4949 = vmatpush.bf16.msra.mxu0 %v4837
        %4950 = vmatmul.bf16.gmra.mxu0 %v4847
        %v4951 = vpop.f32.mrf.mxu0
        %v4952 = vadd.f32 %v4819, %v4951
        %v4953 = vpop.f32.mrf.mxu0
        %v4954 = vadd.f32 %v4819, %v4953
        %4955 = vmatmul.bf16.gmra.mxu0 %v4850
        %v4956 = vpop.f32.mrf.mxu0
        %v4957 = vadd.f32 %v4819, %v4956
        %v4958 = vpop.f32.mrf.mxu0
        %v4959 = vadd.f32 %v4819, %v4958
        %4960 = vmatmul.bf16.gmra.mxu0 %v4853
        %v4961 = vpop.f32.mrf.mxu0
        %v4962 = vadd.f32 %v4819, %v4961
        %v4963 = vpop.f32.mrf.mxu0
        %v4964 = vadd.f32 %v4819, %v4963
        %4965 = vmatmul.bf16.gmra.mxu0 %v4856
        %v4966 = vpop.f32.mrf.mxu0
        %v4967 = vadd.f32 %v4819, %v4966
        %v4968 = vpop.f32.mrf.mxu0
        %v4969 = vadd.f32 %v4819, %v4968
        %4970 = vmatmul.bf16.gmra.mxu0 %v4859
        %v4971 = vpop.f32.mrf.mxu0
        %v4972 = vadd.f32 %v4819, %v4971
        %v4973 = vpop.f32.mrf.mxu0
        %v4974 = vadd.f32 %v4819, %v4973
        %4975 = vmatmul.bf16.gmra.mxu0 %v4862
        %v4976 = vpop.f32.mrf.mxu0
        %v4977 = vadd.f32 %v4819, %v4976
        %v4978 = vpop.f32.mrf.mxu0
        %v4979 = vadd.f32 %v4819, %v4978
        %4980 = vmatmul.bf16.gmra.mxu0 %v4865
        %v4981 = vpop.f32.mrf.mxu0
        %v4982 = vadd.f32 %v4819, %v4981
        %v4983 = vpop.f32.mrf.mxu0
        %v4984 = vadd.f32 %v4819, %v4983
        %4985 = vmatmul.bf16.gmra.mxu0 %v4868
        %v4986 = vpop.f32.mrf.mxu0
        %v4987 = vadd.f32 %v4819, %v4986
        %v4988 = vpop.f32.mrf.mxu0
        %v4989 = vadd.f32 %v4819, %v4988
        %4990 = vmatmul.bf16.gmra.mxu0 %v4871
        %v4991 = vpop.f32.mrf.mxu0
        %v4992 = vadd.f32 %v4819, %v4991
        %v4993 = vpop.f32.mrf.mxu0
        %v4994 = vadd.f32 %v4819, %v4993
        %4995 = vmatmul.bf16.gmra.mxu0 %v4874
        %v4996 = vpop.f32.mrf.mxu0
        %v4997 = vadd.f32 %v4819, %v4996
        %v4998 = vpop.f32.mrf.mxu0
        %v4999 = vadd.f32 %v4819, %v4998
        %5000 = vmatmul.bf16.gmra.mxu0 %v4877
        %v5001 = vpop.f32.mrf.mxu0
        %v5002 = vadd.f32 %v4819, %v5001
        %v5003 = vpop.f32.mrf.mxu0
        %v5004 = vadd.f32 %v4819, %v5003
        %5005 = vmatmul.bf16.gmra.mxu0 %v4880
        %v5006 = vpop.f32.mrf.mxu0
        %v5007 = vadd.f32 %v4819, %v5006
        %v5008 = vpop.f32.mrf.mxu0
        %v5009 = vadd.f32 %v4819, %v5008
        %5010 = vmatmul.bf16.gmra.mxu0 %v4883
        %v5011 = vpop.f32.mrf.mxu0
        %v5012 = vadd.f32 %v4819, %v5011
        %v5013 = vpop.f32.mrf.mxu0
        %v5014 = vadd.f32 %v4819, %v5013
        %5015 = vmatmul.bf16.gmra.mxu0 %v4886
        %v5016 = vpop.f32.mrf.mxu0
        %v5017 = vadd.f32 %v4819, %v5016
        %v5018 = vpop.f32.mrf.mxu0
        %v5019 = vadd.f32 %v4819, %v5018
        %5020 = vmatmul.bf16.gmra.mxu0 %v4889
        %v5021 = vpop.f32.mrf.mxu0
        %v5022 = vadd.f32 %v4819, %v5021
        %v5023 = vpop.f32.mrf.mxu0
        %v5024 = vadd.f32 %v4819, %v5023
        %5025 = vmatmul.bf16.gmra.mxu0 %v4892
        %v5026 = vpop.f32.mrf.mxu0
        %v5027 = vadd.f32 %v4819, %v5026
        %v5028 = vpop.f32.mrf.mxu0
        %v5029 = vadd.f32 %v4819, %v5028
        %5030 = vmatmul.bf16.gmra.mxu0 %v4895
        %v5031 = vpop.f32.mrf.mxu0
        %v5032 = vadd.f32 %v4819, %v5031
        %v5033 = vpop.f32.mrf.mxu0
        %v5034 = vadd.f32 %v4819, %v5033
        %5035 = vmatmul.bf16.gmra.mxu0 %v4898
        %v5036 = vpop.f32.mrf.mxu0
        %v5037 = vadd.f32 %v4819, %v5036
        %v5038 = vpop.f32.mrf.mxu0
        %v5039 = vadd.f32 %v4819, %v5038
        %5040 = vmatmul.bf16.gmra.mxu0 %v4901
        %v5041 = vpop.f32.mrf.mxu0
        %v5042 = vadd.f32 %v4819, %v5041
        %v5043 = vpop.f32.mrf.mxu0
        %v5044 = vadd.f32 %v4819, %v5043
        %5045 = vmatmul.bf16.gmra.mxu0 %v4904
        %v5046 = vpop.f32.mrf.mxu0
        %v5047 = vadd.f32 %v4819, %v5046
        %v5048 = vpop.f32.mrf.mxu0
        %v5049 = vadd.f32 %v4819, %v5048
        %5050 = vmatmul.bf16.gmra.mxu0 %v4907
        %v5051 = vpop.f32.mrf.mxu0
        %v5052 = vadd.f32 %v4819, %v5051
        %v5053 = vpop.f32.mrf.mxu0
        %v5054 = vadd.f32 %v4819, %v5053
        %5055 = vmatmul.bf16.gmra.mxu0 %v4910
        %v5056 = vpop.f32.mrf.mxu0
        %v5057 = vadd.f32 %v4819, %v5056
        %v5058 = vpop.f32.mrf.mxu0
        %v5059 = vadd.f32 %v4819, %v5058
        %5060 = vmatmul.bf16.gmra.mxu0 %v4913
        %v5061 = vpop.f32.mrf.mxu0
        %v5062 = vadd.f32 %v4819, %v5061
        %v5063 = vpop.f32.mrf.mxu0
        %v5064 = vadd.f32 %v4819, %v5063
        %5065 = vmatmul.bf16.gmra.mxu0 %v4916
        %v5066 = vpop.f32.mrf.mxu0
        %v5067 = vadd.f32 %v4819, %v5066
        %v5068 = vpop.f32.mrf.mxu0
        %v5069 = vadd.f32 %v4819, %v5068
        %5070 = vmatmul.bf16.gmra.mxu0 %v4919
        %v5071 = vpop.f32.mrf.mxu0
        %v5072 = vadd.f32 %v4819, %v5071
        %v5073 = vpop.f32.mrf.mxu0
        %v5074 = vadd.f32 %v4819, %v5073
        %5075 = vmatmul.bf16.gmra.mxu0 %v4922
        %v5076 = vpop.f32.mrf.mxu0
        %v5077 = vadd.f32 %v4819, %v5076
        %v5078 = vpop.f32.mrf.mxu0
        %v5079 = vadd.f32 %v4819, %v5078
        %5080 = vmatmul.bf16.gmra.mxu0 %v4925
        %v5081 = vpop.f32.mrf.mxu0
        %v5082 = vadd.f32 %v4819, %v5081
        %v5083 = vpop.f32.mrf.mxu0
        %v5084 = vadd.f32 %v4819, %v5083
        %5085 = vmatmul.bf16.gmra.mxu0 %v4928
        %v5086 = vpop.f32.mrf.mxu0
        %v5087 = vadd.f32 %v4819, %v5086
        %v5088 = vpop.f32.mrf.mxu0
        %v5089 = vadd.f32 %v4819, %v5088
        %5090 = vmatmul.bf16.gmra.mxu0 %v4931
        %v5091 = vpop.f32.mrf.mxu0
        %v5092 = vadd.f32 %v4819, %v5091
        %v5093 = vpop.f32.mrf.mxu0
        %v5094 = vadd.f32 %v4819, %v5093
        %5095 = vmatmul.bf16.gmra.mxu0 %v4934
        %v5096 = vpop.f32.mrf.mxu0
        %v5097 = vadd.f32 %v4819, %v5096
        %v5098 = vpop.f32.mrf.mxu0
        %v5099 = vadd.f32 %v4819, %v5098
        %5100 = vmatmul.bf16.gmra.mxu0 %v4937
        %v5101 = vpop.f32.mrf.mxu0
        %v5102 = vadd.f32 %v4819, %v5101
        %v5103 = vpop.f32.mrf.mxu0
        %v5104 = vadd.f32 %v4819, %v5103
        %5105 = vmatmul.bf16.gmra.mxu0 %v4940
        %v5106 = vpop.f32.mrf.mxu0
        %v5107 = vadd.f32 %v4819, %v5106
        %v5108 = vpop.f32.mrf.mxu0
        %v5109 = vadd.f32 %v4819, %v5108
        %5110 = vdwg.mxu0
        %v5111 = vmul.f32 %v4952, 0.02
        %v5112 = vmul.f32 %v4954, 0.02
        %v5113 = vmul.f32 %v4957, 0.02
        %v5114 = vmul.f32 %v4959, 0.02
        %v5115 = vmul.f32 %v4962, 0.02
        %v5116 = vmul.f32 %v4964, 0.02
        %v5117 = vmul.f32 %v4967, 0.02
        %v5118 = vmul.f32 %v4969, 0.02
        %v5119 = vmul.f32 %v4972, 0.02
        %v5120 = vmul.f32 %v4974, 0.02
        %v5121 = vmul.f32 %v4977, 0.02
        %v5122 = vmul.f32 %v4979, 0.02
        %v5123 = vmul.f32 %v4982, 0.02
        %v5124 = vmul.f32 %v4984, 0.02
        %v5125 = vmul.f32 %v4987, 0.02
        %v5126 = vmul.f32 %v4989, 0.02
        %v5127 = vmul.f32 %v4992, 0.02
        %v5128 = vmul.f32 %v4994, 0.02
        %v5129 = vmul.f32 %v4997, 0.02
        %v5130 = vmul.f32 %v4999, 0.02
        %v5131 = vmul.f32 %v5002, 0.02
        %v5132 = vmul.f32 %v5004, 0.02
        %v5133 = vmul.f32 %v5007, 0.02
        %v5134 = vmul.f32 %v5009, 0.02
        %v5135 = vmul.f32 %v5012, 0.02
        %v5136 = vmul.f32 %v5014, 0.02
        %v5137 = vmul.f32 %v5017, 0.02
        %v5138 = vmul.f32 %v5019, 0.02
        %v5139 = vmul.f32 %v5022, 0.02
        %v5140 = vmul.f32 %v5024, 0.02
        %v5141 = vmul.f32 %v5027, 0.02
        %v5142 = vmul.f32 %v5029, 0.02
        %v5143 = vmul.f32 %v5032, 0.02
        %v5144 = vmul.f32 %v5034, 0.02
        %v5145 = vmul.f32 %v5037, 0.02
        %v5146 = vmul.f32 %v5039, 0.02
        %v5147 = vmul.f32 %v5042, 0.02
        %v5148 = vmul.f32 %v5044, 0.02
        %v5149 = vmul.f32 %v5047, 0.02
        %v5150 = vmul.f32 %v5049, 0.02
        %v5151 = vmul.f32 %v5052, 0.02
        %v5152 = vmul.f32 %v5054, 0.02
        %v5153 = vmul.f32 %v5057, 0.02
        %v5154 = vmul.f32 %v5059, 0.02
        %v5155 = vmul.f32 %v5062, 0.02
        %v5156 = vmul.f32 %v5064, 0.02
        %v5157 = vmul.f32 %v5067, 0.02
        %v5158 = vmul.f32 %v5069, 0.02
        %v5159 = vmul.f32 %v5072, 0.02
        %v5160 = vmul.f32 %v5074, 0.02
        %v5161 = vmul.f32 %v5077, 0.02
        %v5162 = vmul.f32 %v5079, 0.02
        %v5163 = vmul.f32 %v5082, 0.02
        %v5164 = vmul.f32 %v5084, 0.02
        %v5165 = vmul.f32 %v5087, 0.02
        %v5166 = vmul.f32 %v5089, 0.02
        %v5167 = vmul.f32 %v5092, 0.02
        %v5168 = vmul.f32 %v5094, 0.02
        %v5169 = vmul.f32 %v5097, 0.02
        %v5170 = vmul.f32 %v5099, 0.02
        %v5171 = vmul.f32 %v5102, 0.02
        %v5172 = vmul.f32 %v5104, 0.02
        %v5173 = vmul.f32 %v5107, 0.02
        %v5174 = vmul.f32 %v5109, 0.02
        %v5175 = vmax.f32 %v4952, %v5111
        %v5176 = vmax.f32 %v4954, %v5112
        %v5177 = vmax.f32 %v4957, %v5113
        %v5178 = vmax.f32 %v4959, %v5114
        %v5179 = vmax.f32 %v4962, %v5115
        %v5180 = vmax.f32 %v4964, %v5116
        %v5181 = vmax.f32 %v4967, %v5117
        %v5182 = vmax.f32 %v4969, %v5118
        %v5183 = vmax.f32 %v4972, %v5119
        %v5184 = vmax.f32 %v4974, %v5120
        %v5185 = vmax.f32 %v4977, %v5121
        %v5186 = vmax.f32 %v4979, %v5122
        %v5187 = vmax.f32 %v4982, %v5123
        %v5188 = vmax.f32 %v4984, %v5124
        %v5189 = vmax.f32 %v4987, %v5125
        %v5190 = vmax.f32 %v4989, %v5126
        %v5191 = vmax.f32 %v4992, %v5127
        %v5192 = vmax.f32 %v4994, %v5128
        %v5193 = vmax.f32 %v4997, %v5129
        %v5194 = vmax.f32 %v4999, %v5130
        %v5195 = vmax.f32 %v5002, %v5131
        %v5196 = vmax.f32 %v5004, %v5132
        %v5197 = vmax.f32 %v5007, %v5133
        %v5198 = vmax.f32 %v5009, %v5134
        %v5199 = vmax.f32 %v5012, %v5135
        %v5200 = vmax.f32 %v5014, %v5136
        %v5201 = vmax.f32 %v5017, %v5137
        %v5202 = vmax.f32 %v5019, %v5138
        %v5203 = vmax.f32 %v5022, %v5139
        %v5204 = vmax.f32 %v5024, %v5140
        %v5205 = vmax.f32 %v5027, %v5141
        %v5206 = vmax.f32 %v5029, %v5142
        %v5207 = vmax.f32 %v5032, %v5143
        %v5208 = vmax.f32 %v5034, %v5144
        %v5209 = vmax.f32 %v5037, %v5145
        %v5210 = vmax.f32 %v5039, %v5146
        %v5211 = vmax.f32 %v5042, %v5147
        %v5212 = vmax.f32 %v5044, %v5148
        %v5213 = vmax.f32 %v5047, %v5149
        %v5214 = vmax.f32 %v5049, %v5150
        %v5215 = vmax.f32 %v5052, %v5151
        %v5216 = vmax.f32 %v5054, %v5152
        %v5217 = vmax.f32 %v5057, %v5153
        %v5218 = vmax.f32 %v5059, %v5154
        %v5219 = vmax.f32 %v5062, %v5155
        %v5220 = vmax.f32 %v5064, %v5156
        %v5221 = vmax.f32 %v5067, %v5157
        %v5222 = vmax.f32 %v5069, %v5158
        %v5223 = vmax.f32 %v5072, %v5159
        %v5224 = vmax.f32 %v5074, %v5160
        %v5225 = vmax.f32 %v5077, %v5161
        %v5226 = vmax.f32 %v5079, %v5162
        %v5227 = vmax.f32 %v5082, %v5163
        %v5228 = vmax.f32 %v5084, %v5164
        %v5229 = vmax.f32 %v5087, %v5165
        %v5230 = vmax.f32 %v5089, %v5166
        %v5231 = vmax.f32 %v5092, %v5167
        %v5232 = vmax.f32 %v5094, %v5168
        %v5233 = vmax.f32 %v5097, %v5169
        %v5234 = vmax.f32 %v5099, %v5170
        %v5235 = vmax.f32 %v5102, %v5171
        %v5236 = vmax.f32 %v5104, %v5172
        %v5237 = vmax.f32 %v5107, %v5173
        %v5238 = vmax.f32 %v5109, %v5174
        %v5239 = vpack.c.bf16 %v5176, %v5175
        %v5240 = vpack.c.bf16 %v5178, %v5177
        %v5241 = vpack.c.bf16 %v5180, %v5179
        %v5242 = vpack.c.bf16 %v5182, %v5181
        %v5243 = vpack.c.bf16 %v5184, %v5183
        %v5244 = vpack.c.bf16 %v5186, %v5185
        %v5245 = vpack.c.bf16 %v5188, %v5187
        %v5246 = vpack.c.bf16 %v5190, %v5189
        %v5247 = vpack.c.bf16 %v5192, %v5191
        %v5248 = vpack.c.bf16 %v5194, %v5193
        %v5249 = vpack.c.bf16 %v5196, %v5195
        %v5250 = vpack.c.bf16 %v5198, %v5197
        %v5251 = vpack.c.bf16 %v5200, %v5199
        %v5252 = vpack.c.bf16 %v5202, %v5201
        %v5253 = vpack.c.bf16 %v5204, %v5203
        %v5254 = vpack.c.bf16 %v5206, %v5205
        %v5255 = vpack.c.bf16 %v5208, %v5207
        %v5256 = vpack.c.bf16 %v5210, %v5209
        %v5257 = vpack.c.bf16 %v5212, %v5211
        %v5258 = vpack.c.bf16 %v5214, %v5213
        %v5259 = vpack.c.bf16 %v5216, %v5215
        %v5260 = vpack.c.bf16 %v5218, %v5217
        %v5261 = vpack.c.bf16 %v5220, %v5219
        %v5262 = vpack.c.bf16 %v5222, %v5221
        %v5263 = vpack.c.bf16 %v5224, %v5223
        %v5264 = vpack.c.bf16 %v5226, %v5225
        %v5265 = vpack.c.bf16 %v5228, %v5227
        %v5266 = vpack.c.bf16 %v5230, %v5229
        %v5267 = vpack.c.bf16 %v5232, %v5231
        %v5268 = vpack.c.bf16 %v5234, %v5233
        %v5269 = vpack.c.bf16 %v5236, %v5235
        %v5270 = vpack.c.bf16 %v5238, %v5237
        %v5271 = vld [vmem:[%s13] sm:$0x3]
        %v5272 = vld [vmem:[%s14] sm:$0x7]
        %5274 = vset.pattern.permute.xlu0 0
        %5275 = vperm.xlu0 %5274, %v5272
        %v5276 = vpop.permute.xlu0 %5275
        %vm5278 = vcmask 261120
        %v5280 = vsel %vm5278, %v5271, 0
        %v5283 = vsel %vm5278, %v5239, 0
        %v5286 = vsel %vm5278, %v5240, 0
        %v5289 = vsel %vm5278, %v5241, 0
        %v5292 = vsel %vm5278, %v5242, 0
        %v5295 = vsel %vm5278, %v5243, 0
        %v5298 = vsel %vm5278, %v5244, 0
        %v5301 = vsel %vm5278, %v5245, 0
        %v5304 = vsel %vm5278, %v5246, 0
        %v5307 = vsel %vm5278, %v5247, 0
        %v5310 = vsel %vm5278, %v5248, 0
        %v5313 = vsel %vm5278, %v5249, 0
        %v5316 = vsel %vm5278, %v5250, 0
        %v5319 = vsel %vm5278, %v5251, 0
        %v5322 = vsel %vm5278, %v5252, 0
        %v5325 = vsel %vm5278, %v5253, 0
        %v5328 = vsel %vm5278, %v5254, 0
        %v5331 = vsel %vm5278, %v5255, 0
        %v5334 = vsel %vm5278, %v5256, 0
        %v5337 = vsel %vm5278, %v5257, 0
        %v5340 = vsel %vm5278, %v5258, 0
        %v5343 = vsel %vm5278, %v5259, 0
        %v5346 = vsel %vm5278, %v5260, 0
        %v5349 = vsel %vm5278, %v5261, 0
        %v5352 = vsel %vm5278, %v5262, 0
        %v5355 = vsel %vm5278, %v5263, 0
        %v5358 = vsel %vm5278, %v5264, 0
        %v5361 = vsel %vm5278, %v5265, 0
        %v5364 = vsel %vm5278, %v5266, 0
        %v5367 = vsel %vm5278, %v5267, 0
        %v5370 = vsel %vm5278, %v5268, 0
        %v5373 = vsel %vm5278, %v5269, 0
        %v5376 = vsel %vm5278, %v5270, 0
        %5378 = vmatpush.bf16.xpose.msra.mxu0 %v5304
        %5379 = vmatpush.bf16.xpose.msra.mxu0 %v5301
        %5380 = vmatpush.bf16.xpose.msra.mxu0 %v5298
        %5381 = vmatpush.bf16.xpose.msra.mxu0 %v5295
        %5382 = vmatpush.bf16.xpose.msra.mxu0 %v5292
        %5383 = vmatpush.bf16.xpose.msra.mxu0 %v5289
        %5384 = vmatpush.bf16.xpose.msra.mxu0 %v5286
        %5385 = vmatpush.bf16.xpose.msra.mxu0 %v5283
        %5386 = vmatmul.bf16.gmra.mxu0 %v5280
        %v5387 = vpop.f32.mrf.mxu0
        %v5388 = vadd.f32 %v5276, %v5387
        %v5389 = vpop.f32.mrf.mxu0
        %5390 = vdwg.mxu0
        %5391 = vmatpush.bf16.xpose.msra.mxu0 %v5328
        %5392 = vmatpush.bf16.xpose.msra.mxu0 %v5325
        %5393 = vmatpush.bf16.xpose.msra.mxu0 %v5322
        %5394 = vmatpush.bf16.xpose.msra.mxu0 %v5319
        %5395 = vmatpush.bf16.xpose.msra.mxu0 %v5316
        %5396 = vmatpush.bf16.xpose.msra.mxu0 %v5313
        %5397 = vmatpush.bf16.xpose.msra.mxu0 %v5310
        %5398 = vmatpush.bf16.xpose.msra.mxu0 %v5307
        %5399 = vmatmul.bf16.gmra.mxu0 %v5280
        %v5400 = vpop.f32.mrf.mxu0
        %v5401 = vadd.f32 %v5276, %v5400
        %v5402 = vpop.f32.mrf.mxu0
        %5403 = vdwg.mxu0
        %5404 = vmatpush.bf16.xpose.msra.mxu0 %v5352
        %5405 = vmatpush.bf16.xpose.msra.mxu0 %v5349
        %5406 = vmatpush.bf16.xpose.msra.mxu0 %v5346
        %5407 = vmatpush.bf16.xpose.msra.mxu0 %v5343
        %5408 = vmatpush.bf16.xpose.msra.mxu0 %v5340
        %5409 = vmatpush.bf16.xpose.msra.mxu0 %v5337
        %5410 = vmatpush.bf16.xpose.msra.mxu0 %v5334
        %5411 = vmatpush.bf16.xpose.msra.mxu0 %v5331
        %5412 = vmatmul.bf16.gmra.mxu0 %v5280
        %v5413 = vpop.f32.mrf.mxu0
        %v5414 = vadd.f32 %v5276, %v5413
        %v5415 = vpop.f32.mrf.mxu0
        %5416 = vdwg.mxu0
        %5417 = vmatpush.bf16.xpose.msra.mxu0 %v5376
        %5418 = vmatpush.bf16.xpose.msra.mxu0 %v5373
        %5419 = vmatpush.bf16.xpose.msra.mxu0 %v5370
        %5420 = vmatpush.bf16.xpose.msra.mxu0 %v5367
        %5421 = vmatpush.bf16.xpose.msra.mxu0 %v5364
        %5422 = vmatpush.bf16.xpose.msra.mxu0 %v5361
        %5423 = vmatpush.bf16.xpose.msra.mxu0 %v5358
        %5424 = vmatpush.bf16.xpose.msra.mxu0 %v5355
        %5425 = vmatmul.bf16.gmra.mxu0 %v5280
        %v5426 = vpop.f32.mrf.mxu0
        %v5427 = vadd.f32 %v5276, %v5426
        %v5428 = vpop.f32.mrf.mxu0
        %5429 = vdwg.mxu0
        %v5434 = vrot.slane %v5401, 4
        %v5435 = vrot.slane %v5427, 4
        %vm5436 = vcmask 1043456
        %v5437 = vsel %vm5436, %v5388, %v5434
        %v5438 = vsel %vm5436, %v5414, %v5435
        %5441 = vst [vmem:[%s488] sm:$0x77] %v5437
        %5442 = vst [vmem:[%s488 + $0x8] sm:$0x77] %v5438
        %s5443 = sand.u32 %s357, 1
        %s5444 = scalar_lea.sflag [#allocation3], %s5443
        %s5445 = sand.u32 %s357, 1
        %s5446 = smul.addr %s5445, 16
        %s5447 = scalar_lea.vmem [#allocation2], %s5446
        // Predicated region
        $region81: #{tpu_custom_call.1} parent=79 // pred_check
          %p5448 = pneg %p367
        $region82: #{tpu_custom_call.1} parent=79 // pred_check_branch
          %5450 = sbr.rel (%p5448) target = $region84
        $region83: #{tpu_custom_call.1} parent=79 // pred_region
          %s5451 = smul.u32 4, %s29
          %5453 = vsyncadd %s5444, 0
          %s5454 = smul.addr %s5451, 4
          %s5455 = scalar_lea.hbm %s15, %s5454
          %s5457 = sshll.u32 %s5447, 4
          %s5458 = int_to_ptr.vmem [resolvable:$true] %s5457
          %s5459 = sshll.u32 %s5455, 4
          %s5460 = int_to_ptr.hbm [resolvable:$true] %s5459
          %5462 = dma.vmem_to_hbm [thread:$0]  %s5458, 256, %s5460, %s5444
        $region84: #{tpu_custom_call.1} parent=79 // pred_fallthru
          _
      $region80: #{tpu_custom_call.1} parent=5 // pred_fallthru
        _
      %p5463 = scmp.le.s32.totalorder 2, %s24
      // Predicated region
      $region85: #{tpu_custom_call.1} parent=5 // pred_check
        %p5464 = pneg %p5463
      $region86: #{tpu_custom_call.1} parent=5 // pred_check_branch
        %5466 = sbr.rel (%p5464) target = $region88
      $region87: #{tpu_custom_call.1} parent=5 // pred_region
        %s5467 = ssub.s32 %s24, 2
        // Predicated region
        $region89: #{tpu_custom_call.1} parent=87 // pred_check
          %p5468 = pneg %p373
        $region90: #{tpu_custom_call.1} parent=87 // pred_check_branch
          %5470 = sbr.rel (%p5468) target = $region92
        $region91: #{tpu_custom_call.1} parent=87 // pred_region
          %s5471 = sand.u32 %s358, 1
          %s5472 = scalar_lea.sflag [#allocation3], %s5471
          %s5473 = sand.u32 %s358, 1
          %s5474 = smul.addr %s5473, 16
          %s5475 = scalar_lea.vmem [#allocation2], %s5474
          %5477 = dma.done %s5472, 256
        $region92: #{tpu_custom_call.1} parent=87 // pred_fallthru
          _
      $region88: #{tpu_custom_call.1} parent=5 // pred_fallthru
        _
    $region6: #{tpu_custom_call.1} parent=1 // loop_footer
      %s28 = sadd.s32 1, %s24
    $region7: #{tpu_custom_call.1} parent=1 // loop_footer_branch
      %23 = sbr.rel target = $region3
    $region8: #{tpu_custom_call.1} parent=1 // loop_exit
      _
    %5478 = vsyncpa [#allocation3], 1
    %s5479 = scalar_lea.sflag [#allocation3], 1
    %5480 = vsyncpa %s5479, 1

</llo_original>
